<compile_context>
chip_gen: v7x
topology: tpu7x:2x2x1
jax: 0.10.0
libtpu: 0.0.40
codegen_flags: <defaults>
</compile_context>

<pallas_src>
import functools

import jax
import jax.numpy as jnp
from jax import lax
from jax.experimental import pallas as pl
from jax.experimental.pallas import tpu as pltpu

BN_EPS = 1e-5
LANE = 128
ACT_DTYPE = jnp.bfloat16            # storage + MXU operand dtype (f32 accum)
VMEM_LIMIT = 32 * 1024 * 1024       # leaves headroom on v7x (64 MiB physical)


def _cparams(*sem):
    return pltpu.CompilerParams(
        dimension_semantics=tuple(sem), vmem_limit_bytes=VMEM_LIMIT)


def _round_up(v, m):
    return ((v + m - 1) // m) * m


def _row_tile(m, max_rows):
    """Largest row tile <= max_rows that divides m (multiple of 8), else m."""
    for t in (2048, 1024, 512, 256, 128, 64, 32, 16, 8):
        if t <= max_rows and m % t == 0:
            return t
    return m


def _pad_last(a, target):
    pad = target - a.shape[-1]
    if pad == 0:
        return a
    return jnp.pad(a, [(0, 0)] * (a.ndim - 1) + [(0, pad)])


# ---------------------------------------------------------------------------
# Kernels
# ---------------------------------------------------------------------------
def _matmul_stats_kernel(x_ref, w_ref, z_ref, s_ref, ss_ref):
    """Phase 1 of 1x1 conv + BN: MXU matmul + per-tile channel sum/sumsq."""
    z = jnp.dot(x_ref[...], w_ref[...], preferred_element_type=jnp.float32)
    z_ref[...] = z.astype(z_ref.dtype)
    s = jnp.sum(z, axis=0, keepdims=True)
    ss = jnp.sum(z * z, axis=0, keepdims=True)
    s_ref[...] = jnp.broadcast_to(s, s_ref.shape)
    ss_ref[...] = jnp.broadcast_to(ss, ss_ref.shape)


def _bn_act_kernel(z_ref, scale_ref, shift_ref, o_ref, *, relu):
    """Phase 2 of BN: y = z*scale + shift (+ ReLU) -- one FMA per element."""
    y = z_ref[...].astype(jnp.float32) * scale_ref[...] + shift_ref[...]
    if relu:
        y = jnp.maximum(y, 0.0)
    o_ref[...] = y.astype(o_ref.dtype)


# Depthwise 3x3 stride-2 conv: the wrapper pre-splits the zero-padded input
# into its 4 stride-2 parity planes, so every tap is a static contiguous
# (ho, wo) slice.  Table entries: (tap = 3*kh + kw, plane, row_off, col_off).
_TAPS = (
    (0, 0, 0, 0), (1, 1, 0, 0), (2, 0, 0, 1),
    (3, 2, 0, 0), (4, 3, 0, 0), (5, 2, 0, 1),
    (6, 0, 1, 0), (7, 1, 1, 0), (8, 0, 1, 1),
)


def _dwconv_stats_kernel(p00_ref, p01_ref, p10_ref, p11_ref, w_ref,
                         z_ref, s_ref, ss_ref):
    ho, wo, c = z_ref.shape
    planes = (p00_ref, p01_ref, p10_ref, p11_ref)
    acc = jnp.zeros((ho, wo, c), jnp.float32)
    for tap, plane, ro, co in _TAPS:
        slab = planes[plane][ro:ro + ho, co:co + wo, :].astype(jnp.float32)
        acc = acc + slab * w_ref[tap, :].reshape(1, 1, c)
    z_ref[...] = acc.astype(z_ref.dtype)
    s = jnp.sum(acc, axis=(0, 1)).reshape(1, c)
    ss = jnp.sum(acc * acc, axis=(0, 1)).reshape(1, c)
    s_ref[...] = jnp.broadcast_to(s, s_ref.shape)
    ss_ref[...] = jnp.broadcast_to(ss, ss_ref.shape)


def _se_pool_kernel(z_ref, scale_ref, shift_ref, o_ref):
    """SE squeeze: per-image channel sums of ReLU(BN2(z2))."""
    ho, wo, c = z_ref.shape
    sc = scale_ref[0, :].reshape(1, 1, c)
    sh = shift_ref[0, :].reshape(1, 1, c)
    a = jnp.maximum(z_ref[...].astype(jnp.float32) * sc + sh, 0.0)
    s = jnp.sum(a, axis=(0, 1)).reshape(1, c)
    o_ref[...] = jnp.broadcast_to(s, o_ref.shape)


def _gated_matmul_stats_kernel(z2_ref, scale_ref, shift_ref, gate_ref, w_ref,
                               z3_ref, s_ref, ss_ref):
    """BN2-apply + ReLU + SE gate + 1x1 conv3 (MXU) + per-tile BN3 stats."""
    a2 = jnp.maximum(
        z2_ref[...].astype(jnp.float32) * scale_ref[...] + shift_ref[...], 0.0)
    a3 = a2 * gate_ref[...]
    z3 = jnp.dot(a3.astype(w_ref.dtype), w_ref[...],
                 preferred_element_type=jnp.float32)
    z3_ref[...] = z3.astype(z3_ref.dtype)
    s = jnp.sum(z3, axis=0, keepdims=True)
    ss = jnp.sum(z3 * z3, axis=0, keepdims=True)
    s_ref[...] = jnp.broadcast_to(s, s_ref.shape)
    ss_ref[...] = jnp.broadcast_to(ss, ss_ref.shape)


# ---------------------------------------------------------------------------
# Wrapper
# ---------------------------------------------------------------------------
def _finalize_bn(psum, psumsq, count, gamma_p, beta_p):
    """Combine per-tile partial sums into a fused (1, C) scale / shift."""
    c = psum.shape[-1]
    s = psum[..., 0, :].reshape(-1, c).sum(axis=0)
    ss = psumsq[..., 0, :].reshape(-1, c).sum(axis=0)
    mean = s / count
    var = jnp.maximum(ss / count - mean * mean, 0.0)
    scale = gamma_p * lax.rsqrt(var + BN_EPS)
    shift = beta_p - mean * scale
    return scale.reshape(1, c), shift.reshape(1, c)


@functools.partial(jax.jit, static_argnames=("max_tile_rows",))
def patch_merging(x, params, max_tile_rows=256):
    """PatchMerging forward.  x: (N, dim, H, W) f32 -> (N, out_dim, H/2, W/2) f32."""
    w1 = params["w1"]              # (hid, dim, 1, 1)
    w_dw = params["w_dw"]          # (hid, 1, 3, 3)  depthwise
    w3 = params["w3"]              # (out_dim, hid, 1, 1)
    wr, br = params["se_w_reduce"], params["se_b_reduce"]   # (rd, hid), (rd,)
    we, be = params["se_w_expand"], params["se_b_expand"]   # (hid, rd), (hid,)

    n, c0, h, w = x.shape
    assert h % 2 == 0 and w % 2 == 0, "PatchMerging expects even spatial dims"
    c1, c2 = w1.shape[0], w3.shape[0]
    ho, wo = h // 2, w // 2
    c1p, c2p = _round_up(c1, LANE), _round_up(c2, LANE)
    f32 = jnp.float32

    gamma1 = _pad_last(params["gamma1"].astype(f32), c1p)
    beta1 = _pad_last(params["beta1"].astype(f32), c1p)
    gamma2 = _pad_last(params["gamma2"].astype(f32), c1p)
    beta2 = _pad_last(params["beta2"].astype(f32), c1p)
    gamma3 = _pad_last(params["gamma3"].astype(f32), c2p)
    beta3 = _pad_last(params["beta3"].astype(f32), c2p)

    # ---- stage 1: 1x1 conv (dim -> hid) + BN1 partial stats ---------------
    m1 = n * h * w
    x_flat = jnp.transpose(x, (0, 2, 3, 1)).reshape(m1, c0).astype(ACT_DTYPE)
    w1_mat = _pad_last(w1.reshape(c1, c0).T.astype(f32), c1p).astype(ACT_DTYPE)
    tm1 = _row_tile(m1, max_tile_rows)
    g1 = m1 // tm1
    z1, ps1, pss1 = pl.pallas_call(
        _matmul_stats_kernel,
        grid=(g1,),
        in_specs=[
            pl.BlockSpec((tm1, c0), lambda i: (i, 0)),
            pl.BlockSpec((c0, c1p), lambda i: (0, 0)),
        ],
        out_specs=[
            pl.BlockSpec((tm1, c1p), lambda i: (i, 0)),
            pl.BlockSpec((None, 8, c1p), lambda i: (i, 0, 0)),
            pl.BlockSpec((None, 8, c1p), lambda i: (i, 0, 0)),
        ],
        out_shape=(
            jax.ShapeDtypeStruct((m1, c1p), ACT_DTYPE),
            jax.ShapeDtypeStruct((g1, 8, c1p), f32),
            jax.ShapeDtypeStruct((g1, 8, c1p), f32),
        ),
        compiler_params=_cparams("parallel"),
    )(x_flat, w1_mat)
    scale1, shift1 = _finalize_bn(ps1, pss1, float(m1), gamma1, beta1)

    # ---- BN1 apply + ReLU (phase 2 of the two-phase BN) --------------------
    a1 = pl.pallas_call(
        functools.partial(_bn_act_kernel, relu=True),
        grid=(g1,),
        in_specs=[
            pl.BlockSpec((tm1, c1p), lambda i: (i, 0)),
            pl.BlockSpec((1, c1p), lambda i: (0, 0)),
            pl.BlockSpec((1, c1p), lambda i: (0, 0)),
        ],
        out_specs=pl.BlockSpec((tm1, c1p), lambda i: (i, 0)),
        out_shape=jax.ShapeDtypeStruct((m1, c1p), ACT_DTYPE),
        compiler_params=_cparams("parallel"),
    )(z1, scale1, shift1)

    # ---- stage 2: depthwise 3x3 stride-2 conv + BN2 partial stats ----------
    a1_pad = jnp.pad(a1.reshape(n, h, w, c1p), ((0, 0), (1, 1), (1, 1), (0, 0)))
    p00 = a1_pad[:, 0::2, 0::2, :]
    p01 = a1_pad[:, 0::2, 1::2, :]
    p10 = a1_pad[:, 1::2, 0::2, :]
    p11 = a1_pad[:, 1::2, 1::2, :]
    hp, wp = ho + 1, wo + 1
    w_dw_taps = jnp.zeros((9, c1p), f32).at[:, :c1].set(
        w_dw.reshape(c1, 9).T.astype(f32))
    plane_spec = pl.BlockSpec((None, hp, wp, c1p), lambda i: (i, 0, 0, 0))
    # TODO(synk): for very large feature maps, additionally tile image rows
    # here (needs a 1-row halo DMA); one image per grid step is plenty for
    # ViT-scale resolutions and keeps every tap a static slice.
    z2, ps2, pss2 = pl.pallas_call(
        _dwconv_stats_kernel,
        grid=(n,),
        in_specs=[plane_spec, plane_spec, plane_spec, plane_spec,
                  pl.BlockSpec((9, c1p), lambda i: (0, 0))],
        out_specs=[
            pl.BlockSpec((None, ho, wo, c1p), lambda i: (i, 0, 0, 0)),
            pl.BlockSpec((None, 8, c1p), lambda i: (i, 0, 0)),
            pl.BlockSpec((None, 8, c1p), lambda i: (i, 0, 0)),
        ],
        out_shape=(
            jax.ShapeDtypeStruct((n, ho, wo, c1p), ACT_DTYPE),
            jax.ShapeDtypeStruct((n, 8, c1p), f32),
            jax.ShapeDtypeStruct((n, 8, c1p), f32),
        ),
        compiler_params=_cparams("parallel"),
    )(p00, p01, p10, p11, w_dw_taps)
    m2 = n * ho * wo
    scale2, shift2 = _finalize_bn(ps2, pss2, float(m2), gamma2, beta2)

    # ---- SE squeeze: per-image spatial mean of ReLU(BN2(z2)) ---------------
    pooled = pl.pallas_call(
        _se_pool_kernel,
        grid=(n,),
        in_specs=[
            pl.BlockSpec((None, ho, wo, c1p), lambda i: (i, 0, 0, 0)),
            pl.BlockSpec((1, c1p), lambda i: (0, 0)),
            pl.BlockSpec((1, c1p), lambda i: (0, 0)),
        ],
        out_specs=pl.BlockSpec((None, 8, c1p), lambda i: (i, 0, 0)),
        out_shape=jax.ShapeDtypeStruct((n, 8, c1p), f32),
        compiler_params=_cparams("parallel"),
    )(z2, scale2, shift2)
    se_mean = pooled[:, 0, :c1] / float(ho * wo)                  # (N, hid)

    # TODO(synk): SE excitation FCs are (N, hid)-sized -- left in plain JAX.
    red = jnp.maximum(se_mean @ wr.astype(f32).T + br.astype(f32), 0.0)
    gate = jax.nn.sigmoid(red @ we.astype(f32).T + be.astype(f32))  # (N, hid)
    gate_p = jnp.zeros((n, 1, c1p), f32).at[:, 0, :c1].set(gate)

    # ---- stage 3: BN2 apply + ReLU + gate + 1x1 conv3 + BN3 partial stats --
    rows = ho * wo
    tm2 = _row_tile(rows, max_tile_rows)
    t2 = rows // tm2
    z2_flat = z2.reshape(n, rows, c1p)
    w3_mat = jnp.zeros((c1p, c2p), f32).at[:c1, :c2].set(
        w3.reshape(c2, c1).T.astype(f32)).astype(ACT_DTYPE)
    z3, ps3, pss3 = pl.pallas_call(
        _gated_matmul_stats_kernel,
        grid=(n, t2),
        in_specs=[
            pl.BlockSpec((None, tm2, c1p), lambda i, j: (i, j, 0)),
            pl.BlockSpec((1, c1p), lambda i, j: (0, 0)),
            pl.BlockSpec((1, c1p), lambda i, j: (0, 0)),
            pl.BlockSpec((None, 1, c1p), lambda i, j: (i, 0, 0)),
            pl.BlockSpec((c1p, c2p), lambda i, j: (0, 0)),
        ],
        out_specs=[
            pl.BlockSpec((None, tm2, c2p), lambda i, j: (i, j, 0)),
            pl.BlockSpec((None, None, 8, c2p), lambda i, j: (i, j, 0, 0)),
            pl.BlockSpec((None, None, 8, c2p), lambda i, j: (i, j, 0, 0)),
        ],
        out_shape=(
            jax.ShapeDtypeStruct((n, rows, c2p), ACT_DTYPE),
            jax.ShapeDtypeStruct((n, t2, 8, c2p), f32),
            jax.ShapeDtypeStruct((n, t2, 8, c2p), f32),
        ),
        compiler_params=_cparams("parallel", "parallel"),
    )(z2_flat, scale2, shift2, gate_p, w3_mat)
    scale3, shift3 = _finalize_bn(ps3, pss3, float(m2), gamma3, beta3)

    # ---- BN3 apply (PatchMerging has no ReLU after conv3) ------------------
    tm3 = _row_tile(m2, max_tile_rows)
    out_flat = pl.pallas_call(
        functools.partial(_bn_act_kernel, relu=False),
        grid=(m2 // tm3,),
        in_specs=[
            pl.BlockSpec((tm3, c2p), lambda i: (i, 0)),
            pl.BlockSpec((1, c2p), lambda i: (0, 0)),
            pl.BlockSpec((1, c2p), lambda i: (0, 0)),
        ],
        out_specs=pl.BlockSpec((tm3, c2p), lambda i: (i, 0)),
        out_shape=jax.ShapeDtypeStruct((m2, c2p), f32),
        compiler_params=_cparams("parallel"),
    )(z3.reshape(m2, c2p), scale3, shift3)

    out = out_flat[:, :c2].reshape(n, ho, wo, c2)
    return jnp.transpose(out, (0, 3, 1, 2))                       # NCHW


# ---------------------------------------------------------------------------
# Pure-JAX f32 reference of the PyTorch forward (training-mode BN)
# ---------------------------------------------------------------------------
def _bn_ref(z, gamma, beta):
    mean = jnp.mean(z, axis=(0, 2, 3), keepdims=True)
    var = jnp.mean(jnp.square(z - mean), axis=(0, 2, 3), keepdims=True)
    return ((z - mean) * lax.rsqrt(var + BN_EPS) * gamma.reshape(1, -1, 1, 1)
            + beta.reshape(1, -1, 1, 1))


def reference(x, params):
    f32 = jnp.float32
    dn = ("NCHW", "OIHW", "NCHW")
    c1 = params["w1"].shape[0]
    z1 = lax.conv_general_dilated(x.astype(f32), params["w1"].astype(f32),
                                  (1, 1), "VALID", dimension_numbers=dn)
    a1 = jnp.maximum(_bn_ref(z1, params["gamma1"], params["beta1"]), 0.0)
    z2 = lax.conv_general_dilated(a1, params["w_dw"].astype(f32), (2, 2),
                                  ((1, 1), (1, 1)), dimension_numbers=dn,
                                  feature_group_count=c1)
    a2 = jnp.maximum(_bn_ref(z2, params["gamma2"], params["beta2"]), 0.0)
    s = jnp.mean(a2, axis=(2, 3))
    red = jnp.maximum(s @ params["se_w_reduce"].astype(f32).T
                      + params["se_b_reduce"].astype(f32), 0.0)
    gate = jax.nn.sigmoid(red @ params["se_w_expand"].astype(f32).T
                          + params["se_b_expand"].astype(f32))
    a3 = a2 * gate[:, :, None, None]
    z3 = lax.conv_general_dilated(a3, params["w3"].astype(f32), (1, 1),
                                  "VALID", dimension_numbers=dn)
    return _bn_ref(z3, params["gamma3"], params["beta3"])


if __name__ == "__main__":
    key = jax.random.PRNGKey(0)
    ks = jax.random.split(key, 9)

    N, DIM, OUT_DIM, H, W = 2, 4, 8, 16, 16
    HID = 4 * DIM
    RD = max(8, int(HID * 0.25 + 4) // 8 * 8)   # timm make_divisible(hid/4, 8)

    x = jax.random.normal(ks[0], (N, DIM, H, W), jnp.float32)
    params = dict(
        w1=jax.random.normal(ks[1], (HID, DIM, 1, 1), jnp.float32) * (2.0 / DIM) ** 0.5,
        gamma1=jnp.ones((HID,), jnp.float32), beta1=jnp.zeros((HID,), jnp.float32),
        w_dw=jax.random.normal(ks[2], (HID, 1, 3, 3), jnp.float32) * (2.0 / 9.0) ** 0.5,
        gamma2=jnp.ones((HID,), jnp.float32), beta2=jnp.zeros((HID,), jnp.float32),
        se_w_reduce=jax.random.normal(ks[3], (RD, HID), jnp.float32) * (1.0 / HID) ** 0.5,
        se_b_reduce=0.1 * jax.random.normal(ks[4], (RD,), jnp.float32),
        se_w_expand=jax.random.normal(ks[5], (HID, RD), jnp.float32) * (1.0 / RD) ** 0.5,
        se_b_expand=0.1 * jax.random.normal(ks[6], (HID,), jnp.float32),
        w3=jax.random.normal(ks[7], (OUT_DIM, HID, 1, 1), jnp.float32) * (2.0 / HID) ** 0.5,
        gamma3=jnp.ones((OUT_DIM,), jnp.float32), beta3=jnp.zeros((OUT_DIM,), jnp.float32),
    )

    out = jax.block_until_ready(patch_merging(x, params))
    ref = jax.block_until_ready(reference(x, params))

    assert out.shape == (N, OUT_DIM, H // 2, W // 2), out.shape
    assert bool(jnp.all(jnp.isfinite(out)))
    rel = float(jnp.linalg.norm(out - ref) / (jnp.linalg.norm(ref) + 1e-12))
    # bf16 MXU feeds + bf16 inter-stage activations => compare in norm.
    assert rel < 2e-2, f"relative L2 error vs reference too large: {rel}"
    print("KERNEL_OK")
</pallas_src>

<mosaic_0001>
module attributes {stable_mosaic.version = 11 : i64} {
  func.func @_matmul_stats_kernel(%arg0: i32, %arg1: memref<256x4xbf16, #tpu.memory_space<vmem>>, %arg2: memref<4x128xbf16, #tpu.memory_space<vmem>>, %arg3: memref<256x128xbf16, #tpu.memory_space<vmem>>, %arg4: memref<1x8x128xf32, #tpu.memory_space<vmem>>, %arg5: memref<1x8x128xf32, #tpu.memory_space<vmem>>) attributes {dimension_semantics = [#tpu.dimension_semantics<parallel>], iteration_bounds = array<i64: 2>, scalar_prefetch = 0 : i64, scratch_operands = 0 : i64, tpu.core_type = #tpu.core_type<tc>, window_params = [{transform_indices = @transform_0, window_bounds = array<i64: 256, 4>}, {pipeline_mode = #tpu.pipeline_mode<synchronous>, transform_indices = @transform_1, window_bounds = array<i64: 4, 128>}, {transform_indices = @transform_2, window_bounds = array<i64: 256, 128>}, {transform_indices = @transform_3, window_bounds = array<i64: 1, 8, 128>}, {transform_indices = @transform_4, window_bounds = array<i64: 1, 8, 128>}]} {
    %c0 = arith.constant 0 : index
    %c0_0 = arith.constant 0 : index
    %0 = vector.load %arg1[%c0, %c0_0] : memref<256x4xbf16, #tpu.memory_space<vmem>>, vector<256x4xbf16>
    %c0_1 = arith.constant 0 : index
    %c0_2 = arith.constant 0 : index
    %1 = vector.load %arg2[%c0_1, %c0_2] : memref<4x128xbf16, #tpu.memory_space<vmem>>, vector<4x128xbf16>
    %cst = arith.constant dense<0.000000e+00> : vector<256x128xf32>
    %2 = tpu.matmul %0, %1, %cst {dimension_numbers = #tpu.dot_dimension_numbers<[1], [0], [0], [1], [0, 0, 1, 1], [], []>} : vector<256x4xbf16>, vector<4x128xbf16>, vector<256x128xf32> -> vector<256x128xf32>
    %3 = arith.truncf %2 : vector<256x128xf32> to vector<256x128xbf16>
    %c0_3 = arith.constant 0 : index
    %c0_4 = arith.constant 0 : index
    %4 = vector.load %arg3[%c0_3, %c0_4] : memref<256x128xbf16, #tpu.memory_space<vmem>>, vector<256x128xbf16>
    tpu.vector_store %arg3[%c0_3, %c0_4], %3 {strides = array<i32>} : memref<256x128xbf16, #tpu.memory_space<vmem>>, vector<256x128xbf16>,
    %cst_5 = arith.constant dense<0.000000e+00> : vector<128xf32>
    %5 = vector.multi_reduction <add>, %2, %cst_5 [0] : vector<256x128xf32> to vector<128xf32>
    %6 = vector.shape_cast %5 : vector<128xf32> to vector<1x128xf32>
    %7 = arith.mulf %2, %2 : vector<256x128xf32>
    %cst_6 = arith.constant dense<0.000000e+00> : vector<128xf32>
    %8 = vector.multi_reduction <add>, %7, %cst_6 [0] : vector<256x128xf32> to vector<128xf32>
    %9 = vector.shape_cast %8 : vector<128xf32> to vector<1x128xf32>
    %10 = vector.shape_cast %6 : vector<1x128xf32> to vector<1x128xf32>
    %11 = vector.broadcast %10 : vector<1x128xf32> to vector<8x128xf32>
    %c0_7 = arith.constant 0 : index
    %c0_8 = arith.constant 0 : index
    %c0_9 = arith.constant 0 : index
    %12 = vector.load %arg4[%c0_7, %c0_8, %c0_9] : memref<1x8x128xf32, #tpu.memory_space<vmem>>, vector<1x8x128xf32>
    %13 = vector.shape_cast %12 : vector<1x8x128xf32> to vector<8x128xf32>
    %14 = vector.shape_cast %11 : vector<8x128xf32> to vector<1x8x128xf32>
    tpu.vector_store %arg4[%c0_7, %c0_8, %c0_9], %14 {strides = array<i32>} : memref<1x8x128xf32, #tpu.memory_space<vmem>>, vector<1x8x128xf32>,
    %15 = vector.shape_cast %9 : vector<1x128xf32> to vector<1x128xf32>
    %16 = vector.broadcast %15 : vector<1x128xf32> to vector<8x128xf32>
    %c0_10 = arith.constant 0 : index
    %c0_11 = arith.constant 0 : index
    %c0_12 = arith.constant 0 : index
    %17 = vector.load %arg5[%c0_10, %c0_11, %c0_12] : memref<1x8x128xf32, #tpu.memory_space<vmem>>, vector<1x8x128xf32>
    %18 = vector.shape_cast %17 : vector<1x8x128xf32> to vector<8x128xf32>
    %19 = vector.shape_cast %16 : vector<8x128xf32> to vector<1x8x128xf32>
    tpu.vector_store %arg5[%c0_10, %c0_11, %c0_12], %19 {strides = array<i32>} : memref<1x8x128xf32, #tpu.memory_space<vmem>>, vector<1x8x128xf32>,
    return
  }
  func.func @transform_0(%arg0: i32) -> (i32, i32) {
    %c0_i32 = arith.constant 0 : i32
    %c0_i32_0 = arith.constant 0 : i32
    return %arg0, %c0_i32 : i32, i32
  }
  func.func @transform_1(%arg0: i32) -> (i32, i32) {
    %c0_i32 = arith.constant 0 : i32
    %c0_i32_0 = arith.constant 0 : i32
    %c0_i32_1 = arith.constant 0 : i32
    return %c0_i32, %c0_i32_0 : i32, i32
  }
  func.func @transform_2(%arg0: i32) -> (i32, i32) {
    %c0_i32 = arith.constant 0 : i32
    %c0_i32_0 = arith.constant 0 : i32
    return %arg0, %c0_i32 : i32, i32
  }
  func.func @transform_3(%arg0: i32) -> (i32, i32, i32) {
    %c0_i32 = arith.constant 0 : i32
    %c0_i32_0 = arith.constant 0 : i32
    %c0_i32_1 = arith.constant 0 : i32
    return %arg0, %c0_i32, %c0_i32_0 : i32, i32, i32
  }
  func.func @transform_4(%arg0: i32) -> (i32, i32, i32) {
    %c0_i32 = arith.constant 0 : i32
    %c0_i32_0 = arith.constant 0 : i32
    %c0_i32_1 = arith.constant 0 : i32
    return %arg0, %c0_i32, %c0_i32_0 : i32, i32, i32
  }
}

module attributes {stable_mosaic.version = 11 : i64} {
  func.func @_bn_act_kernel(%arg0: i32, %arg1: memref<256x128xbf16, #tpu.memory_space<vmem>>, %arg2: memref<1x128xf32, #tpu.memory_space<vmem>>, %arg3: memref<1x128xf32, #tpu.memory_space<vmem>>, %arg4: memref<256x128xbf16, #tpu.memory_space<vmem>>) attributes {dimension_semantics = [#tpu.dimension_semantics<parallel>], iteration_bounds = array<i64: 2>, scalar_prefetch = 0 : i64, scratch_operands = 0 : i64, tpu.core_type = #tpu.core_type<tc>, window_params = [{transform_indices = @transform_0, window_bounds = array<i64: 256, 128>}, {pipeline_mode = #tpu.pipeline_mode<synchronous>, transform_indices = @transform_1, window_bounds = array<i64: 1, 128>}, {pipeline_mode = #tpu.pipeline_mode<synchronous>, transform_indices = @transform_2, window_bounds = array<i64: 1, 128>}, {transform_indices = @transform_3, window_bounds = array<i64: 256, 128>}]} {
    %c0 = arith.constant 0 : index
    %c0_0 = arith.constant 0 : index
    %0 = vector.load %arg1[%c0, %c0_0] : memref<256x128xbf16, #tpu.memory_space<vmem>>, vector<256x128xbf16>
    %1 = arith.extf %0 : vector<256x128xbf16> to vector<256x128xf32>
    %c0_1 = arith.constant 0 : index
    %c0_2 = arith.constant 0 : index
    %2 = vector.load %arg2[%c0_1, %c0_2] : memref<1x128xf32, #tpu.memory_space<vmem>>, vector<1x128xf32>
    %3 = vector.broadcast %2 : vector<1x128xf32> to vector<256x128xf32>
    %4 = arith.mulf %1, %3 : vector<256x128xf32>
    %c0_3 = arith.constant 0 : index
    %c0_4 = arith.constant 0 : index
    %5 = vector.load %arg3[%c0_3, %c0_4] : memref<1x128xf32, #tpu.memory_space<vmem>>, vector<1x128xf32>
    %6 = vector.broadcast %5 : vector<1x128xf32> to vector<256x128xf32>
    %7 = arith.addf %4, %6 : vector<256x128xf32>
    %cst = arith.constant 0.000000e+00 : f32
    %8 = vector.broadcast %cst : f32 to vector<256x128xf32>
    %9 = arith.maximumf %7, %8 : vector<256x128xf32>
    %10 = arith.truncf %9 : vector<256x128xf32> to vector<256x128xbf16>
    %c0_5 = arith.constant 0 : index
    %c0_6 = arith.constant 0 : index
    %11 = vector.load %arg4[%c0_5, %c0_6] : memref<256x128xbf16, #tpu.memory_space<vmem>>, vector<256x128xbf16>
    tpu.vector_store %arg4[%c0_5, %c0_6], %10 {strides = array<i32>} : memref<256x128xbf16, #tpu.memory_space<vmem>>, vector<256x128xbf16>,
    return
  }
  func.func @transform_0(%arg0: i32) -> (i32, i32) {
    %c0_i32 = arith.constant 0 : i32
    %c0_i32_0 = arith.constant 0 : i32
    return %arg0, %c0_i32 : i32, i32
  }
  func.func @transform_1(%arg0: i32) -> (i32, i32) {
    %c0_i32 = arith.constant 0 : i32
    %c0_i32_0 = arith.constant 0 : i32
    %c0_i32_1 = arith.constant 0 : i32
    return %c0_i32, %c0_i32_0 : i32, i32
  }
  func.func @transform_2(%arg0: i32) -> (i32, i32) {
    %c0_i32 = arith.constant 0 : i32
    %c0_i32_0 = arith.constant 0 : i32
    %c0_i32_1 = arith.constant 0 : i32
    return %c0_i32, %c0_i32_0 : i32, i32
  }
  func.func @transform_3(%arg0: i32) -> (i32, i32) {
    %c0_i32 = arith.constant 0 : i32
    %c0_i32_0 = arith.constant 0 : i32
    return %arg0, %c0_i32 : i32, i32
  }
}

module attributes {stable_mosaic.version = 11 : i64} {
  func.func @_se_pool_kernel(%arg0: i32, %arg1: memref<1x8x8x128xbf16, #tpu.memory_space<vmem>>, %arg2: memref<1x128xf32, #tpu.memory_space<vmem>>, %arg3: memref<1x128xf32, #tpu.memory_space<vmem>>, %arg4: memref<1x8x128xf32, #tpu.memory_space<vmem>>) attributes {dimension_semantics = [#tpu.dimension_semantics<parallel>], iteration_bounds = array<i64: 2>, scalar_prefetch = 0 : i64, scratch_operands = 0 : i64, tpu.core_type = #tpu.core_type<tc>, window_params = [{transform_indices = @transform_0, window_bounds = array<i64: 1, 8, 8, 128>}, {pipeline_mode = #tpu.pipeline_mode<synchronous>, transform_indices = @transform_1, window_bounds = array<i64: 1, 128>}, {pipeline_mode = #tpu.pipeline_mode<synchronous>, transform_indices = @transform_2, window_bounds = array<i64: 1, 128>}, {transform_indices = @transform_3, window_bounds = array<i64: 1, 8, 128>}]} {
    %c0 = arith.constant 0 : index
    %c0_0 = arith.constant 0 : index
    %0 = vector.load %arg2[%c0, %c0_0] : memref<1x128xf32, #tpu.memory_space<vmem>>, vector<1x128xf32>
    %1 = vector.shape_cast %0 : vector<1x128xf32> to vector<128xf32>
    %2 = vector.shape_cast %1 : vector<128xf32> to vector<1x1x128xf32>
    %c0_1 = arith.constant 0 : index
    %c0_2 = arith.constant 0 : index
    %3 = vector.load %arg3[%c0_1, %c0_2] : memref<1x128xf32, #tpu.memory_space<vmem>>, vector<1x128xf32>
    %4 = vector.shape_cast %3 : vector<1x128xf32> to vector<128xf32>
    %5 = vector.shape_cast %4 : vector<128xf32> to vector<1x1x128xf32>
    %c0_3 = arith.constant 0 : index
    %c0_4 = arith.constant 0 : index
    %c0_5 = arith.constant 0 : index
    %c0_6 = arith.constant 0 : index
    %6 = vector.load %arg1[%c0_3, %c0_4, %c0_5, %c0_6] : memref<1x8x8x128xbf16, #tpu.memory_space<vmem>>, vector<1x8x8x128xbf16>
    %7 = vector.shape_cast %6 : vector<1x8x8x128xbf16> to vector<8x8x128xbf16>
    %8 = arith.extf %7 : vector<8x8x128xbf16> to vector<8x8x128xf32>
    %9 = vector.broadcast %2 : vector<1x1x128xf32> to vector<8x8x128xf32>
    %10 = arith.mulf %8, %9 : vector<8x8x128xf32>
    %11 = vector.broadcast %5 : vector<1x1x128xf32> to vector<8x8x128xf32>
    %12 = arith.addf %10, %11 : vector<8x8x128xf32>
    %cst = arith.constant 0.000000e+00 : f32
    %13 = vector.broadcast %cst : f32 to vector<8x8x128xf32>
    %14 = arith.maximumf %12, %13 : vector<8x8x128xf32>
    %cst_7 = arith.constant dense<0.000000e+00> : vector<128xf32>
    %15 = vector.multi_reduction <add>, %14, %cst_7 [0, 1] : vector<8x8x128xf32> to vector<128xf32>
    %16 = vector.shape_cast %15 : vector<128xf32> to vector<1x128xf32>
    %17 = vector.shape_cast %16 : vector<1x128xf32> to vector<1x128xf32>
    %18 = vector.broadcast %17 : vector<1x128xf32> to vector<8x128xf32>
    %c0_8 = arith.constant 0 : index
    %c0_9 = arith.constant 0 : index
    %c0_10 = arith.constant 0 : index
    %19 = vector.load %arg4[%c0_8, %c0_9, %c0_10] : memref<1x8x128xf32, #tpu.memory_space<vmem>>, vector<1x8x128xf32>
    %20 = vector.shape_cast %19 : vector<1x8x128xf32> to vector<8x128xf32>
    %21 = vector.shape_cast %18 : vector<8x128xf32> to vector<1x8x128xf32>
    tpu.vector_store %arg4[%c0_8, %c0_9, %c0_10], %21 {strides = array<i32>} : memref<1x8x128xf32, #tpu.memory_space<vmem>>, vector<1x8x128xf32>,
    return
  }
  func.func @transform_0(%arg0: i32) -> (i32, i32, i32, i32) {
    %c0_i32 = arith.constant 0 : i32
    %c0_i32_0 = arith.constant 0 : i32
    %c0_i32_1 = arith.constant 0 : i32
    %c0_i32_2 = arith.constant 0 : i32
    return %arg0, %c0_i32, %c0_i32_0, %c0_i32_1 : i32, i32, i32, i32
  }
  func.func @transform_1(%arg0: i32) -> (i32, i32) {
    %c0_i32 = arith.constant 0 : i32
    %c0_i32_0 = arith.constant 0 : i32
    %c0_i32_1 = arith.constant 0 : i32
    return %c0_i32, %c0_i32_0 : i32, i32
  }
  func.func @transform_2(%arg0: i32) -> (i32, i32) {
    %c0_i32 = arith.constant 0 : i32
    %c0_i32_0 = arith.constant 0 : i32
    %c0_i32_1 = arith.constant 0 : i32
    return %c0_i32, %c0_i32_0 : i32, i32
  }
  func.func @transform_3(%arg0: i32) -> (i32, i32, i32) {
    %c0_i32 = arith.constant 0 : i32
    %c0_i32_0 = arith.constant 0 : i32
    %c0_i32_1 = arith.constant 0 : i32
    return %arg0, %c0_i32, %c0_i32_0 : i32, i32, i32
  }
}

module attributes {stable_mosaic.version = 11 : i64} {
  func.func @_dwconv_stats_kernel(%arg0: i32, %arg1: memref<1x9x9x128xbf16, #tpu.memory_space<vmem>>, %arg2: memref<1x9x9x128xbf16, #tpu.memory_space<vmem>>, %arg3: memref<1x9x9x128xbf16, #tpu.memory_space<vmem>>, %arg4: memref<1x9x9x128xbf16, #tpu.memory_space<vmem>>, %arg5: memref<9x128xf32, #tpu.memory_space<vmem>>, %arg6: memref<1x8x8x128xbf16, #tpu.memory_space<vmem>>, %arg7: memref<1x8x128xf32, #tpu.memory_space<vmem>>, %arg8: memref<1x8x128xf32, #tpu.memory_space<vmem>>) attributes {dimension_semantics = [#tpu.dimension_semantics<parallel>], iteration_bounds = array<i64: 2>, scalar_prefetch = 0 : i64, scratch_operands = 0 : i64, tpu.core_type = #tpu.core_type<tc>, window_params = [{transform_indices = @transform_0, window_bounds = array<i64: 1, 9, 9, 128>}, {transform_indices = @transform_1, window_bounds = array<i64: 1, 9, 9, 128>}, {transform_indices = @transform_2, window_bounds = array<i64: 1, 9, 9, 128>}, {transform_indices = @transform_3, window_bounds = array<i64: 1, 9, 9, 128>}, {pipeline_mode = #tpu.pipeline_mode<synchronous>, transform_indices = @transform_4, window_bounds = array<i64: 9, 128>}, {transform_indices = @transform_5, window_bounds = array<i64: 1, 8, 8, 128>}, {transform_indices = @transform_6, window_bounds = array<i64: 1, 8, 128>}, {transform_indices = @transform_7, window_bounds = array<i64: 1, 8, 128>}]} {
    %cst = arith.constant 0.000000e+00 : f32
    %0 = vector.broadcast %cst : f32 to vector<8x8x128xf32>
    %c0 = arith.constant 0 : index
    %c0_0 = arith.constant 0 : index
    %c0_1 = arith.constant 0 : index
    %c0_2 = arith.constant 0 : index
    %1 = vector.load %arg1[%c0, %c0_0, %c0_1, %c0_2] : memref<1x9x9x128xbf16, #tpu.memory_space<vmem>>, vector<1x8x8x128xbf16>
    %2 = vector.shape_cast %1 : vector<1x8x8x128xbf16> to vector<8x8x128xbf16>
    %3 = arith.extf %2 : vector<8x8x128xbf16> to vector<8x8x128xf32>
    %c0_3 = arith.constant 0 : index
    %c0_4 = arith.constant 0 : index
    %4 = vector.load %arg5[%c0_3, %c0_4] : memref<9x128xf32, #tpu.memory_space<vmem>>, vector<1x128xf32>
    %5 = vector.shape_cast %4 : vector<1x128xf32> to vector<128xf32>
    %6 = vector.shape_cast %5 : vector<128xf32> to vector<1x1x128xf32>
    %7 = vector.broadcast %6 : vector<1x1x128xf32> to vector<8x8x128xf32>
    %8 = arith.mulf %3, %7 : vector<8x8x128xf32>
    %9 = arith.addf %0, %8 : vector<8x8x128xf32>
    %c0_5 = arith.constant 0 : index
    %c0_6 = arith.constant 0 : index
    %c0_7 = arith.constant 0 : index
    %c0_8 = arith.constant 0 : index
    %10 = vector.load %arg2[%c0_5, %c0_6, %c0_7, %c0_8] : memref<1x9x9x128xbf16, #tpu.memory_space<vmem>>, vector<1x8x8x128xbf16>
    %11 = vector.shape_cast %10 : vector<1x8x8x128xbf16> to vector<8x8x128xbf16>
    %12 = arith.extf %11 : vector<8x8x128xbf16> to vector<8x8x128xf32>
    %c1 = arith.constant 1 : index
    %c0_9 = arith.constant 0 : index
    %13 = vector.load %arg5[%c1, %c0_9] : memref<9x128xf32, #tpu.memory_space<vmem>>, vector<1x128xf32>
    %14 = vector.shape_cast %13 : vector<1x128xf32> to vector<128xf32>
    %15 = vector.shape_cast %14 : vector<128xf32> to vector<1x1x128xf32>
    %16 = vector.broadcast %15 : vector<1x1x128xf32> to vector<8x8x128xf32>
    %17 = arith.mulf %12, %16 : vector<8x8x128xf32>
    %18 = arith.addf %9, %17 : vector<8x8x128xf32>
    %c0_10 = arith.constant 0 : index
    %c0_11 = arith.constant 0 : index
    %c1_12 = arith.constant 1 : index
    %c0_13 = arith.constant 0 : index
    %19 = vector.load %arg1[%c0_10, %c0_11, %c1_12, %c0_13] : memref<1x9x9x128xbf16, #tpu.memory_space<vmem>>, vector<1x8x8x128xbf16>
    %20 = vector.shape_cast %19 : vector<1x8x8x128xbf16> to vector<8x8x128xbf16>
    %21 = arith.extf %20 : vector<8x8x128xbf16> to vector<8x8x128xf32>
    %c2 = arith.constant 2 : index
    %c0_14 = arith.constant 0 : index
    %22 = vector.load %arg5[%c2, %c0_14] : memref<9x128xf32, #tpu.memory_space<vmem>>, vector<1x128xf32>
    %23 = vector.shape_cast %22 : vector<1x128xf32> to vector<128xf32>
    %24 = vector.shape_cast %23 : vector<128xf32> to vector<1x1x128xf32>
    %25 = vector.broadcast %24 : vector<1x1x128xf32> to vector<8x8x128xf32>
    %26 = arith.mulf %21, %25 : vector<8x8x128xf32>
    %27 = arith.addf %18, %26 : vector<8x8x128xf32>
    %c0_15 = arith.constant 0 : index
    %c0_16 = arith.constant 0 : index
    %c0_17 = arith.constant 0 : index
    %c0_18 = arith.constant 0 : index
    %28 = vector.load %arg3[%c0_15, %c0_16, %c0_17, %c0_18] : memref<1x9x9x128xbf16, #tpu.memory_space<vmem>>, vector<1x8x8x128xbf16>
    %29 = vector.shape_cast %28 : vector<1x8x8x128xbf16> to vector<8x8x128xbf16>
    %30 = arith.extf %29 : vector<8x8x128xbf16> to vector<8x8x128xf32>
    %c3 = arith.constant 3 : index
    %c0_19 = arith.constant 0 : index
    %31 = vector.load %arg5[%c3, %c0_19] : memref<9x128xf32, #tpu.memory_space<vmem>>, vector<1x128xf32>
    %32 = vector.shape_cast %31 : vector<1x128xf32> to vector<128xf32>
    %33 = vector.shape_cast %32 : vector<128xf32> to vector<1x1x128xf32>
    %34 = vector.broadcast %33 : vector<1x1x128xf32> to vector<8x8x128xf32>
    %35 = arith.mulf %30, %34 : vector<8x8x128xf32>
    %36 = arith.addf %27, %35 : vector<8x8x128xf32>
    %c0_20 = arith.constant 0 : index
    %c0_21 = arith.constant 0 : index
    %c0_22 = arith.constant 0 : index
    %c0_23 = arith.constant 0 : index
    %37 = vector.load %arg4[%c0_20, %c0_21, %c0_22, %c0_23] : memref<1x9x9x128xbf16, #tpu.memory_space<vmem>>, vector<1x8x8x128xbf16>
    %38 = vector.shape_cast %37 : vector<1x8x8x128xbf16> to vector<8x8x128xbf16>
    %39 = arith.extf %38 : vector<8x8x128xbf16> to vector<8x8x128xf32>
    %c4 = arith.constant 4 : index
    %c0_24 = arith.constant 0 : index
    %40 = vector.load %arg5[%c4, %c0_24] : memref<9x128xf32, #tpu.memory_space<vmem>>, vector<1x128xf32>
    %41 = vector.shape_cast %40 : vector<1x128xf32> to vector<128xf32>
    %42 = vector.shape_cast %41 : vector<128xf32> to vector<1x1x128xf32>
    %43 = vector.broadcast %42 : vector<1x1x128xf32> to vector<8x8x128xf32>
    %44 = arith.mulf %39, %43 : vector<8x8x128xf32>
    %45 = arith.addf %36, %44 : vector<8x8x128xf32>
    %c0_25 = arith.constant 0 : index
    %c0_26 = arith.constant 0 : index
    %c1_27 = arith.constant 1 : index
    %c0_28 = arith.constant 0 : index
    %46 = vector.load %arg3[%c0_25, %c0_26, %c1_27, %c0_28] : memref<1x9x9x128xbf16, #tpu.memory_space<vmem>>, vector<1x8x8x128xbf16>
    %47 = vector.shape_cast %46 : vector<1x8x8x128xbf16> to vector<8x8x128xbf16>
    %48 = arith.extf %47 : vector<8x8x128xbf16> to vector<8x8x128xf32>
    %c5 = arith.constant 5 : index
    %c0_29 = arith.constant 0 : index
    %49 = vector.load %arg5[%c5, %c0_29] : memref<9x128xf32, #tpu.memory_space<vmem>>, vector<1x128xf32>
    %50 = vector.shape_cast %49 : vector<1x128xf32> to vector<128xf32>
    %51 = vector.shape_cast %50 : vector<128xf32> to vector<1x1x128xf32>
    %52 = vector.broadcast %51 : vector<1x1x128xf32> to vector<8x8x128xf32>
    %53 = arith.mulf %48, %52 : vector<8x8x128xf32>
    %54 = arith.addf %45, %53 : vector<8x8x128xf32>
    %c0_30 = arith.constant 0 : index
    %c1_31 = arith.constant 1 : index
    %c0_32 = arith.constant 0 : index
    %c0_33 = arith.constant 0 : index
    %55 = vector.load %arg1[%c0_30, %c1_31, %c0_32, %c0_33] : memref<1x9x9x128xbf16, #tpu.memory_space<vmem>>, vector<1x8x8x128xbf16>
    %56 = vector.shape_cast %55 : vector<1x8x8x128xbf16> to vector<8x8x128xbf16>
    %57 = arith.extf %56 : vector<8x8x128xbf16> to vector<8x8x128xf32>
    %c6 = arith.constant 6 : index
    %c0_34 = arith.constant 0 : index
    %58 = vector.load %arg5[%c6, %c0_34] : memref<9x128xf32, #tpu.memory_space<vmem>>, vector<1x128xf32>
    %59 = vector.shape_cast %58 : vector<1x128xf32> to vector<128xf32>
    %60 = vector.shape_cast %59 : vector<128xf32> to vector<1x1x128xf32>
    %61 = vector.broadcast %60 : vector<1x1x128xf32> to vector<8x8x128xf32>
    %62 = arith.mulf %57, %61 : vector<8x8x128xf32>
    %63 = arith.addf %54, %62 : vector<8x8x128xf32>
    %c0_35 = arith.constant 0 : index
    %c1_36 = arith.constant 1 : index
    %c0_37 = arith.constant 0 : index
    %c0_38 = arith.constant 0 : index
    %64 = vector.load %arg2[%c0_35, %c1_36, %c0_37, %c0_38] : memref<1x9x9x128xbf16, #tpu.memory_space<vmem>>, vector<1x8x8x128xbf16>
    %65 = vector.shape_cast %64 : vector<1x8x8x128xbf16> to vector<8x8x128xbf16>
    %66 = arith.extf %65 : vector<8x8x128xbf16> to vector<8x8x128xf32>
    %c7 = arith.constant 7 : index
    %c0_39 = arith.constant 0 : index
    %67 = vector.load %arg5[%c7, %c0_39] : memref<9x128xf32, #tpu.memory_space<vmem>>, vector<1x128xf32>
    %68 = vector.shape_cast %67 : vector<1x128xf32> to vector<128xf32>
    %69 = vector.shape_cast %68 : vector<128xf32> to vector<1x1x128xf32>
    %70 = vector.broadcast %69 : vector<1x1x128xf32> to vector<8x8x128xf32>
    %71 = arith.mulf %66, %70 : vector<8x8x128xf32>
    %72 = arith.addf %63, %71 : vector<8x8x128xf32>
    %c0_40 = arith.constant 0 : index
    %c1_41 = arith.constant 1 : index
    %c1_42 = arith.constant 1 : index
    %c0_43 = arith.constant 0 : index
    %73 = vector.load %arg1[%c0_40, %c1_41, %c1_42, %c0_43] : memref<1x9x9x128xbf16, #tpu.memory_space<vmem>>, vector<1x8x8x128xbf16>
    %74 = vector.shape_cast %73 : vector<1x8x8x128xbf16> to vector<8x8x128xbf16>
    %75 = arith.extf %74 : vector<8x8x128xbf16> to vector<8x8x128xf32>
    %c8 = arith.constant 8 : index
    %c0_44 = arith.constant 0 : index
    %76 = vector.load %arg5[%c8, %c0_44] : memref<9x128xf32, #tpu.memory_space<vmem>>, vector<1x128xf32>
    %77 = vector.shape_cast %76 : vector<1x128xf32> to vector<128xf32>
    %78 = vector.shape_cast %77 : vector<128xf32> to vector<1x1x128xf32>
    %79 = vector.broadcast %78 : vector<1x1x128xf32> to vector<8x8x128xf32>
    %80 = arith.mulf %75, %79 : vector<8x8x128xf32>
    %81 = arith.addf %72, %80 : vector<8x8x128xf32>
    %82 = arith.truncf %81 : vector<8x8x128xf32> to vector<8x8x128xbf16>
    %c0_45 = arith.constant 0 : index
    %c0_46 = arith.constant 0 : index
    %c0_47 = arith.constant 0 : index
    %c0_48 = arith.constant 0 : index
    %83 = vector.load %arg6[%c0_45, %c0_46, %c0_47, %c0_48] : memref<1x8x8x128xbf16, #tpu.memory_space<vmem>>, vector<1x8x8x128xbf16>
    %84 = vector.shape_cast %83 : vector<1x8x8x128xbf16> to vector<8x8x128xbf16>
    %85 = vector.shape_cast %82 : vector<8x8x128xbf16> to vector<1x8x8x128xbf16>
    tpu.vector_store %arg6[%c0_45, %c0_46, %c0_47, %c0_48], %85 {strides = array<i32>} : memref<1x8x8x128xbf16, #tpu.memory_space<vmem>>, vector<1x8x8x128xbf16>,
    %cst_49 = arith.constant dense<0.000000e+00> : vector<128xf32>
    %86 = vector.multi_reduction <add>, %81, %cst_49 [0, 1] : vector<8x8x128xf32> to vector<128xf32>
    %87 = vector.shape_cast %86 : vector<128xf32> to vector<1x128xf32>
    %88 = arith.mulf %81, %81 : vector<8x8x128xf32>
    %cst_50 = arith.constant dense<0.000000e+00> : vector<128xf32>
    %89 = vector.multi_reduction <add>, %88, %cst_50 [0, 1] : vector<8x8x128xf32> to vector<128xf32>
    %90 = vector.shape_cast %89 : vector<128xf32> to vector<1x128xf32>
    %91 = vector.shape_cast %87 : vector<1x128xf32> to vector<1x128xf32>
    %92 = vector.broadcast %91 : vector<1x128xf32> to vector<8x128xf32>
    %c0_51 = arith.constant 0 : index
    %c0_52 = arith.constant 0 : index
    %c0_53 = arith.constant 0 : index
    %93 = vector.load %arg7[%c0_51, %c0_52, %c0_53] : memref<1x8x128xf32, #tpu.memory_space<vmem>>, vector<1x8x128xf32>
    %94 = vector.shape_cast %93 : vector<1x8x128xf32> to vector<8x128xf32>
    %95 = vector.shape_cast %92 : vector<8x128xf32> to vector<1x8x128xf32>
    tpu.vector_store %arg7[%c0_51, %c0_52, %c0_53], %95 {strides = array<i32>} : memref<1x8x128xf32, #tpu.memory_space<vmem>>, vector<1x8x128xf32>,
    %96 = vector.shape_cast %90 : vector<1x128xf32> to vector<1x128xf32>
    %97 = vector.broadcast %96 : vector<1x128xf32> to vector<8x128xf32>
    %c0_54 = arith.constant 0 : index
    %c0_55 = arith.constant 0 : index
    %c0_56 = arith.constant 0 : index
    %98 = vector.load %arg8[%c0_54, %c0_55, %c0_56] : memref<1x8x128xf32, #tpu.memory_space<vmem>>, vector<1x8x128xf32>
    %99 = vector.shape_cast %98 : vector<1x8x128xf32> to vector<8x128xf32>
    %100 = vector.shape_cast %97 : vector<8x128xf32> to vector<1x8x128xf32>
    tpu.vector_store %arg8[%c0_54, %c0_55, %c0_56], %100 {strides = array<i32>} : memref<1x8x128xf32, #tpu.memory_space<vmem>>, vector<1x8x128xf32>,
    return
  }
  func.func @transform_0(%arg0: i32) -> (i32, i32, i32, i32) {
    %c0_i32 = arith.constant 0 : i32
    %c0_i32_0 = arith.constant 0 : i32
    %c0_i32_1 = arith.constant 0 : i32
    %c0_i32_2 = arith.constant 0 : i32
    return %arg0, %c0_i32, %c0_i32_0, %c0_i32_1 : i32, i32, i32, i32
  }
  func.func @transform_1(%arg0: i32) -> (i32, i32, i32, i32) {
    %c0_i32 = arith.constant 0 : i32
    %c0_i32_0 = arith.constant 0 : i32
    %c0_i32_1 = arith.constant 0 : i32
    %c0_i32_2 = arith.constant 0 : i32
    return %arg0, %c0_i32, %c0_i32_0, %c0_i32_1 : i32, i32, i32, i32
  }
  func.func @transform_2(%arg0: i32) -> (i32, i32, i32, i32) {
    %c0_i32 = arith.constant 0 : i32
    %c0_i32_0 = arith.constant 0 : i32
    %c0_i32_1 = arith.constant 0 : i32
    %c0_i32_2 = arith.constant 0 : i32
    return %arg0, %c0_i32, %c0_i32_0, %c0_i32_1 : i32, i32, i32, i32
  }
  func.func @transform_3(%arg0: i32) -> (i32, i32, i32, i32) {
    %c0_i32 = arith.constant 0 : i32
    %c0_i32_0 = arith.constant 0 : i32
    %c0_i32_1 = arith.constant 0 : i32
    %c0_i32_2 = arith.constant 0 : i32
    return %arg0, %c0_i32, %c0_i32_0, %c0_i32_1 : i32, i32, i32, i32
  }
  func.func @transform_4(%arg0: i32) -> (i32, i32) {
    %c0_i32 = arith.constant 0 : i32
    %c0_i32_0 = arith.constant 0 : i32
    %c0_i32_1 = arith.constant 0 : i32
    return %c0_i32, %c0_i32_0 : i32, i32
  }
  func.func @transform_5(%arg0: i32) -> (i32, i32, i32, i32) {
    %c0_i32 = arith.constant 0 : i32
    %c0_i32_0 = arith.constant 0 : i32
    %c0_i32_1 = arith.constant 0 : i32
    %c0_i32_2 = arith.constant 0 : i32
    return %arg0, %c0_i32, %c0_i32_0, %c0_i32_1 : i32, i32, i32, i32
  }
  func.func @transform_6(%arg0: i32) -> (i32, i32, i32) {
    %c0_i32 = arith.constant 0 : i32
    %c0_i32_0 = arith.constant 0 : i32
    %c0_i32_1 = arith.constant 0 : i32
    return %arg0, %c0_i32, %c0_i32_0 : i32, i32, i32
  }
  func.func @transform_7(%arg0: i32) -> (i32, i32, i32) {
    %c0_i32 = arith.constant 0 : i32
    %c0_i32_0 = arith.constant 0 : i32
    %c0_i32_1 = arith.constant 0 : i32
    return %arg0, %c0_i32, %c0_i32_0 : i32, i32, i32
  }
}

module attributes {stable_mosaic.version = 11 : i64} {
  func.func @_gated_matmul_stats_kernel(%arg0: i32, %arg1: i32, %arg2: memref<1x64x128xbf16, #tpu.memory_space<vmem>>, %arg3: memref<1x128xf32, #tpu.memory_space<vmem>>, %arg4: memref<1x128xf32, #tpu.memory_space<vmem>>, %arg5: memref<1x1x128xf32, #tpu.memory_space<vmem>>, %arg6: memref<128x128xbf16, #tpu.memory_space<vmem>>, %arg7: memref<1x64x128xbf16, #tpu.memory_space<vmem>>, %arg8: memref<1x1x8x128xf32, #tpu.memory_space<vmem>>, %arg9: memref<1x1x8x128xf32, #tpu.memory_space<vmem>>) attributes {dimension_semantics = [#tpu.dimension_semantics<parallel>, #tpu.dimension_semantics<parallel>], iteration_bounds = array<i64: 2, 1>, scalar_prefetch = 0 : i64, scratch_operands = 0 : i64, tpu.core_type = #tpu.core_type<tc>, window_params = [{transform_indices = @transform_0, window_bounds = array<i64: 1, 64, 128>}, {pipeline_mode = #tpu.pipeline_mode<synchronous>, transform_indices = @transform_1, window_bounds = array<i64: 1, 128>}, {pipeline_mode = #tpu.pipeline_mode<synchronous>, transform_indices = @transform_2, window_bounds = array<i64: 1, 128>}, {transform_indices = @transform_3, window_bounds = array<i64: 1, 1, 128>}, {pipeline_mode = #tpu.pipeline_mode<synchronous>, transform_indices = @transform_4, window_bounds = array<i64: 128, 128>}, {transform_indices = @transform_5, window_bounds = array<i64: 1, 64, 128>}, {transform_indices = @transform_6, window_bounds = array<i64: 1, 1, 8, 128>}, {transform_indices = @transform_7, window_bounds = array<i64: 1, 1, 8, 128>}]} {
    %c0 = arith.constant 0 : index
    %c0_0 = arith.constant 0 : index
    %c0_1 = arith.constant 0 : index
    %0 = vector.load %arg2[%c0, %c0_0, %c0_1] : memref<1x64x128xbf16, #tpu.memory_space<vmem>>, vector<1x64x128xbf16>
    %1 = vector.shape_cast %0 : vector<1x64x128xbf16> to vector<64x128xbf16>
    %2 = arith.extf %1 : vector<64x128xbf16> to vector<64x128xf32>
    %c0_2 = arith.constant 0 : index
    %c0_3 = arith.constant 0 : index
    %3 = vector.load %arg3[%c0_2, %c0_3] : memref<1x128xf32, #tpu.memory_space<vmem>>, vector<1x128xf32>
    %4 = vector.broadcast %3 : vector<1x128xf32> to vector<64x128xf32>
    %5 = arith.mulf %2, %4 : vector<64x128xf32>
    %c0_4 = arith.constant 0 : index
    %c0_5 = arith.constant 0 : index
    %6 = vector.load %arg4[%c0_4, %c0_5] : memref<1x128xf32, #tpu.memory_space<vmem>>, vector<1x128xf32>
    %7 = vector.broadcast %6 : vector<1x128xf32> to vector<64x128xf32>
    %8 = arith.addf %5, %7 : vector<64x128xf32>
    %cst = arith.constant 0.000000e+00 : f32
    %9 = vector.broadcast %cst : f32 to vector<64x128xf32>
    %10 = arith.maximumf %8, %9 : vector<64x128xf32>
    %c0_6 = arith.constant 0 : index
    %c0_7 = arith.constant 0 : index
    %c0_8 = arith.constant 0 : index
    %11 = vector.load %arg5[%c0_6, %c0_7, %c0_8] : memref<1x1x128xf32, #tpu.memory_space<vmem>>, vector<1x1x128xf32>
    %12 = vector.shape_cast %11 : vector<1x1x128xf32> to vector<1x128xf32>
    %13 = vector.broadcast %12 : vector<1x128xf32> to vector<64x128xf32>
    %14 = arith.mulf %10, %13 : vector<64x128xf32>
    %15 = arith.truncf %14 : vector<64x128xf32> to vector<64x128xbf16>
    %c0_9 = arith.constant 0 : index
    %c0_10 = arith.constant 0 : index
    %16 = vector.load %arg6[%c0_9, %c0_10] : memref<128x128xbf16, #tpu.memory_space<vmem>>, vector<128x128xbf16>
    %cst_11 = arith.constant dense<0.000000e+00> : vector<64x128xf32>
    %17 = tpu.matmul %15, %16, %cst_11 {dimension_numbers = #tpu.dot_dimension_numbers<[1], [0], [0], [1], [0, 0, 1, 1], [], []>} : vector<64x128xbf16>, vector<128x128xbf16>, vector<64x128xf32> -> vector<64x128xf32>
    %18 = arith.truncf %17 : vector<64x128xf32> to vector<64x128xbf16>
    %c0_12 = arith.constant 0 : index
    %c0_13 = arith.constant 0 : index
    %c0_14 = arith.constant 0 : index
    %19 = vector.load %arg7[%c0_12, %c0_13, %c0_14] : memref<1x64x128xbf16, #tpu.memory_space<vmem>>, vector<1x64x128xbf16>
    %20 = vector.shape_cast %19 : vector<1x64x128xbf16> to vector<64x128xbf16>
    %21 = vector.shape_cast %18 : vector<64x128xbf16> to vector<1x64x128xbf16>
    tpu.vector_store %arg7[%c0_12, %c0_13, %c0_14], %21 {strides = array<i32>} : memref<1x64x128xbf16, #tpu.memory_space<vmem>>, vector<1x64x128xbf16>,
    %cst_15 = arith.constant dense<0.000000e+00> : vector<128xf32>
    %22 = vector.multi_reduction <add>, %17, %cst_15 [0] : vector<64x128xf32> to vector<128xf32>
    %23 = vector.shape_cast %22 : vector<128xf32> to vector<1x128xf32>
    %24 = arith.mulf %17, %17 : vector<64x128xf32>
    %cst_16 = arith.constant dense<0.000000e+00> : vector<128xf32>
    %25 = vector.multi_reduction <add>, %24, %cst_16 [0] : vector<64x128xf32> to vector<128xf32>
    %26 = vector.shape_cast %25 : vector<128xf32> to vector<1x128xf32>
    %27 = vector.shape_cast %23 : vector<1x128xf32> to vector<1x128xf32>
    %28 = vector.broadcast %27 : vector<1x128xf32> to vector<8x128xf32>
    %c0_17 = arith.constant 0 : index
    %c0_18 = arith.constant 0 : index
    %c0_19 = arith.constant 0 : index
    %c0_20 = arith.constant 0 : index
    %29 = vector.load %arg8[%c0_17, %c0_18, %c0_19, %c0_20] : memref<1x1x8x128xf32, #tpu.memory_space<vmem>>, vector<1x1x8x128xf32>
    %30 = vector.shape_cast %29 : vector<1x1x8x128xf32> to vector<8x128xf32>
    %31 = vector.shape_cast %28 : vector<8x128xf32> to vector<1x1x8x128xf32>
    tpu.vector_store %arg8[%c0_17, %c0_18, %c0_19, %c0_20], %31 {strides = array<i32>} : memref<1x1x8x128xf32, #tpu.memory_space<vmem>>, vector<1x1x8x128xf32>,
    %32 = vector.shape_cast %26 : vector<1x128xf32> to vector<1x128xf32>
    %33 = vector.broadcast %32 : vector<1x128xf32> to vector<8x128xf32>
    %c0_21 = arith.constant 0 : index
    %c0_22 = arith.constant 0 : index
    %c0_23 = arith.constant 0 : index
    %c0_24 = arith.constant 0 : index
    %34 = vector.load %arg9[%c0_21, %c0_22, %c0_23, %c0_24] : memref<1x1x8x128xf32, #tpu.memory_space<vmem>>, vector<1x1x8x128xf32>
    %35 = vector.shape_cast %34 : vector<1x1x8x128xf32> to vector<8x128xf32>
    %36 = vector.shape_cast %33 : vector<8x128xf32> to vector<1x1x8x128xf32>
    tpu.vector_store %arg9[%c0_21, %c0_22, %c0_23, %c0_24], %36 {strides = array<i32>} : memref<1x1x8x128xf32, #tpu.memory_space<vmem>>, vector<1x1x8x128xf32>,
    return
  }
  func.func @transform_0(%arg0: i32, %arg1: i32) -> (i32, i32, i32) {
    %c0_i32 = arith.constant 0 : i32
    %c0_i32_0 = arith.constant 0 : i32
    return %arg0, %arg1, %c0_i32 : i32, i32, i32
  }
  func.func @transform_1(%arg0: i32, %arg1: i32) -> (i32, i32) {
    %c0_i32 = arith.constant 0 : i32
    %c0_i32_0 = arith.constant 0 : i32
    %c0_i32_1 = arith.constant 0 : i32
    return %c0_i32, %c0_i32_0 : i32, i32
  }
  func.func @transform_2(%arg0: i32, %arg1: i32) -> (i32, i32) {
    %c0_i32 = arith.constant 0 : i32
    %c0_i32_0 = arith.constant 0 : i32
    %c0_i32_1 = arith.constant 0 : i32
    return %c0_i32, %c0_i32_0 : i32, i32
  }
  func.func @transform_3(%arg0: i32, %arg1: i32) -> (i32, i32, i32) {
    %c0_i32 = arith.constant 0 : i32
    %c0_i32_0 = arith.constant 0 : i32
    %c0_i32_1 = arith.constant 0 : i32
    return %arg0, %c0_i32, %c0_i32_0 : i32, i32, i32
  }
  func.func @transform_4(%arg0: i32, %arg1: i32) -> (i32, i32) {
    %c0_i32 = arith.constant 0 : i32
    %c0_i32_0 = arith.constant 0 : i32
    %c0_i32_1 = arith.constant 0 : i32
    return %c0_i32, %c0_i32_0 : i32, i32
  }
  func.func @transform_5(%arg0: i32, %arg1: i32) -> (i32, i32, i32) {
    %c0_i32 = arith.constant 0 : i32
    %c0_i32_0 = arith.constant 0 : i32
    return %arg0, %arg1, %c0_i32 : i32, i32, i32
  }
  func.func @transform_6(%arg0: i32, %arg1: i32) -> (i32, i32, i32, i32) {
    %c0_i32 = arith.constant 0 : i32
    %c0_i32_0 = arith.constant 0 : i32
    %c0_i32_1 = arith.constant 0 : i32
    return %arg0, %arg1, %c0_i32, %c0_i32_0 : i32, i32, i32, i32
  }
  func.func @transform_7(%arg0: i32, %arg1: i32) -> (i32, i32, i32, i32) {
    %c0_i32 = arith.constant 0 : i32
    %c0_i32_0 = arith.constant 0 : i32
    %c0_i32_1 = arith.constant 0 : i32
    return %arg0, %arg1, %c0_i32, %c0_i32_0 : i32, i32, i32, i32
  }
}

module attributes {stable_mosaic.version = 11 : i64} {
  func.func @_bn_act_kernel(%arg0: i32, %arg1: memref<128x128xbf16, #tpu.memory_space<vmem>>, %arg2: memref<1x128xf32, #tpu.memory_space<vmem>>, %arg3: memref<1x128xf32, #tpu.memory_space<vmem>>, %arg4: memref<128x128xf32, #tpu.memory_space<vmem>>) attributes {dimension_semantics = [#tpu.dimension_semantics<parallel>], iteration_bounds = array<i64: 1>, scalar_prefetch = 0 : i64, scratch_operands = 0 : i64, tpu.core_type = #tpu.core_type<tc>, window_params = [{transform_indices = @transform_0, window_bounds = array<i64: 128, 128>}, {pipeline_mode = #tpu.pipeline_mode<synchronous>, transform_indices = @transform_1, window_bounds = array<i64: 1, 128>}, {pipeline_mode = #tpu.pipeline_mode<synchronous>, transform_indices = @transform_2, window_bounds = array<i64: 1, 128>}, {transform_indices = @transform_3, window_bounds = array<i64: 128, 128>}]} {
    %c0 = arith.constant 0 : index
    %c0_0 = arith.constant 0 : index
    %0 = vector.load %arg1[%c0, %c0_0] : memref<128x128xbf16, #tpu.memory_space<vmem>>, vector<128x128xbf16>
    %1 = arith.extf %0 : vector<128x128xbf16> to vector<128x128xf32>
    %c0_1 = arith.constant 0 : index
    %c0_2 = arith.constant 0 : index
    %2 = vector.load %arg2[%c0_1, %c0_2] : memref<1x128xf32, #tpu.memory_space<vmem>>, vector<1x128xf32>
    %3 = vector.broadcast %2 : vector<1x128xf32> to vector<128x128xf32>
    %4 = arith.mulf %1, %3 : vector<128x128xf32>
    %c0_3 = arith.constant 0 : index
    %c0_4 = arith.constant 0 : index
    %5 = vector.load %arg3[%c0_3, %c0_4] : memref<1x128xf32, #tpu.memory_space<vmem>>, vector<1x128xf32>
    %6 = vector.broadcast %5 : vector<1x128xf32> to vector<128x128xf32>
    %7 = arith.addf %4, %6 : vector<128x128xf32>
    %c0_5 = arith.constant 0 : index
    %c0_6 = arith.constant 0 : index
    %8 = vector.load %arg4[%c0_5, %c0_6] : memref<128x128xf32, #tpu.memory_space<vmem>>, vector<128x128xf32>
    tpu.vector_store %arg4[%c0_5, %c0_6], %7 {strides = array<i32>} : memref<128x128xf32, #tpu.memory_space<vmem>>, vector<128x128xf32>,
    return
  }
  func.func @transform_0(%arg0: i32) -> (i32, i32) {
    %c0_i32 = arith.constant 0 : i32
    %c0_i32_0 = arith.constant 0 : i32
    return %arg0, %c0_i32 : i32, i32
  }
  func.func @transform_1(%arg0: i32) -> (i32, i32) {
    %c0_i32 = arith.constant 0 : i32
    %c0_i32_0 = arith.constant 0 : i32
    %c0_i32_1 = arith.constant 0 : i32
    return %c0_i32, %c0_i32_0 : i32, i32
  }
  func.func @transform_2(%arg0: i32) -> (i32, i32) {
    %c0_i32 = arith.constant 0 : i32
    %c0_i32_0 = arith.constant 0 : i32
    %c0_i32_1 = arith.constant 0 : i32
    return %c0_i32, %c0_i32_0 : i32, i32
  }
  func.func @transform_3(%arg0: i32) -> (i32, i32) {
    %c0_i32 = arith.constant 0 : i32
    %c0_i32_0 = arith.constant 0 : i32
    return %arg0, %c0_i32 : i32, i32
  }
}

</mosaic_0001>

<llo_original>
// kernel: patch_merging.7
$region0: #{patch_merging.7}
  #allocation0 [shape = 'u32[]', space=smem, size = 0x4, offset = 0x4, fixed_abs, tag = 'smem constant byte address 0x4 - core index']
  #allocation1 [shape = 'u32[144,128]{1,0:T(1,128)}', space=vmem, size = 0x12000, scoped, tag = 'internal scratch']
  %s0 = inlined_call_operand.vmem [shape: bf16[512,128], index: 0, kind: input, shape index: {}]
  %s1 = inlined_call_operand.vmem [shape: f32[1,128], index: 1, kind: input, shape index: {}]
  %s2 = inlined_call_operand.vmem [shape: f32[1,128], index: 2, kind: input, shape index: {}]
  %s3 = inlined_call_operand.vmem [shape: bf16[512,128], index: 3, kind: output, shape index: {}]
  %s4 = sld [smem:[#allocation0]]
  $region45: #{patch_merging.7} parent=0
    _
  %s6 = ssub.s32 1, %s4
  %s7 = scalar_select 0, %s6, %s4
  loop: start=0, step=1, limit=4
  $region2: #{patch_merging.7} parent=0 // loop_pre_header
    _
  $region3: #{patch_merging.7} parent=0 // loop_header
    %s9 = sphi 0, %s13
    %p10 = scmp.ge.s32.totalorder %s9, 4
    %s19 = sphi 0, %s21
    %s22 = sphi 0, %s19
    %s23 = sphi 0, %s22
    %s39 = sphi 0, %s23
    %s43 = sphi 0, %s43
    %s45 = sphi 0, %s43
    %s46 = sphi 0, %s45
    %s60 = sphi 0, %s46
    %s64 = sphi 0, %s64
    %s66 = sphi 0, %s64
    %s67 = sphi 0, %s66
    %s81 = sphi 0, %s67
    %s87 = sphi 0, %s89
    %s90 = sphi 0, %s87
    %s91 = sphi 0, %s90
    %s107 = sphi 0, %s91
  $region4: #{patch_merging.7} parent=0 // loop_header_branch
    %12 = sbr.rel (%p10) target = $region8
  $region5: #{patch_merging.7} parent=0 // loop_body
    %s14 = ssub.s32 %s9, 1
    %s15 = ssub.s32 %s9, 2
    %s16 = sadd.s32 %s9, 1
    %s17 = ssub.s32 %s9, %s16
    %p18 = scmp.eq.s32.totalorder %s17, 0
    %s20 = sadd.s32 %s19, 1
    %s21 = scalar_select %p18, %s19, %s20
    %p24 = pneg %p18
    %p25 = scmp.eq.s32.totalorder %s9, 1
    %p26 = por %p24, %p25
    %p27 = scmp.ne.s32.totalorder %s19, %s22
    %p28 = scmp.eq.s32.totalorder %s9, 0
    %p29 = por %p27, %p28
    %p30 = scmp.ne.s32.totalorder %s19, %s22
    %p31 = scmp.eq.s32.totalorder %s14, 1
    %p32 = por %p30, %p31
    %p33 = scmp.ne.s32.totalorder %s22, %s23
    %p34 = scmp.eq.s32.totalorder %s14, 0
    %p35 = por %p33, %p34
    %p36 = scmp.ne.s32.totalorder %s22, %s23
    %p37 = scmp.eq.s32.totalorder %s15, 1
    %p38 = por %p36, %p37
    %p40 = scmp.ne.s32.totalorder %s23, %s39
    %p41 = scmp.eq.s32.totalorder %s15, 0
    %p42 = por %p40, %p41
    %s44 = sadd.s32 %s43, 1
    %p47 = scmp.eq.s32.totalorder %s9, 1
    %p48 = scmp.ne.s32.totalorder %s43, %s45
    %p49 = scmp.eq.s32.totalorder %s9, 0
    %p50 = por %p48, %p49
    %p51 = scmp.ne.s32.totalorder %s43, %s45
    %p52 = scmp.eq.s32.totalorder %s14, 1
    %p53 = por %p51, %p52
    %p54 = scmp.ne.s32.totalorder %s45, %s46
    %p55 = scmp.eq.s32.totalorder %s14, 0
    %p56 = por %p54, %p55
    %p57 = scmp.ne.s32.totalorder %s45, %s46
    %p58 = scmp.eq.s32.totalorder %s15, 1
    %p59 = por %p57, %p58
    %p61 = scmp.ne.s32.totalorder %s46, %s60
    %p62 = scmp.eq.s32.totalorder %s15, 0
    %p63 = por %p61, %p62
    %s65 = sadd.s32 %s64, 1
    %p68 = scmp.eq.s32.totalorder %s9, 1
    %p69 = scmp.ne.s32.totalorder %s64, %s66
    %p70 = scmp.eq.s32.totalorder %s9, 0
    %p71 = por %p69, %p70
    %p72 = scmp.ne.s32.totalorder %s64, %s66
    %p73 = scmp.eq.s32.totalorder %s14, 1
    %p74 = por %p72, %p73
    %p75 = scmp.ne.s32.totalorder %s66, %s67
    %p76 = scmp.eq.s32.totalorder %s14, 0
    %p77 = por %p75, %p76
    %p78 = scmp.ne.s32.totalorder %s66, %s67
    %p79 = scmp.eq.s32.totalorder %s15, 1
    %p80 = por %p78, %p79
    %p82 = scmp.ne.s32.totalorder %s67, %s81
    %p83 = scmp.eq.s32.totalorder %s15, 0
    %p84 = por %p82, %p83
    %s85 = ssub.s32 %s9, %s16
    %p86 = scmp.eq.s32.totalorder %s85, 0
    %s88 = sadd.s32 %s87, 1
    %s89 = scalar_select %p86, %s87, %s88
    %p92 = pneg %p86
    %p93 = scmp.eq.s32.totalorder %s9, 1
    %p94 = por %p92, %p93
    %p95 = scmp.ne.s32.totalorder %s87, %s90
    %p96 = scmp.eq.s32.totalorder %s9, 0
    %p97 = por %p95, %p96
    %p98 = scmp.ne.s32.totalorder %s87, %s90
    %p99 = scmp.eq.s32.totalorder %s14, 1
    %p100 = por %p98, %p99
    %p101 = scmp.ne.s32.totalorder %s90, %s91
    %p102 = scmp.eq.s32.totalorder %s14, 0
    %p103 = por %p101, %p102
    %p104 = scmp.ne.s32.totalorder %s90, %s91
    %p105 = scmp.eq.s32.totalorder %s15, 1
    %p106 = por %p104, %p105
    %p108 = scmp.ne.s32.totalorder %s91, %s107
    %p109 = scmp.eq.s32.totalorder %s15, 0
    %p110 = por %p108, %p109
    %p111 = scmp.le.s32.totalorder 1, %s9
    %p112 = scmp.lt.s32.totalorder %s9, 3
    %p113 = pnand %p111, %p112
    %p114 = pneg %p113
    // Predicated region
    $region9: #{patch_merging.7} parent=5 // pred_check
      _
    $region10: #{patch_merging.7} parent=5 // pred_check_branch
      %116 = sbr.rel (%p113) target = $region12
    $region11: #{patch_merging.7} parent=5 // pred_region
      %s117 = ssub.s32 %s9, 1
      // Predicated region
      $region13: #{patch_merging.7} parent=11 // pred_check
        %p118 = pneg %p56
      $region14: #{patch_merging.7} parent=11 // pred_check_branch
        %120 = sbr.rel (%p118) target = $region16
      $region15: #{patch_merging.7} parent=11 // pred_region
        _
      $region16: #{patch_merging.7} parent=11 // pred_fallthru
        _
      // Predicated region
      $region17: #{patch_merging.7} parent=11 // pred_check
        %p121 = pneg %p77
      $region18: #{patch_merging.7} parent=11 // pred_check_branch
        %123 = sbr.rel (%p121) target = $region20
      $region19: #{patch_merging.7} parent=11 // pred_region
        _
      $region20: #{patch_merging.7} parent=11 // pred_fallthru
        _
    $region12: #{patch_merging.7} parent=5 // pred_fallthru
      _
    %p124 = scmp.lt.s32.totalorder %s9, 2
    // Predicated region
    $region21: #{patch_merging.7} parent=5 // pred_check
      %p125 = pneg %p124
    $region22: #{patch_merging.7} parent=5 // pred_check_branch
      %127 = sbr.rel (%p125) target = $region24
    $region23: #{patch_merging.7} parent=5 // pred_region
      // Predicated region
      $region25: #{patch_merging.7} parent=23 // pred_check
        %p128 = pneg %p29
      $region26: #{patch_merging.7} parent=23 // pred_check_branch
        %130 = sbr.rel (%p128) target = $region28
      $region27: #{patch_merging.7} parent=23 // pred_region
        %s131 = smul.u32 32, %s9
        %p132 = scmp.lt.s32.totalorder %s131, 63
        %s133 = scalar_select %p132, %s131, 63
        %s134 = smul.addr %s133, 4
        %s135 = scalar_lea.vmem %s0, %s134
        %s136 = smul.u32 32, %s9
      $region28: #{patch_merging.7} parent=23 // pred_fallthru
        _
    $region24: #{patch_merging.7} parent=5 // pred_fallthru
      _
    %p137 = scmp.le.s32.totalorder 1, %s9
    %p138 = scmp.lt.s32.totalorder %s9, 3
    %p139 = pnand %p137, %p138
    %p140 = pneg %p139
    // Predicated region
    $region29: #{patch_merging.7} parent=5 // pred_check
      _
    $region30: #{patch_merging.7} parent=5 // pred_check_branch
      %142 = sbr.rel (%p139) target = $region32
    $region31: #{patch_merging.7} parent=5 // pred_region
      %s143 = ssub.s32 %s9, 1
      %s144 = smul.u32 32, %s14
      %p145 = scmp.lt.s32.totalorder %s144, 63
      %s146 = scalar_select %p145, %s144, 63
      %s147 = smul.addr %s146, 4
      %s148 = scalar_lea.vmem %s0, %s147
      %p149 = pneg %p35
      %p150 = pneg %p32
      %p151 = pneg %p56
      %p152 = pneg %p53
      %p153 = pneg %p77
      %p154 = pneg %p74
      %p155 = pneg %p103
      %p156 = pneg %p100
      %s157 = smul.u32 32, %s14
      %p158 = scmp.lt.s32.totalorder %s157, 63
      %s159 = scalar_select %p158, %s157, 63
      %s160 = smul.addr %s159, 4
      %s161 = scalar_lea.vmem %s3, %s160
      %s162 = smul.u32 32, %s14
      %p163 = scmp.lt.s32.totalorder %s162, 63
      %s164 = scalar_select %p163, %s162, 63
      %s165 = smul.addr %s164, 4
      %s166 = scalar_lea.vmem %s0, %s165
      %s167 = smul.u32 32, %s14
      %s168 = smul.u32 32, %s14
      %p169 = scmp.lt.s32.totalorder %s168, 63
      %s170 = scalar_select %p169, %s168, 63
      %s171 = smul.addr %s170, 4
      %s172 = scalar_lea.vmem %s3, %s171
      %s173 = smul.u32 32, %s14
      %v174 = vld [vmem:[%s166] sm:$0xf]
      %v175 = vld [vmem:[%s166 + $0x4] sm:$0xf]
      %v176 = vld [vmem:[%s166 + $0x8] sm:$0xf]
      %v177 = vld [vmem:[%s166 + $0xc] sm:$0xf]
      %v178 = vld [vmem:[%s166 + $0x10] sm:$0xf]
      %v179 = vld [vmem:[%s166 + $0x14] sm:$0xf]
      %v180 = vld [vmem:[%s166 + $0x18] sm:$0xf]
      %v181 = vld [vmem:[%s166 + $0x1c] sm:$0xf]
      %v182 = vld [vmem:[%s166 + $0x20] sm:$0xf]
      %v183 = vld [vmem:[%s166 + $0x24] sm:$0xf]
      %v184 = vld [vmem:[%s166 + $0x28] sm:$0xf]
      %v185 = vld [vmem:[%s166 + $0x2c] sm:$0xf]
      %v186 = vld [vmem:[%s166 + $0x30] sm:$0xf]
      %v187 = vld [vmem:[%s166 + $0x34] sm:$0xf]
      %v188 = vld [vmem:[%s166 + $0x38] sm:$0xf]
      %v189 = vld [vmem:[%s166 + $0x3c] sm:$0xf]
      %v190 = vld [vmem:[%s166 + $0x40] sm:$0xf]
      %v191 = vld [vmem:[%s166 + $0x44] sm:$0xf]
      %v192 = vld [vmem:[%s166 + $0x48] sm:$0xf]
      %v193 = vld [vmem:[%s166 + $0x4c] sm:$0xf]
      %v194 = vld [vmem:[%s166 + $0x50] sm:$0xf]
      %v195 = vld [vmem:[%s166 + $0x54] sm:$0xf]
      %v196 = vld [vmem:[%s166 + $0x58] sm:$0xf]
      %v197 = vld [vmem:[%s166 + $0x5c] sm:$0xf]
      %v198 = vld [vmem:[%s166 + $0x60] sm:$0xf]
      %v199 = vld [vmem:[%s166 + $0x64] sm:$0xf]
      %v200 = vld [vmem:[%s166 + $0x68] sm:$0xf]
      %v201 = vld [vmem:[%s166 + $0x6c] sm:$0xf]
      %v202 = vld [vmem:[%s166 + $0x70] sm:$0xf]
      %v203 = vld [vmem:[%s166 + $0x74] sm:$0xf]
      %v204 = vld [vmem:[%s166 + $0x78] sm:$0xf]
      %v205 = vld [vmem:[%s166 + $0x7c] sm:$0xf]
      %v206 = vunpack.c.l.bf16 %v174
      %v207 = vunpack.c.l.bf16 %v175
      %v208 = vunpack.c.l.bf16 %v176
      %v209 = vunpack.c.l.bf16 %v177
      %v210 = vunpack.c.l.bf16 %v178
      %v211 = vunpack.c.l.bf16 %v179
      %v212 = vunpack.c.l.bf16 %v180
      %v213 = vunpack.c.l.bf16 %v181
      %v214 = vunpack.c.l.bf16 %v182
      %v215 = vunpack.c.l.bf16 %v183
      %v216 = vunpack.c.l.bf16 %v184
      %v217 = vunpack.c.l.bf16 %v185
      %v218 = vunpack.c.l.bf16 %v186
      %v219 = vunpack.c.l.bf16 %v187
      %v220 = vunpack.c.l.bf16 %v188
      %v221 = vunpack.c.l.bf16 %v189
      %v222 = vunpack.c.l.bf16 %v190
      %v223 = vunpack.c.l.bf16 %v191
      %v224 = vunpack.c.l.bf16 %v192
      %v225 = vunpack.c.l.bf16 %v193
      %v226 = vunpack.c.l.bf16 %v194
      %v227 = vunpack.c.l.bf16 %v195
      %v228 = vunpack.c.l.bf16 %v196
      %v229 = vunpack.c.l.bf16 %v197
      %v230 = vunpack.c.l.bf16 %v198
      %v231 = vunpack.c.l.bf16 %v199
      %v232 = vunpack.c.l.bf16 %v200
      %v233 = vunpack.c.l.bf16 %v201
      %v234 = vunpack.c.l.bf16 %v202
      %v235 = vunpack.c.l.bf16 %v203
      %v236 = vunpack.c.l.bf16 %v204
      %v237 = vunpack.c.l.bf16 %v205
      %v238 = vld [vmem:[%s1] sm:$0x1]
      %v240 = vlaneseq
      %v241 = vshrl.u32 %v240, 7
      %v242 = vsub.s32 0, %v241
      %v243 = vrot.slane %v238, %v242
      %v245 = vmul.f32 %v206, %v243
      %v246 = vmul.f32 %v207, %v243
      %v247 = vmul.f32 %v208, %v243
      %v248 = vmul.f32 %v209, %v243
      %v249 = vmul.f32 %v210, %v243
      %v250 = vmul.f32 %v211, %v243
      %v251 = vmul.f32 %v212, %v243
      %v252 = vmul.f32 %v213, %v243
      %v253 = vmul.f32 %v214, %v243
      %v254 = vmul.f32 %v215, %v243
      %v255 = vmul.f32 %v216, %v243
      %v256 = vmul.f32 %v217, %v243
      %v257 = vmul.f32 %v218, %v243
      %v258 = vmul.f32 %v219, %v243
      %v259 = vmul.f32 %v220, %v243
      %v260 = vmul.f32 %v221, %v243
      %v261 = vmul.f32 %v222, %v243
      %v262 = vmul.f32 %v223, %v243
      %v263 = vmul.f32 %v224, %v243
      %v264 = vmul.f32 %v225, %v243
      %v265 = vmul.f32 %v226, %v243
      %v266 = vmul.f32 %v227, %v243
      %v267 = vmul.f32 %v228, %v243
      %v268 = vmul.f32 %v229, %v243
      %v269 = vmul.f32 %v230, %v243
      %v270 = vmul.f32 %v231, %v243
      %v271 = vmul.f32 %v232, %v243
      %v272 = vmul.f32 %v233, %v243
      %v273 = vmul.f32 %v234, %v243
      %v274 = vmul.f32 %v235, %v243
      %v275 = vmul.f32 %v236, %v243
      %v276 = vmul.f32 %v237, %v243
      %v277 = vld [vmem:[%s2] sm:$0x1]
      %v279 = vlaneseq
      %v280 = vshrl.u32 %v279, 7
      %v281 = vsub.s32 0, %v280
      %v282 = vrot.slane %v277, %v281
      %v284 = vadd.f32 %v245, %v282
      %v285 = vadd.f32 %v246, %v282
      %v286 = vadd.f32 %v247, %v282
      %v287 = vadd.f32 %v248, %v282
      %v288 = vadd.f32 %v249, %v282
      %v289 = vadd.f32 %v250, %v282
      %v290 = vadd.f32 %v251, %v282
      %v291 = vadd.f32 %v252, %v282
      %v292 = vadd.f32 %v253, %v282
      %v293 = vadd.f32 %v254, %v282
      %v294 = vadd.f32 %v255, %v282
      %v295 = vadd.f32 %v256, %v282
      %v296 = vadd.f32 %v257, %v282
      %v297 = vadd.f32 %v258, %v282
      %v298 = vadd.f32 %v259, %v282
      %v299 = vadd.f32 %v260, %v282
      %v300 = vadd.f32 %v261, %v282
      %v301 = vadd.f32 %v262, %v282
      %v302 = vadd.f32 %v263, %v282
      %v303 = vadd.f32 %v264, %v282
      %v304 = vadd.f32 %v265, %v282
      %v305 = vadd.f32 %v266, %v282
      %v306 = vadd.f32 %v267, %v282
      %v307 = vadd.f32 %v268, %v282
      %v308 = vadd.f32 %v269, %v282
      %v309 = vadd.f32 %v270, %v282
      %v310 = vadd.f32 %v271, %v282
      %v311 = vadd.f32 %v272, %v282
      %v312 = vadd.f32 %v273, %v282
      %v313 = vadd.f32 %v274, %v282
      %v314 = vadd.f32 %v275, %v282
      %v315 = vadd.f32 %v276, %v282
      %v316 = vmax.f32 %v284, 0.0
      %v317 = vmax.f32 %v285, 0.0
      %v318 = vmax.f32 %v286, 0.0
      %v319 = vmax.f32 %v287, 0.0
      %v320 = vmax.f32 %v288, 0.0
      %v321 = vmax.f32 %v289, 0.0
      %v322 = vmax.f32 %v290, 0.0
      %v323 = vmax.f32 %v291, 0.0
      %v324 = vmax.f32 %v292, 0.0
      %v325 = vmax.f32 %v293, 0.0
      %v326 = vmax.f32 %v294, 0.0
      %v327 = vmax.f32 %v295, 0.0
      %v328 = vmax.f32 %v296, 0.0
      %v329 = vmax.f32 %v297, 0.0
      %v330 = vmax.f32 %v298, 0.0
      %v331 = vmax.f32 %v299, 0.0
      %v332 = vmax.f32 %v300, 0.0
      %v333 = vmax.f32 %v301, 0.0
      %v334 = vmax.f32 %v302, 0.0
      %v335 = vmax.f32 %v303, 0.0
      %v336 = vmax.f32 %v304, 0.0
      %v337 = vmax.f32 %v305, 0.0
      %v338 = vmax.f32 %v306, 0.0
      %v339 = vmax.f32 %v307, 0.0
      %v340 = vmax.f32 %v308, 0.0
      %v341 = vmax.f32 %v309, 0.0
      %v342 = vmax.f32 %v310, 0.0
      %v343 = vmax.f32 %v311, 0.0
      %v344 = vmax.f32 %v312, 0.0
      %v345 = vmax.f32 %v313, 0.0
      %v346 = vmax.f32 %v314, 0.0
      %v347 = vmax.f32 %v315, 0.0
      %v348 = vpack.c.bf16 %v317, %v316
      %v349 = vpack.c.bf16 %v319, %v318
      %v350 = vpack.c.bf16 %v321, %v320
      %v351 = vpack.c.bf16 %v323, %v322
      %v352 = vpack.c.bf16 %v325, %v324
      %v353 = vpack.c.bf16 %v327, %v326
      %v354 = vpack.c.bf16 %v329, %v328
      %v355 = vpack.c.bf16 %v331, %v330
      %v356 = vpack.c.bf16 %v333, %v332
      %v357 = vpack.c.bf16 %v335, %v334
      %v358 = vpack.c.bf16 %v337, %v336
      %v359 = vpack.c.bf16 %v339, %v338
      %v360 = vpack.c.bf16 %v341, %v340
      %v361 = vpack.c.bf16 %v343, %v342
      %v362 = vpack.c.bf16 %v345, %v344
      %v363 = vpack.c.bf16 %v347, %v346
      %v380 = vunpack.c.l.b16 %v348
      %v381 = vunpack.c.h.b16 %v348
      %v382 = vunpack.c.l.b16 %v349
      %v383 = vunpack.c.h.b16 %v349
      %v384 = vunpack.c.l.b16 %v350
      %v385 = vunpack.c.h.b16 %v350
      %v386 = vunpack.c.l.b16 %v351
      %v387 = vunpack.c.h.b16 %v351
      %v388 = vunpack.c.l.b16 %v352
      %v389 = vunpack.c.h.b16 %v352
      %v390 = vunpack.c.l.b16 %v353
      %v391 = vunpack.c.h.b16 %v353
      %v392 = vunpack.c.l.b16 %v354
      %v393 = vunpack.c.h.b16 %v354
      %v394 = vunpack.c.l.b16 %v355
      %v395 = vunpack.c.h.b16 %v355
      %v396 = vunpack.c.l.b16 %v356
      %v397 = vunpack.c.h.b16 %v356
      %v398 = vunpack.c.l.b16 %v357
      %v399 = vunpack.c.h.b16 %v357
      %v400 = vunpack.c.l.b16 %v358
      %v401 = vunpack.c.h.b16 %v358
      %v402 = vunpack.c.l.b16 %v359
      %v403 = vunpack.c.h.b16 %v359
      %v404 = vunpack.c.l.b16 %v360
      %v405 = vunpack.c.h.b16 %v360
      %v406 = vunpack.c.l.b16 %v361
      %v407 = vunpack.c.h.b16 %v361
      %v408 = vunpack.c.l.b16 %v362
      %v409 = vunpack.c.h.b16 %v362
      %v410 = vunpack.c.l.b16 %v363
      %v411 = vunpack.c.h.b16 %v363
      %v412 = vpack.c.b16 %v380, %v380
      %v413 = vpack.c.b16 %v381, %v381
      %v414 = vpack.c.b16 %v382, %v382
      %v415 = vpack.c.b16 %v383, %v383
      %v416 = vpack.c.b16 %v384, %v384
      %v417 = vpack.c.b16 %v385, %v385
      %v418 = vpack.c.b16 %v386, %v386
      %v419 = vpack.c.b16 %v387, %v387
      %v420 = vpack.c.b16 %v388, %v388
      %v421 = vpack.c.b16 %v389, %v389
      %v422 = vpack.c.b16 %v390, %v390
      %v423 = vpack.c.b16 %v391, %v391
      %v424 = vpack.c.b16 %v392, %v392
      %v425 = vpack.c.b16 %v393, %v393
      %v426 = vpack.c.b16 %v394, %v394
      %v427 = vpack.c.b16 %v395, %v395
      %v428 = vpack.c.b16 %v396, %v396
      %v429 = vpack.c.b16 %v397, %v397
      %v430 = vpack.c.b16 %v398, %v398
      %v431 = vpack.c.b16 %v399, %v399
      %v432 = vpack.c.b16 %v400, %v400
      %v433 = vpack.c.b16 %v401, %v401
      %v434 = vpack.c.b16 %v402, %v402
      %v435 = vpack.c.b16 %v403, %v403
      %v436 = vpack.c.b16 %v404, %v404
      %v437 = vpack.c.b16 %v405, %v405
      %v438 = vpack.c.b16 %v406, %v406
      %v439 = vpack.c.b16 %v407, %v407
      %v440 = vpack.c.b16 %v408, %v408
      %v441 = vpack.c.b16 %v409, %v409
      %v442 = vpack.c.b16 %v410, %v410
      %v443 = vpack.c.b16 %v411, %v411
      %476 = vst [vmem:[%s172] sm:$0xf] %v412
      %477 = vst [vmem:[%s172 + $0x4] sm:$0xf] %v413
      %478 = vst [vmem:[%s172 + $0x8] sm:$0xf] %v414
      %479 = vst [vmem:[%s172 + $0xc] sm:$0xf] %v415
      %480 = vst [vmem:[%s172 + $0x10] sm:$0xf] %v416
      %481 = vst [vmem:[%s172 + $0x14] sm:$0xf] %v417
      %482 = vst [vmem:[%s172 + $0x18] sm:$0xf] %v418
      %483 = vst [vmem:[%s172 + $0x1c] sm:$0xf] %v419
      %484 = vst [vmem:[%s172 + $0x20] sm:$0xf] %v420
      %485 = vst [vmem:[%s172 + $0x24] sm:$0xf] %v421
      %486 = vst [vmem:[%s172 + $0x28] sm:$0xf] %v422
      %487 = vst [vmem:[%s172 + $0x2c] sm:$0xf] %v423
      %488 = vst [vmem:[%s172 + $0x30] sm:$0xf] %v424
      %489 = vst [vmem:[%s172 + $0x34] sm:$0xf] %v425
      %490 = vst [vmem:[%s172 + $0x38] sm:$0xf] %v426
      %491 = vst [vmem:[%s172 + $0x3c] sm:$0xf] %v427
      %492 = vst [vmem:[%s172 + $0x40] sm:$0xf] %v428
      %493 = vst [vmem:[%s172 + $0x44] sm:$0xf] %v429
      %494 = vst [vmem:[%s172 + $0x48] sm:$0xf] %v430
      %495 = vst [vmem:[%s172 + $0x4c] sm:$0xf] %v431
      %496 = vst [vmem:[%s172 + $0x50] sm:$0xf] %v432
      %497 = vst [vmem:[%s172 + $0x54] sm:$0xf] %v433
      %498 = vst [vmem:[%s172 + $0x58] sm:$0xf] %v434
      %499 = vst [vmem:[%s172 + $0x5c] sm:$0xf] %v435
      %500 = vst [vmem:[%s172 + $0x60] sm:$0xf] %v436
      %501 = vst [vmem:[%s172 + $0x64] sm:$0xf] %v437
      %502 = vst [vmem:[%s172 + $0x68] sm:$0xf] %v438
      %503 = vst [vmem:[%s172 + $0x6c] sm:$0xf] %v439
      %504 = vst [vmem:[%s172 + $0x70] sm:$0xf] %v440
      %505 = vst [vmem:[%s172 + $0x74] sm:$0xf] %v441
      %506 = vst [vmem:[%s172 + $0x78] sm:$0xf] %v442
      %507 = vst [vmem:[%s172 + $0x7c] sm:$0xf] %v443
      %s508 = smul.u32 32, %s14
      %p509 = scmp.lt.s32.totalorder %s508, 63
      %s510 = scalar_select %p509, %s508, 63
      %s511 = smul.addr %s510, 4
      %s512 = scalar_lea.vmem %s3, %s511
      // Predicated region
      $region33: #{patch_merging.7} parent=31 // pred_check
        %p513 = pneg %p100
      $region34: #{patch_merging.7} parent=31 // pred_check_branch
        %515 = sbr.rel (%p513) target = $region36
      $region35: #{patch_merging.7} parent=31 // pred_region
        %s516 = smul.u32 32, %s14
      $region36: #{patch_merging.7} parent=31 // pred_fallthru
        _
    $region32: #{patch_merging.7} parent=5 // pred_fallthru
      _
    %p517 = scmp.le.s32.totalorder 2, %s9
    // Predicated region
    $region37: #{patch_merging.7} parent=5 // pred_check
      %p518 = pneg %p517
    $region38: #{patch_merging.7} parent=5 // pred_check_branch
      %520 = sbr.rel (%p518) target = $region40
    $region39: #{patch_merging.7} parent=5 // pred_region
      %s521 = ssub.s32 %s9, 2
      // Predicated region
      $region41: #{patch_merging.7} parent=39 // pred_check
        %p522 = pneg %p106
      $region42: #{patch_merging.7} parent=39 // pred_check_branch
        %524 = sbr.rel (%p522) target = $region44
      $region43: #{patch_merging.7} parent=39 // pred_region
        %s525 = smul.u32 32, %s15
        %p526 = scmp.lt.s32.totalorder %s525, 63
        %s527 = scalar_select %p526, %s525, 63
        %s528 = smul.addr %s527, 4
        %s529 = scalar_lea.vmem %s3, %s528
      $region44: #{patch_merging.7} parent=39 // pred_fallthru
        _
    $region40: #{patch_merging.7} parent=5 // pred_fallthru
      _
  $region6: #{patch_merging.7} parent=0 // loop_footer
    %s13 = sadd.s32 1, %s9
  $region7: #{patch_merging.7} parent=0 // loop_footer_branch
    %8 = sbr.rel target = $region3
  $region8: #{patch_merging.7} parent=0 // loop_exit
    _

// kernel: patch_merging.6
$region0: #{patch_merging.6}
  #allocation0 [shape = 'u32[]', space=smem, size = 0x4, offset = 0x4, fixed_abs, tag = 'smem constant byte address 0x4 - core index']
  #allocation1 [shape = 'u32[144,128]{1,0:T(1,128)}', space=vmem, size = 0x12000, scoped, tag = 'internal scratch']
  %s0 = inlined_call_operand.vmem [shape: bf16[512,4], index: 0, kind: input, shape index: {}]
  %s1 = inlined_call_operand.vmem [shape: bf16[4,128], index: 1, kind: input, shape index: {}]
  %s2 = inlined_call_operand.vmem [shape: bf16[512,128], index: 2, kind: output, shape index: {0}]
  %s3 = inlined_call_operand.vmem [shape: f32[2,8,128], index: 3, kind: output, shape index: {1}]
  %s4 = inlined_call_operand.vmem [shape: f32[2,8,128], index: 4, kind: output, shape index: {2}]
  %5 = xla_tuple %s2, %s3, %s4
  %s6 = sld [smem:[#allocation0]]
  $region57: #{patch_merging.6} parent=0
    _
  %s8 = ssub.s32 1, %s6
  %s9 = scalar_select 0, %s8, %s6
  loop: start=0, step=1, limit=4
  $region2: #{patch_merging.6} parent=0 // loop_pre_header
    _
  $region3: #{patch_merging.6} parent=0 // loop_header
    %s11 = sphi 0, %s15
    %p12 = scmp.ge.s32.totalorder %s11, 4
    %s21 = sphi 0, %s23
    %s24 = sphi 0, %s21
    %s25 = sphi 0, %s24
    %s41 = sphi 0, %s25
    %s45 = sphi 0, %s45
    %s47 = sphi 0, %s45
    %s48 = sphi 0, %s47
    %s62 = sphi 0, %s48
    %s68 = sphi 0, %s70
    %s71 = sphi 0, %s68
    %s72 = sphi 0, %s71
    %s88 = sphi 0, %s72
    %s94 = sphi 0, %s96
    %s97 = sphi 0, %s94
    %s98 = sphi 0, %s97
    %s114 = sphi 0, %s98
    %s120 = sphi 0, %s122
    %s123 = sphi 0, %s120
    %s124 = sphi 0, %s123
    %s140 = sphi 0, %s124
  $region4: #{patch_merging.6} parent=0 // loop_header_branch
    %14 = sbr.rel (%p12) target = $region8
  $region5: #{patch_merging.6} parent=0 // loop_body
    %s16 = ssub.s32 %s11, 1
    %s17 = ssub.s32 %s11, 2
    %s18 = sadd.s32 %s11, 1
    %s19 = ssub.s32 %s11, %s18
    %p20 = scmp.eq.s32.totalorder %s19, 0
    %s22 = sadd.s32 %s21, 1
    %s23 = scalar_select %p20, %s21, %s22
    %p26 = pneg %p20
    %p27 = scmp.eq.s32.totalorder %s11, 1
    %p28 = por %p26, %p27
    %p29 = scmp.ne.s32.totalorder %s21, %s24
    %p30 = scmp.eq.s32.totalorder %s11, 0
    %p31 = por %p29, %p30
    %p32 = scmp.ne.s32.totalorder %s21, %s24
    %p33 = scmp.eq.s32.totalorder %s16, 1
    %p34 = por %p32, %p33
    %p35 = scmp.ne.s32.totalorder %s24, %s25
    %p36 = scmp.eq.s32.totalorder %s16, 0
    %p37 = por %p35, %p36
    %p38 = scmp.ne.s32.totalorder %s24, %s25
    %p39 = scmp.eq.s32.totalorder %s17, 1
    %p40 = por %p38, %p39
    %p42 = scmp.ne.s32.totalorder %s25, %s41
    %p43 = scmp.eq.s32.totalorder %s17, 0
    %p44 = por %p42, %p43
    %s46 = sadd.s32 %s45, 1
    %p49 = scmp.eq.s32.totalorder %s11, 1
    %p50 = scmp.ne.s32.totalorder %s45, %s47
    %p51 = scmp.eq.s32.totalorder %s11, 0
    %p52 = por %p50, %p51
    %p53 = scmp.ne.s32.totalorder %s45, %s47
    %p54 = scmp.eq.s32.totalorder %s16, 1
    %p55 = por %p53, %p54
    %p56 = scmp.ne.s32.totalorder %s47, %s48
    %p57 = scmp.eq.s32.totalorder %s16, 0
    %p58 = por %p56, %p57
    %p59 = scmp.ne.s32.totalorder %s47, %s48
    %p60 = scmp.eq.s32.totalorder %s17, 1
    %p61 = por %p59, %p60
    %p63 = scmp.ne.s32.totalorder %s48, %s62
    %p64 = scmp.eq.s32.totalorder %s17, 0
    %p65 = por %p63, %p64
    %s66 = ssub.s32 %s11, %s18
    %p67 = scmp.eq.s32.totalorder %s66, 0
    %s69 = sadd.s32 %s68, 1
    %s70 = scalar_select %p67, %s68, %s69
    %p73 = pneg %p67
    %p74 = scmp.eq.s32.totalorder %s11, 1
    %p75 = por %p73, %p74
    %p76 = scmp.ne.s32.totalorder %s68, %s71
    %p77 = scmp.eq.s32.totalorder %s11, 0
    %p78 = por %p76, %p77
    %p79 = scmp.ne.s32.totalorder %s68, %s71
    %p80 = scmp.eq.s32.totalorder %s16, 1
    %p81 = por %p79, %p80
    %p82 = scmp.ne.s32.totalorder %s71, %s72
    %p83 = scmp.eq.s32.totalorder %s16, 0
    %p84 = por %p82, %p83
    %p85 = scmp.ne.s32.totalorder %s71, %s72
    %p86 = scmp.eq.s32.totalorder %s17, 1
    %p87 = por %p85, %p86
    %p89 = scmp.ne.s32.totalorder %s72, %s88
    %p90 = scmp.eq.s32.totalorder %s17, 0
    %p91 = por %p89, %p90
    %s92 = ssub.s32 %s11, %s18
    %p93 = scmp.eq.s32.totalorder %s92, 0
    %s95 = sadd.s32 %s94, 1
    %s96 = scalar_select %p93, %s94, %s95
    %p99 = pneg %p93
    %p100 = scmp.eq.s32.totalorder %s11, 1
    %p101 = por %p99, %p100
    %p102 = scmp.ne.s32.totalorder %s94, %s97
    %p103 = scmp.eq.s32.totalorder %s11, 0
    %p104 = por %p102, %p103
    %p105 = scmp.ne.s32.totalorder %s94, %s97
    %p106 = scmp.eq.s32.totalorder %s16, 1
    %p107 = por %p105, %p106
    %p108 = scmp.ne.s32.totalorder %s97, %s98
    %p109 = scmp.eq.s32.totalorder %s16, 0
    %p110 = por %p108, %p109
    %p111 = scmp.ne.s32.totalorder %s97, %s98
    %p112 = scmp.eq.s32.totalorder %s17, 1
    %p113 = por %p111, %p112
    %p115 = scmp.ne.s32.totalorder %s98, %s114
    %p116 = scmp.eq.s32.totalorder %s17, 0
    %p117 = por %p115, %p116
    %s118 = ssub.s32 %s11, %s18
    %p119 = scmp.eq.s32.totalorder %s118, 0
    %s121 = sadd.s32 %s120, 1
    %s122 = scalar_select %p119, %s120, %s121
    %p125 = pneg %p119
    %p126 = scmp.eq.s32.totalorder %s11, 1
    %p127 = por %p125, %p126
    %p128 = scmp.ne.s32.totalorder %s120, %s123
    %p129 = scmp.eq.s32.totalorder %s11, 0
    %p130 = por %p128, %p129
    %p131 = scmp.ne.s32.totalorder %s120, %s123
    %p132 = scmp.eq.s32.totalorder %s16, 1
    %p133 = por %p131, %p132
    %p134 = scmp.ne.s32.totalorder %s123, %s124
    %p135 = scmp.eq.s32.totalorder %s16, 0
    %p136 = por %p134, %p135
    %p137 = scmp.ne.s32.totalorder %s123, %s124
    %p138 = scmp.eq.s32.totalorder %s17, 1
    %p139 = por %p137, %p138
    %p141 = scmp.ne.s32.totalorder %s124, %s140
    %p142 = scmp.eq.s32.totalorder %s17, 0
    %p143 = por %p141, %p142
    %p144 = scmp.le.s32.totalorder 1, %s11
    %p145 = scmp.lt.s32.totalorder %s11, 3
    %p146 = pnand %p144, %p145
    %p147 = pneg %p146
    // Predicated region
    $region9: #{patch_merging.6} parent=5 // pred_check
      _
    $region10: #{patch_merging.6} parent=5 // pred_check_branch
      %149 = sbr.rel (%p146) target = $region12
    $region11: #{patch_merging.6} parent=5 // pred_region
      %s150 = ssub.s32 %s11, 1
      // Predicated region
      $region13: #{patch_merging.6} parent=11 // pred_check
        %p151 = pneg %p58
      $region14: #{patch_merging.6} parent=11 // pred_check_branch
        %153 = sbr.rel (%p151) target = $region16
      $region15: #{patch_merging.6} parent=11 // pred_region
        _
      $region16: #{patch_merging.6} parent=11 // pred_fallthru
        _
    $region12: #{patch_merging.6} parent=5 // pred_fallthru
      _
    %p154 = scmp.lt.s32.totalorder %s11, 2
    // Predicated region
    $region17: #{patch_merging.6} parent=5 // pred_check
      %p155 = pneg %p154
    $region18: #{patch_merging.6} parent=5 // pred_check_branch
      %157 = sbr.rel (%p155) target = $region20
    $region19: #{patch_merging.6} parent=5 // pred_region
      // Predicated region
      $region21: #{patch_merging.6} parent=19 // pred_check
        %p158 = pneg %p31
      $region22: #{patch_merging.6} parent=19 // pred_check_branch
        %160 = sbr.rel (%p158) target = $region24
      $region23: #{patch_merging.6} parent=19 // pred_region
        %s161 = smul.u32 32, %s11
        %p162 = scmp.lt.s32.totalorder %s161, 63
        %s163 = scalar_select %p162, %s161, 63
        %s164 = smul.addr %s163, 4
        %s165 = scalar_lea.vmem %s0, %s164
        %s166 = smul.u32 32, %s11
      $region24: #{patch_merging.6} parent=19 // pred_fallthru
        _
    $region20: #{patch_merging.6} parent=5 // pred_fallthru
      _
    %p167 = scmp.le.s32.totalorder 1, %s11
    %p168 = scmp.lt.s32.totalorder %s11, 3
    %p169 = pnand %p167, %p168
    %p170 = pneg %p169
    // Predicated region
    $region25: #{patch_merging.6} parent=5 // pred_check
      _
    $region26: #{patch_merging.6} parent=5 // pred_check_branch
      %172 = sbr.rel (%p169) target = $region28
    $region27: #{patch_merging.6} parent=5 // pred_region
      %s173 = ssub.s32 %s11, 1
      %s174 = smul.u32 32, %s16
      %p175 = scmp.lt.s32.totalorder %s174, 63
      %s176 = scalar_select %p175, %s174, 63
      %s177 = smul.addr %s176, 4
      %s178 = scalar_lea.vmem %s0, %s177
      %p179 = pneg %p37
      %p180 = pneg %p34
      %p181 = pneg %p58
      %p182 = pneg %p55
      %p183 = pneg %p84
      %p184 = pneg %p81
      %s185 = smul.u32 32, %s16
      %p186 = scmp.lt.s32.totalorder %s185, 63
      %s187 = scalar_select %p186, %s185, 63
      %s188 = smul.addr %s187, 4
      %s189 = scalar_lea.vmem %s2, %s188
      %p190 = pneg %p110
      %p191 = pneg %p107
      %p192 = scmp.lt.s32.totalorder %s16, 1
      %s193 = scalar_select %p192, %s16, 1
      %s194 = smul.addr %s193, 8
      %s195 = scalar_lea.vmem %s3, %s194
      %p196 = pneg %p136
      %p197 = pneg %p133
      %p198 = scmp.lt.s32.totalorder %s16, 1
      %s199 = scalar_select %p198, %s16, 1
      %s200 = smul.addr %s199, 8
      %s201 = scalar_lea.vmem %s4, %s200
      %s202 = smul.u32 32, %s16
      %p203 = scmp.lt.s32.totalorder %s202, 63
      %s204 = scalar_select %p203, %s202, 63
      %s205 = smul.addr %s204, 4
      %s206 = scalar_lea.vmem %s0, %s205
      %s207 = smul.u32 32, %s16
      %s208 = smul.u32 32, %s16
      %p209 = scmp.lt.s32.totalorder %s208, 63
      %s210 = scalar_select %p209, %s208, 63
      %s211 = smul.addr %s210, 4
      %s212 = scalar_lea.vmem %s2, %s211
      %s213 = smul.u32 32, %s16
      %p214 = scmp.lt.s32.totalorder %s16, 1
      %s215 = scalar_select %p214, %s16, 1
      %s216 = smul.addr %s215, 8
      %s217 = scalar_lea.vmem %s3, %s216
      %p218 = scmp.lt.s32.totalorder %s16, 1
      %s219 = scalar_select %p218, %s16, 1
      %s220 = smul.addr %s219, 8
      %s221 = scalar_lea.vmem %s4, %s220
      %v223 = vld [vmem:[%s206] sm:$0xf]
      %v224 = vld [vmem:[%s206 + $0x4] sm:$0xf]
      %v225 = vld [vmem:[%s206 + $0x8] sm:$0xf]
      %v226 = vld [vmem:[%s206 + $0xc] sm:$0xf]
      %v227 = vld [vmem:[%s206 + $0x10] sm:$0xf]
      %v228 = vld [vmem:[%s206 + $0x14] sm:$0xf]
      %v229 = vld [vmem:[%s206 + $0x18] sm:$0xf]
      %v230 = vld [vmem:[%s206 + $0x1c] sm:$0xf]
      %v231 = vld [vmem:[%s206 + $0x20] sm:$0xf]
      %v232 = vld [vmem:[%s206 + $0x24] sm:$0xf]
      %v233 = vld [vmem:[%s206 + $0x28] sm:$0xf]
      %v234 = vld [vmem:[%s206 + $0x2c] sm:$0xf]
      %v235 = vld [vmem:[%s206 + $0x30] sm:$0xf]
      %v236 = vld [vmem:[%s206 + $0x34] sm:$0xf]
      %v237 = vld [vmem:[%s206 + $0x38] sm:$0xf]
      %v238 = vld [vmem:[%s206 + $0x3c] sm:$0xf]
      %v239 = vld [vmem:[%s206 + $0x40] sm:$0xf]
      %v240 = vld [vmem:[%s206 + $0x44] sm:$0xf]
      %v241 = vld [vmem:[%s206 + $0x48] sm:$0xf]
      %v242 = vld [vmem:[%s206 + $0x4c] sm:$0xf]
      %v243 = vld [vmem:[%s206 + $0x50] sm:$0xf]
      %v244 = vld [vmem:[%s206 + $0x54] sm:$0xf]
      %v245 = vld [vmem:[%s206 + $0x58] sm:$0xf]
      %v246 = vld [vmem:[%s206 + $0x5c] sm:$0xf]
      %v247 = vld [vmem:[%s206 + $0x60] sm:$0xf]
      %v248 = vld [vmem:[%s206 + $0x64] sm:$0xf]
      %v249 = vld [vmem:[%s206 + $0x68] sm:$0xf]
      %v250 = vld [vmem:[%s206 + $0x6c] sm:$0xf]
      %v251 = vld [vmem:[%s206 + $0x70] sm:$0xf]
      %v252 = vld [vmem:[%s206 + $0x74] sm:$0xf]
      %v253 = vld [vmem:[%s206 + $0x78] sm:$0xf]
      %v254 = vld [vmem:[%s206 + $0x7c] sm:$0xf]
      %v255 = vld [vmem:[%s1] sm:$0x3]
      %v288 = vunpack.c.l.b16 %v223
      %v289 = vunpack.c.l.b16 %v224
      %v290 = vunpack.c.l.b16 %v225
      %v291 = vunpack.c.l.b16 %v226
      %v292 = vunpack.c.l.b16 %v227
      %v293 = vunpack.c.l.b16 %v228
      %v294 = vunpack.c.l.b16 %v229
      %v295 = vunpack.c.l.b16 %v230
      %v296 = vunpack.c.l.b16 %v231
      %v297 = vunpack.c.l.b16 %v232
      %v298 = vunpack.c.l.b16 %v233
      %v299 = vunpack.c.l.b16 %v234
      %v300 = vunpack.c.l.b16 %v235
      %v301 = vunpack.c.l.b16 %v236
      %v302 = vunpack.c.l.b16 %v237
      %v303 = vunpack.c.l.b16 %v238
      %v304 = vunpack.c.l.b16 %v239
      %v305 = vunpack.c.l.b16 %v240
      %v306 = vunpack.c.l.b16 %v241
      %v307 = vunpack.c.l.b16 %v242
      %v308 = vunpack.c.l.b16 %v243
      %v309 = vunpack.c.l.b16 %v244
      %v310 = vunpack.c.l.b16 %v245
      %v311 = vunpack.c.l.b16 %v246
      %v312 = vunpack.c.l.b16 %v247
      %v313 = vunpack.c.l.b16 %v248
      %v314 = vunpack.c.l.b16 %v249
      %v315 = vunpack.c.l.b16 %v250
      %v316 = vunpack.c.l.b16 %v251
      %v317 = vunpack.c.l.b16 %v252
      %v318 = vunpack.c.l.b16 %v253
      %v319 = vunpack.c.l.b16 %v254
      %v320 = vpack.c.b16 %v289, %v288
      %v321 = vpack.c.b16 %v291, %v290
      %v322 = vpack.c.b16 %v293, %v292
      %v323 = vpack.c.b16 %v295, %v294
      %v324 = vpack.c.b16 %v297, %v296
      %v325 = vpack.c.b16 %v299, %v298
      %v326 = vpack.c.b16 %v301, %v300
      %v327 = vpack.c.b16 %v303, %v302
      %v328 = vpack.c.b16 %v305, %v304
      %v329 = vpack.c.b16 %v307, %v306
      %v330 = vpack.c.b16 %v309, %v308
      %v331 = vpack.c.b16 %v311, %v310
      %v332 = vpack.c.b16 %v313, %v312
      %v333 = vpack.c.b16 %v315, %v314
      %v334 = vpack.c.b16 %v317, %v316
      %v335 = vpack.c.b16 %v319, %v318
      %vm336 = vcmask 31744
      %v338 = vsel %vm336, %v320, 0
      %v341 = vsel %vm336, %v321, 0
      %v344 = vsel %vm336, %v322, 0
      %v347 = vsel %vm336, %v323, 0
      %v350 = vsel %vm336, %v324, 0
      %v353 = vsel %vm336, %v325, 0
      %v356 = vsel %vm336, %v326, 0
      %v359 = vsel %vm336, %v327, 0
      %v362 = vsel %vm336, %v328, 0
      %v365 = vsel %vm336, %v329, 0
      %v368 = vsel %vm336, %v330, 0
      %v371 = vsel %vm336, %v331, 0
      %v374 = vsel %vm336, %v332, 0
      %v377 = vsel %vm336, %v333, 0
      %v380 = vsel %vm336, %v334, 0
      %v383 = vsel %vm336, %v335, 0
      %vm385 = vcmask 1041408
      %v387 = vsel %vm385, %v255, 0
      %389 = vmatprep.subr.bf16.mxu0 0
      %390 = vmatpush1.bf16.msra.mxu0 %v387
      %391 = vmatprep.subr.bf16.mxu0 0
      %392 = vmatpush1.bf16.msra.mxu0 0
      %393 = vmatprep.subr.bf16.mxu0 0
      %394 = vmatpush1.bf16.msra.mxu0 0
      %395 = vmatprep.subr.bf16.mxu0 0
      %396 = vmatpush1.bf16.msra.mxu0 0
      %397 = vmatprep.subr.bf16.mxu0 0
      %398 = vmatpush1.bf16.msra.mxu0 0
      %399 = vmatprep.subr.bf16.mxu0 0
      %400 = vmatpush1.bf16.msra.mxu0 0
      %401 = vmatprep.subr.bf16.mxu0 0
      %402 = vmatpush1.bf16.msra.mxu0 0
      %403 = vmatprep.subr.bf16.mxu0 0
      %404 = vmatpush1.bf16.msra.mxu0 0
      %405 = vmatprep.subr.bf16.mxu0 0
      %406 = vmatpush1.bf16.msra.mxu0 0
      %407 = vmatprep.subr.bf16.mxu0 0
      %408 = vmatpush1.bf16.msra.mxu0 0
      %409 = vmatprep.subr.bf16.mxu0 0
      %410 = vmatpush1.bf16.msra.mxu0 0
      %411 = vmatprep.subr.bf16.mxu0 0
      %412 = vmatpush1.bf16.msra.mxu0 0
      %413 = vmatprep.subr.bf16.mxu0 0
      %414 = vmatpush1.bf16.msra.mxu0 0
      %415 = vmatprep.subr.bf16.mxu0 0
      %416 = vmatpush1.bf16.msra.mxu0 0
      %417 = vmatprep.subr.bf16.mxu0 0
      %418 = vmatpush1.bf16.msra.mxu0 0
      %419 = vmatprep.subr.bf16.mxu0 0
      %420 = vmatpush1.bf16.msra.mxu0 0
      %421 = vmatprep.mubr.bf16.mxu0 0
      %422 = vmatmul.mubr.bf16.gmra.mrb[0].mxu0 %v338
      %v423 = vpop.f32.mrb[0].mxu0
      %v424 = vadd.f32 0.0, %v423
      %v425 = vpop.f32.mrb[0].mxu0
      %v426 = vpop.f32.mrb[0].mxu0
      %v427 = vadd.f32 0.0, %v426
      %v428 = vpop.f32.mrb[0].mxu0
      %429 = vmatprep.mubr.bf16.mxu0 0
      %430 = vmatmul.mubr.bf16.gmra.mrb[0].mxu0 %v341
      %v431 = vpop.f32.mrb[0].mxu0
      %v432 = vadd.f32 0.0, %v431
      %v433 = vpop.f32.mrb[0].mxu0
      %v434 = vpop.f32.mrb[0].mxu0
      %v435 = vadd.f32 0.0, %v434
      %v436 = vpop.f32.mrb[0].mxu0
      %437 = vmatprep.mubr.bf16.mxu0 0
      %438 = vmatmul.mubr.bf16.gmra.mrb[0].mxu0 %v344
      %v439 = vpop.f32.mrb[0].mxu0
      %v440 = vadd.f32 0.0, %v439
      %v441 = vpop.f32.mrb[0].mxu0
      %v442 = vpop.f32.mrb[0].mxu0
      %v443 = vadd.f32 0.0, %v442
      %v444 = vpop.f32.mrb[0].mxu0
      %445 = vmatprep.mubr.bf16.mxu0 0
      %446 = vmatmul.mubr.bf16.gmra.mrb[0].mxu0 %v347
      %v447 = vpop.f32.mrb[0].mxu0
      %v448 = vadd.f32 0.0, %v447
      %v449 = vpop.f32.mrb[0].mxu0
      %v450 = vpop.f32.mrb[0].mxu0
      %v451 = vadd.f32 0.0, %v450
      %v452 = vpop.f32.mrb[0].mxu0
      %453 = vmatprep.mubr.bf16.mxu0 0
      %454 = vmatmul.mubr.bf16.gmra.mrb[0].mxu0 %v350
      %v455 = vpop.f32.mrb[0].mxu0
      %v456 = vadd.f32 0.0, %v455
      %v457 = vpop.f32.mrb[0].mxu0
      %v458 = vpop.f32.mrb[0].mxu0
      %v459 = vadd.f32 0.0, %v458
      %v460 = vpop.f32.mrb[0].mxu0
      %461 = vmatprep.mubr.bf16.mxu0 0
      %462 = vmatmul.mubr.bf16.gmra.mrb[0].mxu0 %v353
      %v463 = vpop.f32.mrb[0].mxu0
      %v464 = vadd.f32 0.0, %v463
      %v465 = vpop.f32.mrb[0].mxu0
      %v466 = vpop.f32.mrb[0].mxu0
      %v467 = vadd.f32 0.0, %v466
      %v468 = vpop.f32.mrb[0].mxu0
      %469 = vmatprep.mubr.bf16.mxu0 0
      %470 = vmatmul.mubr.bf16.gmra.mrb[0].mxu0 %v356
      %v471 = vpop.f32.mrb[0].mxu0
      %v472 = vadd.f32 0.0, %v471
      %v473 = vpop.f32.mrb[0].mxu0
      %v474 = vpop.f32.mrb[0].mxu0
      %v475 = vadd.f32 0.0, %v474
      %v476 = vpop.f32.mrb[0].mxu0
      %477 = vmatprep.mubr.bf16.mxu0 0
      %478 = vmatmul.mubr.bf16.gmra.mrb[0].mxu0 %v359
      %v479 = vpop.f32.mrb[0].mxu0
      %v480 = vadd.f32 0.0, %v479
      %v481 = vpop.f32.mrb[0].mxu0
      %v482 = vpop.f32.mrb[0].mxu0
      %v483 = vadd.f32 0.0, %v482
      %v484 = vpop.f32.mrb[0].mxu0
      %485 = vmatprep.mubr.bf16.mxu0 0
      %486 = vmatmul.mubr.bf16.gmra.mrb[0].mxu0 %v362
      %v487 = vpop.f32.mrb[0].mxu0
      %v488 = vadd.f32 0.0, %v487
      %v489 = vpop.f32.mrb[0].mxu0
      %v490 = vpop.f32.mrb[0].mxu0
      %v491 = vadd.f32 0.0, %v490
      %v492 = vpop.f32.mrb[0].mxu0
      %493 = vmatprep.mubr.bf16.mxu0 0
      %494 = vmatmul.mubr.bf16.gmra.mrb[0].mxu0 %v365
      %v495 = vpop.f32.mrb[0].mxu0
      %v496 = vadd.f32 0.0, %v495
      %v497 = vpop.f32.mrb[0].mxu0
      %v498 = vpop.f32.mrb[0].mxu0
      %v499 = vadd.f32 0.0, %v498
      %v500 = vpop.f32.mrb[0].mxu0
      %501 = vmatprep.mubr.bf16.mxu0 0
      %502 = vmatmul.mubr.bf16.gmra.mrb[0].mxu0 %v368
      %v503 = vpop.f32.mrb[0].mxu0
      %v504 = vadd.f32 0.0, %v503
      %v505 = vpop.f32.mrb[0].mxu0
      %v506 = vpop.f32.mrb[0].mxu0
      %v507 = vadd.f32 0.0, %v506
      %v508 = vpop.f32.mrb[0].mxu0
      %509 = vmatprep.mubr.bf16.mxu0 0
      %510 = vmatmul.mubr.bf16.gmra.mrb[0].mxu0 %v371
      %v511 = vpop.f32.mrb[0].mxu0
      %v512 = vadd.f32 0.0, %v511
      %v513 = vpop.f32.mrb[0].mxu0
      %v514 = vpop.f32.mrb[0].mxu0
      %v515 = vadd.f32 0.0, %v514
      %v516 = vpop.f32.mrb[0].mxu0
      %517 = vmatprep.mubr.bf16.mxu0 0
      %518 = vmatmul.mubr.bf16.gmra.mrb[0].mxu0 %v374
      %v519 = vpop.f32.mrb[0].mxu0
      %v520 = vadd.f32 0.0, %v519
      %v521 = vpop.f32.mrb[0].mxu0
      %v522 = vpop.f32.mrb[0].mxu0
      %v523 = vadd.f32 0.0, %v522
      %v524 = vpop.f32.mrb[0].mxu0
      %525 = vmatprep.mubr.bf16.mxu0 0
      %526 = vmatmul.mubr.bf16.gmra.mrb[0].mxu0 %v377
      %v527 = vpop.f32.mrb[0].mxu0
      %v528 = vadd.f32 0.0, %v527
      %v529 = vpop.f32.mrb[0].mxu0
      %v530 = vpop.f32.mrb[0].mxu0
      %v531 = vadd.f32 0.0, %v530
      %v532 = vpop.f32.mrb[0].mxu0
      %533 = vmatprep.mubr.bf16.mxu0 0
      %534 = vmatmul.mubr.bf16.gmra.mrb[0].mxu0 %v380
      %v535 = vpop.f32.mrb[0].mxu0
      %v536 = vadd.f32 0.0, %v535
      %v537 = vpop.f32.mrb[0].mxu0
      %v538 = vpop.f32.mrb[0].mxu0
      %v539 = vadd.f32 0.0, %v538
      %v540 = vpop.f32.mrb[0].mxu0
      %541 = vmatprep.mubr.bf16.mxu0 0
      %542 = vmatmul.mubr.bf16.gmra.mrb[0].mxu0 %v383
      %v543 = vpop.f32.mrb[0].mxu0
      %v544 = vadd.f32 0.0, %v543
      %v545 = vpop.f32.mrb[0].mxu0
      %v546 = vpop.f32.mrb[0].mxu0
      %v547 = vadd.f32 0.0, %v546
      %v548 = vpop.f32.mrb[0].mxu0
      %549 = vdwg.mxu0
      %v550 = vpack.c.bf16 %v427, %v424
      %v551 = vpack.c.bf16 %v435, %v432
      %v552 = vpack.c.bf16 %v443, %v440
      %v553 = vpack.c.bf16 %v451, %v448
      %v554 = vpack.c.bf16 %v459, %v456
      %v555 = vpack.c.bf16 %v467, %v464
      %v556 = vpack.c.bf16 %v475, %v472
      %v557 = vpack.c.bf16 %v483, %v480
      %v558 = vpack.c.bf16 %v491, %v488
      %v559 = vpack.c.bf16 %v499, %v496
      %v560 = vpack.c.bf16 %v507, %v504
      %v561 = vpack.c.bf16 %v515, %v512
      %v562 = vpack.c.bf16 %v523, %v520
      %v563 = vpack.c.bf16 %v531, %v528
      %v564 = vpack.c.bf16 %v539, %v536
      %v565 = vpack.c.bf16 %v547, %v544
      %v582 = vunpack.c.l.b16 %v550
      %v583 = vunpack.c.h.b16 %v550
      %v584 = vunpack.c.l.b16 %v551
      %v585 = vunpack.c.h.b16 %v551
      %v586 = vunpack.c.l.b16 %v552
      %v587 = vunpack.c.h.b16 %v552
      %v588 = vunpack.c.l.b16 %v553
      %v589 = vunpack.c.h.b16 %v553
      %v590 = vunpack.c.l.b16 %v554
      %v591 = vunpack.c.h.b16 %v554
      %v592 = vunpack.c.l.b16 %v555
      %v593 = vunpack.c.h.b16 %v555
      %v594 = vunpack.c.l.b16 %v556
      %v595 = vunpack.c.h.b16 %v556
      %v596 = vunpack.c.l.b16 %v557
      %v597 = vunpack.c.h.b16 %v557
      %v598 = vunpack.c.l.b16 %v558
      %v599 = vunpack.c.h.b16 %v558
      %v600 = vunpack.c.l.b16 %v559
      %v601 = vunpack.c.h.b16 %v559
      %v602 = vunpack.c.l.b16 %v560
      %v603 = vunpack.c.h.b16 %v560
      %v604 = vunpack.c.l.b16 %v561
      %v605 = vunpack.c.h.b16 %v561
      %v606 = vunpack.c.l.b16 %v562
      %v607 = vunpack.c.h.b16 %v562
      %v608 = vunpack.c.l.b16 %v563
      %v609 = vunpack.c.h.b16 %v563
      %v610 = vunpack.c.l.b16 %v564
      %v611 = vunpack.c.h.b16 %v564
      %v612 = vunpack.c.l.b16 %v565
      %v613 = vunpack.c.h.b16 %v565
      %v614 = vpack.c.b16 %v582, %v582
      %v615 = vpack.c.b16 %v583, %v583
      %v616 = vpack.c.b16 %v584, %v584
      %v617 = vpack.c.b16 %v585, %v585
      %v618 = vpack.c.b16 %v586, %v586
      %v619 = vpack.c.b16 %v587, %v587
      %v620 = vpack.c.b16 %v588, %v588
      %v621 = vpack.c.b16 %v589, %v589
      %v622 = vpack.c.b16 %v590, %v590
      %v623 = vpack.c.b16 %v591, %v591
      %v624 = vpack.c.b16 %v592, %v592
      %v625 = vpack.c.b16 %v593, %v593
      %v626 = vpack.c.b16 %v594, %v594
      %v627 = vpack.c.b16 %v595, %v595
      %v628 = vpack.c.b16 %v596, %v596
      %v629 = vpack.c.b16 %v597, %v597
      %v630 = vpack.c.b16 %v598, %v598
      %v631 = vpack.c.b16 %v599, %v599
      %v632 = vpack.c.b16 %v600, %v600
      %v633 = vpack.c.b16 %v601, %v601
      %v634 = vpack.c.b16 %v602, %v602
      %v635 = vpack.c.b16 %v603, %v603
      %v636 = vpack.c.b16 %v604, %v604
      %v637 = vpack.c.b16 %v605, %v605
      %v638 = vpack.c.b16 %v606, %v606
      %v639 = vpack.c.b16 %v607, %v607
      %v640 = vpack.c.b16 %v608, %v608
      %v641 = vpack.c.b16 %v609, %v609
      %v642 = vpack.c.b16 %v610, %v610
      %v643 = vpack.c.b16 %v611, %v611
      %v644 = vpack.c.b16 %v612, %v612
      %v645 = vpack.c.b16 %v613, %v613
      %678 = vst [vmem:[%s212] sm:$0xf] %v614
      %679 = vst [vmem:[%s212 + $0x4] sm:$0xf] %v615
      %680 = vst [vmem:[%s212 + $0x8] sm:$0xf] %v616
      %681 = vst [vmem:[%s212 + $0xc] sm:$0xf] %v617
      %682 = vst [vmem:[%s212 + $0x10] sm:$0xf] %v618
      %683 = vst [vmem:[%s212 + $0x14] sm:$0xf] %v619
      %684 = vst [vmem:[%s212 + $0x18] sm:$0xf] %v620
      %685 = vst [vmem:[%s212 + $0x1c] sm:$0xf] %v621
      %686 = vst [vmem:[%s212 + $0x20] sm:$0xf] %v622
      %687 = vst [vmem:[%s212 + $0x24] sm:$0xf] %v623
      %688 = vst [vmem:[%s212 + $0x28] sm:$0xf] %v624
      %689 = vst [vmem:[%s212 + $0x2c] sm:$0xf] %v625
      %690 = vst [vmem:[%s212 + $0x30] sm:$0xf] %v626
      %691 = vst [vmem:[%s212 + $0x34] sm:$0xf] %v627
      %692 = vst [vmem:[%s212 + $0x38] sm:$0xf] %v628
      %693 = vst [vmem:[%s212 + $0x3c] sm:$0xf] %v629
      %694 = vst [vmem:[%s212 + $0x40] sm:$0xf] %v630
      %695 = vst [vmem:[%s212 + $0x44] sm:$0xf] %v631
      %696 = vst [vmem:[%s212 + $0x48] sm:$0xf] %v632
      %697 = vst [vmem:[%s212 + $0x4c] sm:$0xf] %v633
      %698 = vst [vmem:[%s212 + $0x50] sm:$0xf] %v634
      %699 = vst [vmem:[%s212 + $0x54] sm:$0xf] %v635
      %700 = vst [vmem:[%s212 + $0x58] sm:$0xf] %v636
      %701 = vst [vmem:[%s212 + $0x5c] sm:$0xf] %v637
      %702 = vst [vmem:[%s212 + $0x60] sm:$0xf] %v638
      %703 = vst [vmem:[%s212 + $0x64] sm:$0xf] %v639
      %704 = vst [vmem:[%s212 + $0x68] sm:$0xf] %v640
      %705 = vst [vmem:[%s212 + $0x6c] sm:$0xf] %v641
      %706 = vst [vmem:[%s212 + $0x70] sm:$0xf] %v642
      %707 = vst [vmem:[%s212 + $0x74] sm:$0xf] %v643
      %708 = vst [vmem:[%s212 + $0x78] sm:$0xf] %v644
      %709 = vst [vmem:[%s212 + $0x7c] sm:$0xf] %v645
      %v710 = vadd.f32 %v424, %v427
      %v711 = vadd.f32 %v710, %v432
      %v712 = vadd.f32 %v711, %v435
      %v713 = vadd.f32 %v712, %v440
      %v714 = vadd.f32 %v713, %v443
      %v715 = vadd.f32 %v714, %v448
      %v716 = vadd.f32 %v715, %v451
      %v717 = vadd.f32 %v716, %v456
      %v718 = vadd.f32 %v717, %v459
      %v719 = vadd.f32 %v718, %v464
      %v720 = vadd.f32 %v719, %v467
      %v721 = vadd.f32 %v720, %v472
      %v722 = vadd.f32 %v721, %v475
      %v723 = vadd.f32 %v722, %v480
      %v724 = vadd.f32 %v723, %v483
      %v725 = vadd.f32 %v724, %v488
      %v726 = vadd.f32 %v725, %v491
      %v727 = vadd.f32 %v726, %v496
      %v728 = vadd.f32 %v727, %v499
      %v729 = vadd.f32 %v728, %v504
      %v730 = vadd.f32 %v729, %v507
      %v731 = vadd.f32 %v730, %v512
      %v732 = vadd.f32 %v731, %v515
      %v733 = vadd.f32 %v732, %v520
      %v734 = vadd.f32 %v733, %v523
      %v735 = vadd.f32 %v734, %v528
      %v736 = vadd.f32 %v735, %v531
      %v737 = vadd.f32 %v736, %v536
      %v738 = vadd.f32 %v737, %v539
      %v739 = vadd.f32 %v738, %v544
      %v740 = vadd.f32 %v739, %v547
      %v741 = vrot.slane %v740, 4
      %v742 = vadd.f32 %v740, %v741
      %v743 = vrot.slane %v742, 2
      %v744 = vadd.f32 %v742, %v743
      %v745 = vrot.slane %v744, 1
      %v746 = vadd.f32 %v744, %v745
      %v747 = vmul.f32 %v424, %v424
      %v748 = vmul.f32 %v427, %v427
      %v749 = vmul.f32 %v432, %v432
      %v750 = vmul.f32 %v435, %v435
      %v751 = vmul.f32 %v440, %v440
      %v752 = vmul.f32 %v443, %v443
      %v753 = vmul.f32 %v448, %v448
      %v754 = vmul.f32 %v451, %v451
      %v755 = vmul.f32 %v456, %v456
      %v756 = vmul.f32 %v459, %v459
      %v757 = vmul.f32 %v464, %v464
      %v758 = vmul.f32 %v467, %v467
      %v759 = vmul.f32 %v472, %v472
      %v760 = vmul.f32 %v475, %v475
      %v761 = vmul.f32 %v480, %v480
      %v762 = vmul.f32 %v483, %v483
      %v763 = vmul.f32 %v488, %v488
      %v764 = vmul.f32 %v491, %v491
      %v765 = vmul.f32 %v496, %v496
      %v766 = vmul.f32 %v499, %v499
      %v767 = vmul.f32 %v504, %v504
      %v768 = vmul.f32 %v507, %v507
      %v769 = vmul.f32 %v512, %v512
      %v770 = vmul.f32 %v515, %v515
      %v771 = vmul.f32 %v520, %v520
      %v772 = vmul.f32 %v523, %v523
      %v773 = vmul.f32 %v528, %v528
      %v774 = vmul.f32 %v531, %v531
      %v775 = vmul.f32 %v536, %v536
      %v776 = vmul.f32 %v539, %v539
      %v777 = vmul.f32 %v544, %v544
      %v778 = vmul.f32 %v547, %v547
      %v779 = vadd.f32 %v747, %v748
      %v780 = vadd.f32 %v779, %v749
      %v781 = vadd.f32 %v780, %v750
      %v782 = vadd.f32 %v781, %v751
      %v783 = vadd.f32 %v782, %v752
      %v784 = vadd.f32 %v783, %v753
      %v785 = vadd.f32 %v784, %v754
      %v786 = vadd.f32 %v785, %v755
      %v787 = vadd.f32 %v786, %v756
      %v788 = vadd.f32 %v787, %v757
      %v789 = vadd.f32 %v788, %v758
      %v790 = vadd.f32 %v789, %v759
      %v791 = vadd.f32 %v790, %v760
      %v792 = vadd.f32 %v791, %v761
      %v793 = vadd.f32 %v792, %v762
      %v794 = vadd.f32 %v793, %v763
      %v795 = vadd.f32 %v794, %v764
      %v796 = vadd.f32 %v795, %v765
      %v797 = vadd.f32 %v796, %v766
      %v798 = vadd.f32 %v797, %v767
      %v799 = vadd.f32 %v798, %v768
      %v800 = vadd.f32 %v799, %v769
      %v801 = vadd.f32 %v800, %v770
      %v802 = vadd.f32 %v801, %v771
      %v803 = vadd.f32 %v802, %v772
      %v804 = vadd.f32 %v803, %v773
      %v805 = vadd.f32 %v804, %v774
      %v806 = vadd.f32 %v805, %v775
      %v807 = vadd.f32 %v806, %v776
      %v808 = vadd.f32 %v807, %v777
      %v809 = vadd.f32 %v808, %v778
      %v810 = vrot.slane %v809, 4
      %v811 = vadd.f32 %v809, %v810
      %v812 = vrot.slane %v811, 2
      %v813 = vadd.f32 %v811, %v812
      %v814 = vrot.slane %v813, 1
      %v815 = vadd.f32 %v813, %v814
      %816 = vst [vmem:[%s217] sm:$0xff] %v746
      %817 = vst [vmem:[%s221] sm:$0xff] %v815
      %s818 = smul.u32 32, %s16
      %p819 = scmp.lt.s32.totalorder %s818, 63
      %s820 = scalar_select %p819, %s818, 63
      %s821 = smul.addr %s820, 4
      %s822 = scalar_lea.vmem %s2, %s821
      %p823 = scmp.lt.s32.totalorder %s16, 1
      %s824 = scalar_select %p823, %s16, 1
      %s825 = smul.addr %s824, 8
      %s826 = scalar_lea.vmem %s3, %s825
      %p827 = scmp.lt.s32.totalorder %s16, 1
      %s828 = scalar_select %p827, %s16, 1
      %s829 = smul.addr %s828, 8
      %s830 = scalar_lea.vmem %s4, %s829
      // Predicated region
      $region29: #{patch_merging.6} parent=27 // pred_check
        %p831 = pneg %p81
      $region30: #{patch_merging.6} parent=27 // pred_check_branch
        %833 = sbr.rel (%p831) target = $region32
      $region31: #{patch_merging.6} parent=27 // pred_region
        %s834 = smul.u32 32, %s16
      $region32: #{patch_merging.6} parent=27 // pred_fallthru
        _
      // Predicated region
      $region33: #{patch_merging.6} parent=27 // pred_check
        %p835 = pneg %p107
      $region34: #{patch_merging.6} parent=27 // pred_check_branch
        %837 = sbr.rel (%p835) target = $region36
      $region35: #{patch_merging.6} parent=27 // pred_region
        _
      $region36: #{patch_merging.6} parent=27 // pred_fallthru
        _
      // Predicated region
      $region37: #{patch_merging.6} parent=27 // pred_check
        %p838 = pneg %p133
      $region38: #{patch_merging.6} parent=27 // pred_check_branch
        %840 = sbr.rel (%p838) target = $region40
      $region39: #{patch_merging.6} parent=27 // pred_region
        _
      $region40: #{patch_merging.6} parent=27 // pred_fallthru
        _
    $region28: #{patch_merging.6} parent=5 // pred_fallthru
      _
    %p841 = scmp.le.s32.totalorder 2, %s11
    // Predicated region
    $region41: #{patch_merging.6} parent=5 // pred_check
      %p842 = pneg %p841
    $region42: #{patch_merging.6} parent=5 // pred_check_branch
      %844 = sbr.rel (%p842) target = $region44
    $region43: #{patch_merging.6} parent=5 // pred_region
      %s845 = ssub.s32 %s11, 2
      // Predicated region
      $region45: #{patch_merging.6} parent=43 // pred_check
        %p846 = pneg %p87
      $region46: #{patch_merging.6} parent=43 // pred_check_branch
        %848 = sbr.rel (%p846) target = $region48
      $region47: #{patch_merging.6} parent=43 // pred_region
        %s849 = smul.u32 32, %s17
        %p850 = scmp.lt.s32.totalorder %s849, 63
        %s851 = scalar_select %p850, %s849, 63
        %s852 = smul.addr %s851, 4
        %s853 = scalar_lea.vmem %s2, %s852
      $region48: #{patch_merging.6} parent=43 // pred_fallthru
        _
      // Predicated region
      $region49: #{patch_merging.6} parent=43 // pred_check
        %p854 = pneg %p113
      $region50: #{patch_merging.6} parent=43 // pred_check_branch
        %856 = sbr.rel (%p854) target = $region52
      $region51: #{patch_merging.6} parent=43 // pred_region
        %p857 = scmp.lt.s32.totalorder %s17, 1
        %s858 = scalar_select %p857, %s17, 1
        %s859 = smul.addr %s858, 8
        %s860 = scalar_lea.vmem %s3, %s859
      $region52: #{patch_merging.6} parent=43 // pred_fallthru
        _
      // Predicated region
      $region53: #{patch_merging.6} parent=43 // pred_check
        %p861 = pneg %p139
      $region54: #{patch_merging.6} parent=43 // pred_check_branch
        %863 = sbr.rel (%p861) target = $region56
      $region55: #{patch_merging.6} parent=43 // pred_region
        %p864 = scmp.lt.s32.totalorder %s17, 1
        %s865 = scalar_select %p864, %s17, 1
        %s866 = smul.addr %s865, 8
        %s867 = scalar_lea.vmem %s4, %s866
      $region56: #{patch_merging.6} parent=43 // pred_fallthru
        _
    $region44: #{patch_merging.6} parent=5 // pred_fallthru
      _
  $region6: #{patch_merging.6} parent=0 // loop_footer
    %s15 = sadd.s32 1, %s11
  $region7: #{patch_merging.6} parent=0 // loop_footer_branch
    %10 = sbr.rel target = $region3
  $region8: #{patch_merging.6} parent=0 // loop_exit
    _

// kernel: patch_merging.9
$region0: #{patch_merging.9}
  #allocation0 [shape = 'u32[]', space=smem, size = 0x4, offset = 0x4, fixed_abs, tag = 'smem constant byte address 0x4 - core index']
  #allocation1 [shape = 'u32[144,128]{1,0:T(1,128)}', space=vmem, size = 0x12000, scoped, tag = 'internal scratch']
  %s0 = inlined_call_operand.vmem [shape: bf16[2,8,8,128], index: 0, kind: input, shape index: {}]
  %s1 = inlined_call_operand.vmem [shape: f32[1,128], index: 1, kind: input, shape index: {}]
  %s2 = inlined_call_operand.vmem [shape: f32[1,128], index: 2, kind: input, shape index: {}]
  %s3 = inlined_call_operand.vmem [shape: f32[2,8,128], index: 3, kind: output, shape index: {}]
  %s4 = sld [smem:[#allocation0]]
  $region45: #{patch_merging.9} parent=0
    _
  %s6 = ssub.s32 1, %s4
  %s7 = scalar_select 0, %s6, %s4
  loop: start=0, step=1, limit=4
  $region2: #{patch_merging.9} parent=0 // loop_pre_header
    _
  $region3: #{patch_merging.9} parent=0 // loop_header
    %s9 = sphi 0, %s13
    %p10 = scmp.ge.s32.totalorder %s9, 4
    %s19 = sphi 0, %s21
    %s22 = sphi 0, %s19
    %s23 = sphi 0, %s22
    %s39 = sphi 0, %s23
    %s43 = sphi 0, %s43
    %s45 = sphi 0, %s43
    %s46 = sphi 0, %s45
    %s60 = sphi 0, %s46
    %s64 = sphi 0, %s64
    %s66 = sphi 0, %s64
    %s67 = sphi 0, %s66
    %s81 = sphi 0, %s67
    %s87 = sphi 0, %s89
    %s90 = sphi 0, %s87
    %s91 = sphi 0, %s90
    %s107 = sphi 0, %s91
  $region4: #{patch_merging.9} parent=0 // loop_header_branch
    %12 = sbr.rel (%p10) target = $region8
  $region5: #{patch_merging.9} parent=0 // loop_body
    %s14 = ssub.s32 %s9, 1
    %s15 = ssub.s32 %s9, 2
    %s16 = sadd.s32 %s9, 1
    %s17 = ssub.s32 %s9, %s16
    %p18 = scmp.eq.s32.totalorder %s17, 0
    %s20 = sadd.s32 %s19, 1
    %s21 = scalar_select %p18, %s19, %s20
    %p24 = pneg %p18
    %p25 = scmp.eq.s32.totalorder %s9, 1
    %p26 = por %p24, %p25
    %p27 = scmp.ne.s32.totalorder %s19, %s22
    %p28 = scmp.eq.s32.totalorder %s9, 0
    %p29 = por %p27, %p28
    %p30 = scmp.ne.s32.totalorder %s19, %s22
    %p31 = scmp.eq.s32.totalorder %s14, 1
    %p32 = por %p30, %p31
    %p33 = scmp.ne.s32.totalorder %s22, %s23
    %p34 = scmp.eq.s32.totalorder %s14, 0
    %p35 = por %p33, %p34
    %p36 = scmp.ne.s32.totalorder %s22, %s23
    %p37 = scmp.eq.s32.totalorder %s15, 1
    %p38 = por %p36, %p37
    %p40 = scmp.ne.s32.totalorder %s23, %s39
    %p41 = scmp.eq.s32.totalorder %s15, 0
    %p42 = por %p40, %p41
    %s44 = sadd.s32 %s43, 1
    %p47 = scmp.eq.s32.totalorder %s9, 1
    %p48 = scmp.ne.s32.totalorder %s43, %s45
    %p49 = scmp.eq.s32.totalorder %s9, 0
    %p50 = por %p48, %p49
    %p51 = scmp.ne.s32.totalorder %s43, %s45
    %p52 = scmp.eq.s32.totalorder %s14, 1
    %p53 = por %p51, %p52
    %p54 = scmp.ne.s32.totalorder %s45, %s46
    %p55 = scmp.eq.s32.totalorder %s14, 0
    %p56 = por %p54, %p55
    %p57 = scmp.ne.s32.totalorder %s45, %s46
    %p58 = scmp.eq.s32.totalorder %s15, 1
    %p59 = por %p57, %p58
    %p61 = scmp.ne.s32.totalorder %s46, %s60
    %p62 = scmp.eq.s32.totalorder %s15, 0
    %p63 = por %p61, %p62
    %s65 = sadd.s32 %s64, 1
    %p68 = scmp.eq.s32.totalorder %s9, 1
    %p69 = scmp.ne.s32.totalorder %s64, %s66
    %p70 = scmp.eq.s32.totalorder %s9, 0
    %p71 = por %p69, %p70
    %p72 = scmp.ne.s32.totalorder %s64, %s66
    %p73 = scmp.eq.s32.totalorder %s14, 1
    %p74 = por %p72, %p73
    %p75 = scmp.ne.s32.totalorder %s66, %s67
    %p76 = scmp.eq.s32.totalorder %s14, 0
    %p77 = por %p75, %p76
    %p78 = scmp.ne.s32.totalorder %s66, %s67
    %p79 = scmp.eq.s32.totalorder %s15, 1
    %p80 = por %p78, %p79
    %p82 = scmp.ne.s32.totalorder %s67, %s81
    %p83 = scmp.eq.s32.totalorder %s15, 0
    %p84 = por %p82, %p83
    %s85 = ssub.s32 %s9, %s16
    %p86 = scmp.eq.s32.totalorder %s85, 0
    %s88 = sadd.s32 %s87, 1
    %s89 = scalar_select %p86, %s87, %s88
    %p92 = pneg %p86
    %p93 = scmp.eq.s32.totalorder %s9, 1
    %p94 = por %p92, %p93
    %p95 = scmp.ne.s32.totalorder %s87, %s90
    %p96 = scmp.eq.s32.totalorder %s9, 0
    %p97 = por %p95, %p96
    %p98 = scmp.ne.s32.totalorder %s87, %s90
    %p99 = scmp.eq.s32.totalorder %s14, 1
    %p100 = por %p98, %p99
    %p101 = scmp.ne.s32.totalorder %s90, %s91
    %p102 = scmp.eq.s32.totalorder %s14, 0
    %p103 = por %p101, %p102
    %p104 = scmp.ne.s32.totalorder %s90, %s91
    %p105 = scmp.eq.s32.totalorder %s15, 1
    %p106 = por %p104, %p105
    %p108 = scmp.ne.s32.totalorder %s91, %s107
    %p109 = scmp.eq.s32.totalorder %s15, 0
    %p110 = por %p108, %p109
    %p111 = scmp.le.s32.totalorder 1, %s9
    %p112 = scmp.lt.s32.totalorder %s9, 3
    %p113 = pnand %p111, %p112
    %p114 = pneg %p113
    // Predicated region
    $region9: #{patch_merging.9} parent=5 // pred_check
      _
    $region10: #{patch_merging.9} parent=5 // pred_check_branch
      %116 = sbr.rel (%p113) target = $region12
    $region11: #{patch_merging.9} parent=5 // pred_region
      %s117 = ssub.s32 %s9, 1
      // Predicated region
      $region13: #{patch_merging.9} parent=11 // pred_check
        %p118 = pneg %p56
      $region14: #{patch_merging.9} parent=11 // pred_check_branch
        %120 = sbr.rel (%p118) target = $region16
      $region15: #{patch_merging.9} parent=11 // pred_region
        _
      $region16: #{patch_merging.9} parent=11 // pred_fallthru
        _
      // Predicated region
      $region17: #{patch_merging.9} parent=11 // pred_check
        %p121 = pneg %p77
      $region18: #{patch_merging.9} parent=11 // pred_check_branch
        %123 = sbr.rel (%p121) target = $region20
      $region19: #{patch_merging.9} parent=11 // pred_region
        _
      $region20: #{patch_merging.9} parent=11 // pred_fallthru
        _
    $region12: #{patch_merging.9} parent=5 // pred_fallthru
      _
    %p124 = scmp.lt.s32.totalorder %s9, 2
    // Predicated region
    $region21: #{patch_merging.9} parent=5 // pred_check
      %p125 = pneg %p124
    $region22: #{patch_merging.9} parent=5 // pred_check_branch
      %127 = sbr.rel (%p125) target = $region24
    $region23: #{patch_merging.9} parent=5 // pred_region
      // Predicated region
      $region25: #{patch_merging.9} parent=23 // pred_check
        %p128 = pneg %p29
      $region26: #{patch_merging.9} parent=23 // pred_check_branch
        %130 = sbr.rel (%p128) target = $region28
      $region27: #{patch_merging.9} parent=23 // pred_region
        %p131 = scmp.lt.s32.totalorder %s9, 1
        %s132 = scalar_select %p131, %s9, 1
        %s133 = smul.addr %s132, 8
        %s134 = smul.addr %s133, 4
        %s135 = scalar_lea.vmem %s0, %s134
      $region28: #{patch_merging.9} parent=23 // pred_fallthru
        _
    $region24: #{patch_merging.9} parent=5 // pred_fallthru
      _
    %p136 = scmp.le.s32.totalorder 1, %s9
    %p137 = scmp.lt.s32.totalorder %s9, 3
    %p138 = pnand %p136, %p137
    %p139 = pneg %p138
    // Predicated region
    $region29: #{patch_merging.9} parent=5 // pred_check
      _
    $region30: #{patch_merging.9} parent=5 // pred_check_branch
      %141 = sbr.rel (%p138) target = $region32
    $region31: #{patch_merging.9} parent=5 // pred_region
      %s142 = ssub.s32 %s9, 1
      %p143 = scmp.lt.s32.totalorder %s14, 1
      %s144 = scalar_select %p143, %s14, 1
      %s145 = smul.addr %s144, 8
      %s146 = smul.addr %s145, 4
      %s147 = scalar_lea.vmem %s0, %s146
      %p148 = pneg %p35
      %p149 = pneg %p32
      %p150 = pneg %p56
      %p151 = pneg %p53
      %p152 = pneg %p77
      %p153 = pneg %p74
      %p154 = pneg %p103
      %p155 = pneg %p100
      %p156 = scmp.lt.s32.totalorder %s14, 1
      %s157 = scalar_select %p156, %s14, 1
      %s158 = smul.addr %s157, 8
      %s159 = scalar_lea.vmem %s3, %s158
      %p160 = scmp.lt.s32.totalorder %s14, 1
      %s161 = scalar_select %p160, %s14, 1
      %s162 = smul.addr %s161, 8
      %s163 = smul.addr %s162, 4
      %s164 = scalar_lea.vmem %s0, %s163
      %p165 = scmp.lt.s32.totalorder %s14, 1
      %s166 = scalar_select %p165, %s14, 1
      %s167 = smul.addr %s166, 8
      %s168 = scalar_lea.vmem %s3, %s167
      %v169 = vld [vmem:[%s1] sm:$0x1]
      %v170 = vld [vmem:[%s2] sm:$0x1]
      %v171 = vld [vmem:[%s164] sm:$0xf]
      %v172 = vld [vmem:[%s164 + $0x4] sm:$0xf]
      %v173 = vld [vmem:[%s164 + $0x8] sm:$0xf]
      %v174 = vld [vmem:[%s164 + $0xc] sm:$0xf]
      %v175 = vld [vmem:[%s164 + $0x10] sm:$0xf]
      %v176 = vld [vmem:[%s164 + $0x14] sm:$0xf]
      %v177 = vld [vmem:[%s164 + $0x18] sm:$0xf]
      %v178 = vld [vmem:[%s164 + $0x1c] sm:$0xf]
      %v179 = vunpack.c.l.bf16 %v171
      %v180 = vunpack.c.l.bf16 %v172
      %v181 = vunpack.c.l.bf16 %v173
      %v182 = vunpack.c.l.bf16 %v174
      %v183 = vunpack.c.l.bf16 %v175
      %v184 = vunpack.c.l.bf16 %v176
      %v185 = vunpack.c.l.bf16 %v177
      %v186 = vunpack.c.l.bf16 %v178
      %v188 = vlaneseq
      %v189 = vshrl.u32 %v188, 7
      %v190 = vsub.s32 0, %v189
      %v191 = vrot.slane %v169, %v190
      %v193 = vmul.f32 %v179, %v191
      %v194 = vmul.f32 %v180, %v191
      %v195 = vmul.f32 %v181, %v191
      %v196 = vmul.f32 %v182, %v191
      %v197 = vmul.f32 %v183, %v191
      %v198 = vmul.f32 %v184, %v191
      %v199 = vmul.f32 %v185, %v191
      %v200 = vmul.f32 %v186, %v191
      %v202 = vlaneseq
      %v203 = vshrl.u32 %v202, 7
      %v204 = vsub.s32 0, %v203
      %v205 = vrot.slane %v170, %v204
      %v207 = vadd.f32 %v193, %v205
      %v208 = vadd.f32 %v194, %v205
      %v209 = vadd.f32 %v195, %v205
      %v210 = vadd.f32 %v196, %v205
      %v211 = vadd.f32 %v197, %v205
      %v212 = vadd.f32 %v198, %v205
      %v213 = vadd.f32 %v199, %v205
      %v214 = vadd.f32 %v200, %v205
      %v215 = vmax.f32 %v207, 0.0
      %v216 = vmax.f32 %v208, 0.0
      %v217 = vmax.f32 %v209, 0.0
      %v218 = vmax.f32 %v210, 0.0
      %v219 = vmax.f32 %v211, 0.0
      %v220 = vmax.f32 %v212, 0.0
      %v221 = vmax.f32 %v213, 0.0
      %v222 = vmax.f32 %v214, 0.0
      %v223 = vadd.f32 %v215, %v216
      %v224 = vadd.f32 %v223, %v217
      %v225 = vadd.f32 %v224, %v218
      %v226 = vadd.f32 %v225, %v219
      %v227 = vadd.f32 %v226, %v220
      %v228 = vadd.f32 %v227, %v221
      %v229 = vadd.f32 %v228, %v222
      %v230 = vrot.slane %v229, 4
      %v231 = vadd.f32 %v229, %v230
      %v232 = vrot.slane %v231, 2
      %v233 = vadd.f32 %v231, %v232
      %v234 = vrot.slane %v233, 1
      %v235 = vadd.f32 %v233, %v234
      %236 = vst [vmem:[%s168] sm:$0xff] %v235
      %p237 = scmp.lt.s32.totalorder %s14, 1
      %s238 = scalar_select %p237, %s14, 1
      %s239 = smul.addr %s238, 8
      %s240 = scalar_lea.vmem %s3, %s239
      // Predicated region
      $region33: #{patch_merging.9} parent=31 // pred_check
        %p241 = pneg %p100
      $region34: #{patch_merging.9} parent=31 // pred_check_branch
        %243 = sbr.rel (%p241) target = $region36
      $region35: #{patch_merging.9} parent=31 // pred_region
        _
      $region36: #{patch_merging.9} parent=31 // pred_fallthru
        _
    $region32: #{patch_merging.9} parent=5 // pred_fallthru
      _
    %p244 = scmp.le.s32.totalorder 2, %s9
    // Predicated region
    $region37: #{patch_merging.9} parent=5 // pred_check
      %p245 = pneg %p244
    $region38: #{patch_merging.9} parent=5 // pred_check_branch
      %247 = sbr.rel (%p245) target = $region40
    $region39: #{patch_merging.9} parent=5 // pred_region
      %s248 = ssub.s32 %s9, 2
      // Predicated region
      $region41: #{patch_merging.9} parent=39 // pred_check
        %p249 = pneg %p106
      $region42: #{patch_merging.9} parent=39 // pred_check_branch
        %251 = sbr.rel (%p249) target = $region44
      $region43: #{patch_merging.9} parent=39 // pred_region
        %p252 = scmp.lt.s32.totalorder %s15, 1
        %s253 = scalar_select %p252, %s15, 1
        %s254 = smul.addr %s253, 8
        %s255 = scalar_lea.vmem %s3, %s254
      $region44: #{patch_merging.9} parent=39 // pred_fallthru
        _
    $region40: #{patch_merging.9} parent=5 // pred_fallthru
      _
  $region6: #{patch_merging.9} parent=0 // loop_footer
    %s13 = sadd.s32 1, %s9
  $region7: #{patch_merging.9} parent=0 // loop_footer_branch
    %8 = sbr.rel target = $region3
  $region8: #{patch_merging.9} parent=0 // loop_exit
    _

// kernel: patch_merging.11
$region0: #{patch_merging.11}
  #allocation0 [shape = 'u32[]', space=smem, size = 0x4, offset = 0x4, fixed_abs, tag = 'smem constant byte address 0x4 - core index']
  #allocation1 [shape = 'u32[144,128]{1,0:T(1,128)}', space=vmem, size = 0x12000, scoped, tag = 'internal scratch']
  %s0 = inlined_call_operand.vmem [shape: bf16[128,128], index: 0, kind: input, shape index: {}]
  %s1 = inlined_call_operand.vmem [shape: f32[1,128], index: 1, kind: input, shape index: {}]
  %s2 = inlined_call_operand.vmem [shape: f32[1,128], index: 2, kind: input, shape index: {}]
  %s3 = inlined_call_operand.vmem [shape: f32[128,128], index: 3, kind: output, shape index: {}]
  %s4 = sld [smem:[#allocation0]]
  $region22: #{patch_merging.11} parent=0
    _
  %s6 = ssub.s32 1, %s4
  %s7 = scalar_select 0, %s6, %s4
  // Predicated region
  $region2: #{patch_merging.11} parent=0 // pred_check
    _
  $region3: #{patch_merging.11} parent=0 // pred_check_branch
    %9 = sbr.rel (0) target = $region5
  $region4: #{patch_merging.11} parent=0 // pred_region
    _
  $region5: #{patch_merging.11} parent=0 // pred_fallthru
    _
  // Predicated region
  $region6: #{patch_merging.11} parent=0 // pred_check
    _
  $region7: #{patch_merging.11} parent=0 // pred_check_branch
    %11 = sbr.rel (0) target = $region9
  $region8: #{patch_merging.11} parent=0 // pred_region
    _
  $region9: #{patch_merging.11} parent=0 // pred_fallthru
    _
  // Predicated region
  $region10: #{patch_merging.11} parent=0 // pred_check
    _
  $region11: #{patch_merging.11} parent=0 // pred_check_branch
    %13 = sbr.rel (0) target = $region13
  $region12: #{patch_merging.11} parent=0 // pred_region
    _
  $region13: #{patch_merging.11} parent=0 // pred_fallthru
    _
  %v14 = vld [vmem:[%s0] sm:$0xf]
  %v15 = vld [vmem:[%s0 + $0x4] sm:$0xf]
  %v16 = vld [vmem:[%s0 + $0x8] sm:$0xf]
  %v17 = vld [vmem:[%s0 + $0xc] sm:$0xf]
  %v18 = vld [vmem:[%s0 + $0x10] sm:$0xf]
  %v19 = vld [vmem:[%s0 + $0x14] sm:$0xf]
  %v20 = vld [vmem:[%s0 + $0x18] sm:$0xf]
  %v21 = vld [vmem:[%s0 + $0x1c] sm:$0xf]
  %v22 = vld [vmem:[%s0 + $0x20] sm:$0xf]
  %v23 = vld [vmem:[%s0 + $0x24] sm:$0xf]
  %v24 = vld [vmem:[%s0 + $0x28] sm:$0xf]
  %v25 = vld [vmem:[%s0 + $0x2c] sm:$0xf]
  %v26 = vld [vmem:[%s0 + $0x30] sm:$0xf]
  %v27 = vld [vmem:[%s0 + $0x34] sm:$0xf]
  %v28 = vld [vmem:[%s0 + $0x38] sm:$0xf]
  %v29 = vld [vmem:[%s0 + $0x3c] sm:$0xf]
  %v30 = vunpack.c.l.bf16 %v14
  %v31 = vunpack.c.l.bf16 %v15
  %v32 = vunpack.c.l.bf16 %v16
  %v33 = vunpack.c.l.bf16 %v17
  %v34 = vunpack.c.l.bf16 %v18
  %v35 = vunpack.c.l.bf16 %v19
  %v36 = vunpack.c.l.bf16 %v20
  %v37 = vunpack.c.l.bf16 %v21
  %v38 = vunpack.c.l.bf16 %v22
  %v39 = vunpack.c.l.bf16 %v23
  %v40 = vunpack.c.l.bf16 %v24
  %v41 = vunpack.c.l.bf16 %v25
  %v42 = vunpack.c.l.bf16 %v26
  %v43 = vunpack.c.l.bf16 %v27
  %v44 = vunpack.c.l.bf16 %v28
  %v45 = vunpack.c.l.bf16 %v29
  %v46 = vld [vmem:[%s1] sm:$0x1]
  %v48 = vlaneseq
  %v49 = vshrl.u32 %v48, 7
  %v50 = vsub.s32 0, %v49
  %v51 = vrot.slane %v46, %v50
  %v53 = vmul.f32 %v30, %v51
  %v54 = vmul.f32 %v31, %v51
  %v55 = vmul.f32 %v32, %v51
  %v56 = vmul.f32 %v33, %v51
  %v57 = vmul.f32 %v34, %v51
  %v58 = vmul.f32 %v35, %v51
  %v59 = vmul.f32 %v36, %v51
  %v60 = vmul.f32 %v37, %v51
  %v61 = vmul.f32 %v38, %v51
  %v62 = vmul.f32 %v39, %v51
  %v63 = vmul.f32 %v40, %v51
  %v64 = vmul.f32 %v41, %v51
  %v65 = vmul.f32 %v42, %v51
  %v66 = vmul.f32 %v43, %v51
  %v67 = vmul.f32 %v44, %v51
  %v68 = vmul.f32 %v45, %v51
  %v69 = vld [vmem:[%s2] sm:$0x1]
  %v71 = vlaneseq
  %v72 = vshrl.u32 %v71, 7
  %v73 = vsub.s32 0, %v72
  %v74 = vrot.slane %v69, %v73
  %v76 = vadd.f32 %v53, %v74
  %v77 = vadd.f32 %v54, %v74
  %v78 = vadd.f32 %v55, %v74
  %v79 = vadd.f32 %v56, %v74
  %v80 = vadd.f32 %v57, %v74
  %v81 = vadd.f32 %v58, %v74
  %v82 = vadd.f32 %v59, %v74
  %v83 = vadd.f32 %v60, %v74
  %v84 = vadd.f32 %v61, %v74
  %v85 = vadd.f32 %v62, %v74
  %v86 = vadd.f32 %v63, %v74
  %v87 = vadd.f32 %v64, %v74
  %v88 = vadd.f32 %v65, %v74
  %v89 = vadd.f32 %v66, %v74
  %v90 = vadd.f32 %v67, %v74
  %v91 = vadd.f32 %v68, %v74
  %92 = vst [vmem:[%s3] sm:$0xff] %v76
  %93 = vst [vmem:[%s3 + $0x8] sm:$0xff] %v77
  %94 = vst [vmem:[%s3 + $0x10] sm:$0xff] %v78
  %95 = vst [vmem:[%s3 + $0x18] sm:$0xff] %v79
  %96 = vst [vmem:[%s3 + $0x20] sm:$0xff] %v80
  %97 = vst [vmem:[%s3 + $0x28] sm:$0xff] %v81
  %98 = vst [vmem:[%s3 + $0x30] sm:$0xff] %v82
  %99 = vst [vmem:[%s3 + $0x38] sm:$0xff] %v83
  %100 = vst [vmem:[%s3 + $0x40] sm:$0xff] %v84
  %101 = vst [vmem:[%s3 + $0x48] sm:$0xff] %v85
  %102 = vst [vmem:[%s3 + $0x50] sm:$0xff] %v86
  %103 = vst [vmem:[%s3 + $0x58] sm:$0xff] %v87
  %104 = vst [vmem:[%s3 + $0x60] sm:$0xff] %v88
  %105 = vst [vmem:[%s3 + $0x68] sm:$0xff] %v89
  %106 = vst [vmem:[%s3 + $0x70] sm:$0xff] %v90
  %107 = vst [vmem:[%s3 + $0x78] sm:$0xff] %v91
  // Predicated region
  $region14: #{patch_merging.11} parent=0 // pred_check
    _
  $region15: #{patch_merging.11} parent=0 // pred_check_branch
    %109 = sbr.rel (0) target = $region17
  $region16: #{patch_merging.11} parent=0 // pred_region
    _
  $region17: #{patch_merging.11} parent=0 // pred_fallthru
    _
  // Predicated region
  $region18: #{patch_merging.11} parent=0 // pred_check
    _
  $region19: #{patch_merging.11} parent=0 // pred_check_branch
    %111 = sbr.rel (0) target = $region21
  $region20: #{patch_merging.11} parent=0 // pred_region
    _
  $region21: #{patch_merging.11} parent=0 // pred_fallthru
    _

// kernel: patch_merging.10
$region0: #{patch_merging.10}
  #allocation0 [shape = 'u32[]', space=smem, size = 0x4, offset = 0x4, fixed_abs, tag = 'smem constant byte address 0x4 - core index']
  #allocation1 [shape = 'u32[144,128]{1,0:T(1,128)}', space=vmem, size = 0x12000, scoped, tag = 'internal scratch']
  %s0 = inlined_call_operand.vmem [shape: bf16[2,64,128], index: 0, kind: input, shape index: {}]
  %s1 = inlined_call_operand.vmem [shape: f32[1,128], index: 1, kind: input, shape index: {}]
  %s2 = inlined_call_operand.vmem [shape: f32[1,128], index: 2, kind: input, shape index: {}]
  %s3 = inlined_call_operand.vmem [shape: f32[2,1,128], index: 3, kind: input, shape index: {}]
  %s4 = inlined_call_operand.vmem [shape: bf16[128,128], index: 4, kind: input, shape index: {}]
  %s5 = inlined_call_operand.vmem [shape: bf16[2,64,128], index: 5, kind: output, shape index: {0}]
  %s6 = inlined_call_operand.vmem [shape: f32[2,1,8,128], index: 6, kind: output, shape index: {1}]
  %s7 = inlined_call_operand.vmem [shape: f32[2,1,8,128], index: 7, kind: output, shape index: {2}]
  %8 = xla_tuple %s5, %s6, %s7
  %s9 = sld [smem:[#allocation0]]
  $region69: #{patch_merging.10} parent=0
    _
  %s11 = ssub.s32 1, %s9
  %s12 = scalar_select 0, %s11, %s9
  loop: start=0, step=1, limit=4
  $region2: #{patch_merging.10} parent=0 // loop_pre_header
    _
  $region3: #{patch_merging.10} parent=0 // loop_header
    %s14 = sphi 0, %s18
    %p15 = scmp.ge.s32.totalorder %s14, 4
    %s21 = sphi 0, %s33
    %s22 = sphi 0, %s29
    %s23 = sphi 0, %s21
    %s24 = sphi 0, %s22
    %s25 = sphi 0, %s23
    %s26 = sphi 0, %s24
    %s38 = sphi 0, %s40
    %s41 = sphi 0, %s38
    %s42 = sphi 0, %s41
    %s58 = sphi 0, %s42
    %s62 = sphi 0, %s62
    %s64 = sphi 0, %s62
    %s65 = sphi 0, %s64
    %s79 = sphi 0, %s65
    %s83 = sphi 0, %s83
    %s85 = sphi 0, %s83
    %s86 = sphi 0, %s85
    %s100 = sphi 0, %s86
    %s106 = sphi 0, %s108
    %s109 = sphi 0, %s106
    %s110 = sphi 0, %s109
    %s126 = sphi 0, %s110
    %s130 = sphi 0, %s130
    %s132 = sphi 0, %s130
    %s133 = sphi 0, %s132
    %s147 = sphi 0, %s133
    %s155 = sphi 0, %s157
    %s158 = sphi 0, %s155
    %s159 = sphi 0, %s158
    %s175 = sphi 0, %s159
    %s183 = sphi 0, %s185
    %s186 = sphi 0, %s183
    %s187 = sphi 0, %s186
    %s203 = sphi 0, %s187
    %s211 = sphi 0, %s213
    %s214 = sphi 0, %s211
    %s215 = sphi 0, %s214
    %s231 = sphi 0, %s215
  $region4: #{patch_merging.10} parent=0 // loop_header_branch
    %17 = sbr.rel (%p15) target = $region8
  $region5: #{patch_merging.10} parent=0 // loop_body
    %s19 = ssub.s32 %s14, 1
    %s20 = ssub.s32 %s14, 2
    %s27 = sadd.s32 1, %s22
    %p28 = scmp.ge.s32.totalorder %s27, 1
    %s29 = scalar_select %p28, 0, %s27
    %s30 = sadd.s32 1, %s21
    %s31 = scalar_select %p28, %s30, %s21
    %p32 = scmp.ge.s32.totalorder %s31, 2
    %s33 = scalar_select %p32, 0, %s31
    %s34 = ssub.s32 %s21, %s33
    %s35 = ssub.s32 %s22, %s29
    %s36 = sor.u32 %s34, %s35
    %p37 = scmp.eq.s32.totalorder %s36, 0
    %s39 = sadd.s32 %s38, 1
    %s40 = scalar_select %p37, %s38, %s39
    %p43 = pneg %p37
    %p44 = scmp.eq.s32.totalorder %s14, 1
    %p45 = por %p43, %p44
    %p46 = scmp.ne.s32.totalorder %s38, %s41
    %p47 = scmp.eq.s32.totalorder %s14, 0
    %p48 = por %p46, %p47
    %p49 = scmp.ne.s32.totalorder %s38, %s41
    %p50 = scmp.eq.s32.totalorder %s19, 1
    %p51 = por %p49, %p50
    %p52 = scmp.ne.s32.totalorder %s41, %s42
    %p53 = scmp.eq.s32.totalorder %s19, 0
    %p54 = por %p52, %p53
    %p55 = scmp.ne.s32.totalorder %s41, %s42
    %p56 = scmp.eq.s32.totalorder %s20, 1
    %p57 = por %p55, %p56
    %p59 = scmp.ne.s32.totalorder %s42, %s58
    %p60 = scmp.eq.s32.totalorder %s20, 0
    %p61 = por %p59, %p60
    %s63 = sadd.s32 %s62, 1
    %p66 = scmp.eq.s32.totalorder %s14, 1
    %p67 = scmp.ne.s32.totalorder %s62, %s64
    %p68 = scmp.eq.s32.totalorder %s14, 0
    %p69 = por %p67, %p68
    %p70 = scmp.ne.s32.totalorder %s62, %s64
    %p71 = scmp.eq.s32.totalorder %s19, 1
    %p72 = por %p70, %p71
    %p73 = scmp.ne.s32.totalorder %s64, %s65
    %p74 = scmp.eq.s32.totalorder %s19, 0
    %p75 = por %p73, %p74
    %p76 = scmp.ne.s32.totalorder %s64, %s65
    %p77 = scmp.eq.s32.totalorder %s20, 1
    %p78 = por %p76, %p77
    %p80 = scmp.ne.s32.totalorder %s65, %s79
    %p81 = scmp.eq.s32.totalorder %s20, 0
    %p82 = por %p80, %p81
    %s84 = sadd.s32 %s83, 1
    %p87 = scmp.eq.s32.totalorder %s14, 1
    %p88 = scmp.ne.s32.totalorder %s83, %s85
    %p89 = scmp.eq.s32.totalorder %s14, 0
    %p90 = por %p88, %p89
    %p91 = scmp.ne.s32.totalorder %s83, %s85
    %p92 = scmp.eq.s32.totalorder %s19, 1
    %p93 = por %p91, %p92
    %p94 = scmp.ne.s32.totalorder %s85, %s86
    %p95 = scmp.eq.s32.totalorder %s19, 0
    %p96 = por %p94, %p95
    %p97 = scmp.ne.s32.totalorder %s85, %s86
    %p98 = scmp.eq.s32.totalorder %s20, 1
    %p99 = por %p97, %p98
    %p101 = scmp.ne.s32.totalorder %s86, %s100
    %p102 = scmp.eq.s32.totalorder %s20, 0
    %p103 = por %p101, %p102
    %s104 = ssub.s32 %s21, %s33
    %p105 = scmp.eq.s32.totalorder %s104, 0
    %s107 = sadd.s32 %s106, 1
    %s108 = scalar_select %p105, %s106, %s107
    %p111 = pneg %p105
    %p112 = scmp.eq.s32.totalorder %s14, 1
    %p113 = por %p111, %p112
    %p114 = scmp.ne.s32.totalorder %s106, %s109
    %p115 = scmp.eq.s32.totalorder %s14, 0
    %p116 = por %p114, %p115
    %p117 = scmp.ne.s32.totalorder %s106, %s109
    %p118 = scmp.eq.s32.totalorder %s19, 1
    %p119 = por %p117, %p118
    %p120 = scmp.ne.s32.totalorder %s109, %s110
    %p121 = scmp.eq.s32.totalorder %s19, 0
    %p122 = por %p120, %p121
    %p123 = scmp.ne.s32.totalorder %s109, %s110
    %p124 = scmp.eq.s32.totalorder %s20, 1
    %p125 = por %p123, %p124
    %p127 = scmp.ne.s32.totalorder %s110, %s126
    %p128 = scmp.eq.s32.totalorder %s20, 0
    %p129 = por %p127, %p128
    %s131 = sadd.s32 %s130, 1
    %p134 = scmp.eq.s32.totalorder %s14, 1
    %p135 = scmp.ne.s32.totalorder %s130, %s132
    %p136 = scmp.eq.s32.totalorder %s14, 0
    %p137 = por %p135, %p136
    %p138 = scmp.ne.s32.totalorder %s130, %s132
    %p139 = scmp.eq.s32.totalorder %s19, 1
    %p140 = por %p138, %p139
    %p141 = scmp.ne.s32.totalorder %s132, %s133
    %p142 = scmp.eq.s32.totalorder %s19, 0
    %p143 = por %p141, %p142
    %p144 = scmp.ne.s32.totalorder %s132, %s133
    %p145 = scmp.eq.s32.totalorder %s20, 1
    %p146 = por %p144, %p145
    %p148 = scmp.ne.s32.totalorder %s133, %s147
    %p149 = scmp.eq.s32.totalorder %s20, 0
    %p150 = por %p148, %p149
    %s151 = ssub.s32 %s21, %s33
    %s152 = ssub.s32 %s22, %s29
    %s153 = sor.u32 %s151, %s152
    %p154 = scmp.eq.s32.totalorder %s153, 0
    %s156 = sadd.s32 %s155, 1
    %s157 = scalar_select %p154, %s155, %s156
    %p160 = pneg %p154
    %p161 = scmp.eq.s32.totalorder %s14, 1
    %p162 = por %p160, %p161
    %p163 = scmp.ne.s32.totalorder %s155, %s158
    %p164 = scmp.eq.s32.totalorder %s14, 0
    %p165 = por %p163, %p164
    %p166 = scmp.ne.s32.totalorder %s155, %s158
    %p167 = scmp.eq.s32.totalorder %s19, 1
    %p168 = por %p166, %p167
    %p169 = scmp.ne.s32.totalorder %s158, %s159
    %p170 = scmp.eq.s32.totalorder %s19, 0
    %p171 = por %p169, %p170
    %p172 = scmp.ne.s32.totalorder %s158, %s159
    %p173 = scmp.eq.s32.totalorder %s20, 1
    %p174 = por %p172, %p173
    %p176 = scmp.ne.s32.totalorder %s159, %s175
    %p177 = scmp.eq.s32.totalorder %s20, 0
    %p178 = por %p176, %p177
    %s179 = ssub.s32 %s21, %s33
    %s180 = ssub.s32 %s22, %s29
    %s181 = sor.u32 %s179, %s180
    %p182 = scmp.eq.s32.totalorder %s181, 0
    %s184 = sadd.s32 %s183, 1
    %s185 = scalar_select %p182, %s183, %s184
    %p188 = pneg %p182
    %p189 = scmp.eq.s32.totalorder %s14, 1
    %p190 = por %p188, %p189
    %p191 = scmp.ne.s32.totalorder %s183, %s186
    %p192 = scmp.eq.s32.totalorder %s14, 0
    %p193 = por %p191, %p192
    %p194 = scmp.ne.s32.totalorder %s183, %s186
    %p195 = scmp.eq.s32.totalorder %s19, 1
    %p196 = por %p194, %p195
    %p197 = scmp.ne.s32.totalorder %s186, %s187
    %p198 = scmp.eq.s32.totalorder %s19, 0
    %p199 = por %p197, %p198
    %p200 = scmp.ne.s32.totalorder %s186, %s187
    %p201 = scmp.eq.s32.totalorder %s20, 1
    %p202 = por %p200, %p201
    %p204 = scmp.ne.s32.totalorder %s187, %s203
    %p205 = scmp.eq.s32.totalorder %s20, 0
    %p206 = por %p204, %p205
    %s207 = ssub.s32 %s21, %s33
    %s208 = ssub.s32 %s22, %s29
    %s209 = sor.u32 %s207, %s208
    %p210 = scmp.eq.s32.totalorder %s209, 0
    %s212 = sadd.s32 %s211, 1
    %s213 = scalar_select %p210, %s211, %s212
    %p216 = pneg %p210
    %p217 = scmp.eq.s32.totalorder %s14, 1
    %p218 = por %p216, %p217
    %p219 = scmp.ne.s32.totalorder %s211, %s214
    %p220 = scmp.eq.s32.totalorder %s14, 0
    %p221 = por %p219, %p220
    %p222 = scmp.ne.s32.totalorder %s211, %s214
    %p223 = scmp.eq.s32.totalorder %s19, 1
    %p224 = por %p222, %p223
    %p225 = scmp.ne.s32.totalorder %s214, %s215
    %p226 = scmp.eq.s32.totalorder %s19, 0
    %p227 = por %p225, %p226
    %p228 = scmp.ne.s32.totalorder %s214, %s215
    %p229 = scmp.eq.s32.totalorder %s20, 1
    %p230 = por %p228, %p229
    %p232 = scmp.ne.s32.totalorder %s215, %s231
    %p233 = scmp.eq.s32.totalorder %s20, 0
    %p234 = por %p232, %p233
    %p235 = scmp.le.s32.totalorder 1, %s14
    %p236 = scmp.lt.s32.totalorder %s14, 3
    %p237 = pnand %p235, %p236
    %p238 = pneg %p237
    // Predicated region
    $region9: #{patch_merging.10} parent=5 // pred_check
      _
    $region10: #{patch_merging.10} parent=5 // pred_check_branch
      %240 = sbr.rel (%p237) target = $region12
    $region11: #{patch_merging.10} parent=5 // pred_region
      %s241 = ssub.s32 %s14, 1
      // Predicated region
      $region13: #{patch_merging.10} parent=11 // pred_check
        %p242 = pneg %p75
      $region14: #{patch_merging.10} parent=11 // pred_check_branch
        %244 = sbr.rel (%p242) target = $region16
      $region15: #{patch_merging.10} parent=11 // pred_region
        _
      $region16: #{patch_merging.10} parent=11 // pred_fallthru
        _
      // Predicated region
      $region17: #{patch_merging.10} parent=11 // pred_check
        %p245 = pneg %p96
      $region18: #{patch_merging.10} parent=11 // pred_check_branch
        %247 = sbr.rel (%p245) target = $region20
      $region19: #{patch_merging.10} parent=11 // pred_region
        _
      $region20: #{patch_merging.10} parent=11 // pred_fallthru
        _
      // Predicated region
      $region21: #{patch_merging.10} parent=11 // pred_check
        %p248 = pneg %p143
      $region22: #{patch_merging.10} parent=11 // pred_check_branch
        %250 = sbr.rel (%p248) target = $region24
      $region23: #{patch_merging.10} parent=11 // pred_region
        _
      $region24: #{patch_merging.10} parent=11 // pred_fallthru
        _
    $region12: #{patch_merging.10} parent=5 // pred_fallthru
      _
    %p251 = scmp.lt.s32.totalorder %s14, 2
    // Predicated region
    $region25: #{patch_merging.10} parent=5 // pred_check
      %p252 = pneg %p251
    $region26: #{patch_merging.10} parent=5 // pred_check_branch
      %254 = sbr.rel (%p252) target = $region28
    $region27: #{patch_merging.10} parent=5 // pred_region
      // Predicated region
      $region29: #{patch_merging.10} parent=27 // pred_check
        %p255 = pneg %p48
      $region30: #{patch_merging.10} parent=27 // pred_check_branch
        %257 = sbr.rel (%p255) target = $region32
      $region31: #{patch_merging.10} parent=27 // pred_region
        %s258 = smul.u32 8, %s22
        %p259 = scmp.lt.s32.totalorder %s21, 1
        %s260 = scalar_select %p259, %s21, 1
        %p261 = scmp.lt.s32.totalorder %s258, 7
        %s262 = scalar_select %p261, %s258, 7
        %s263 = smul.addr %s260, 8
        %s264 = sadd.s32 %s262, %s263
        %s265 = smul.addr %s264, 4
        %s266 = scalar_lea.vmem %s0, %s265
        %s267 = smul.u32 8, %s22
      $region32: #{patch_merging.10} parent=27 // pred_fallthru
        _
      // Predicated region
      $region33: #{patch_merging.10} parent=27 // pred_check
        %p268 = pneg %p116
      $region34: #{patch_merging.10} parent=27 // pred_check_branch
        %270 = sbr.rel (%p268) target = $region36
      $region35: #{patch_merging.10} parent=27 // pred_region
        %p271 = scmp.lt.s32.totalorder %s21, 1
        %s272 = scalar_select %p271, %s21, 1
        %s273 = scalar_lea.vmem %s3, %s272
      $region36: #{patch_merging.10} parent=27 // pred_fallthru
        _
    $region28: #{patch_merging.10} parent=5 // pred_fallthru
      _
    %p274 = scmp.le.s32.totalorder 1, %s14
    %p275 = scmp.lt.s32.totalorder %s14, 3
    %p276 = pnand %p274, %p275
    %p277 = pneg %p276
    // Predicated region
    $region37: #{patch_merging.10} parent=5 // pred_check
      _
    $region38: #{patch_merging.10} parent=5 // pred_check_branch
      %279 = sbr.rel (%p276) target = $region40
    $region39: #{patch_merging.10} parent=5 // pred_region
      %s280 = ssub.s32 %s14, 1
      %s281 = smul.u32 8, %s24
      %p282 = scmp.lt.s32.totalorder %s23, 1
      %s283 = scalar_select %p282, %s23, 1
      %p284 = scmp.lt.s32.totalorder %s281, 7
      %s285 = scalar_select %p284, %s281, 7
      %s286 = smul.addr %s283, 8
      %s287 = sadd.s32 %s285, %s286
      %s288 = smul.addr %s287, 4
      %s289 = scalar_lea.vmem %s0, %s288
      %p290 = pneg %p54
      %p291 = pneg %p51
      %p292 = pneg %p75
      %p293 = pneg %p72
      %p294 = pneg %p96
      %p295 = pneg %p93
      %p296 = scmp.lt.s32.totalorder %s23, 1
      %s297 = scalar_select %p296, %s23, 1
      %s298 = scalar_lea.vmem %s3, %s297
      %p299 = pneg %p122
      %p300 = pneg %p119
      %p301 = pneg %p143
      %p302 = pneg %p140
      %p303 = pneg %p171
      %p304 = pneg %p168
      %s305 = smul.u32 8, %s24
      %p306 = scmp.lt.s32.totalorder %s23, 1
      %s307 = scalar_select %p306, %s23, 1
      %p308 = scmp.lt.s32.totalorder %s305, 7
      %s309 = scalar_select %p308, %s305, 7
      %s310 = smul.addr %s307, 8
      %s311 = sadd.s32 %s309, %s310
      %s312 = smul.addr %s311, 4
      %s313 = scalar_lea.vmem %s5, %s312
      %p314 = pneg %p199
      %p315 = pneg %p196
      %p316 = scmp.lt.s32.totalorder %s23, 1
      %s317 = scalar_select %p316, %s23, 1
      %p318 = scmp.lt.s32.totalorder %s24, 0
      %s319 = scalar_select %p318, %s24, 0
      %s320 = sadd.s32 %s319, %s317
      %s321 = smul.addr %s320, 8
      %s322 = scalar_lea.vmem %s6, %s321
      %p323 = pneg %p227
      %p324 = pneg %p224
      %p325 = scmp.lt.s32.totalorder %s23, 1
      %s326 = scalar_select %p325, %s23, 1
      %p327 = scmp.lt.s32.totalorder %s24, 0
      %s328 = scalar_select %p327, %s24, 0
      %s329 = sadd.s32 %s328, %s326
      %s330 = smul.addr %s329, 8
      %s331 = scalar_lea.vmem %s7, %s330
      %s332 = smul.u32 8, %s24
      %p333 = scmp.lt.s32.totalorder %s23, 1
      %s334 = scalar_select %p333, %s23, 1
      %p335 = scmp.lt.s32.totalorder %s332, 7
      %s336 = scalar_select %p335, %s332, 7
      %s337 = smul.addr %s334, 8
      %s338 = sadd.s32 %s336, %s337
      %s339 = smul.addr %s338, 4
      %s340 = scalar_lea.vmem %s0, %s339
      %s341 = smul.u32 8, %s24
      %p342 = scmp.lt.s32.totalorder %s23, 1
      %s343 = scalar_select %p342, %s23, 1
      %s344 = scalar_lea.vmem %s3, %s343
      %s345 = smul.u32 8, %s24
      %p346 = scmp.lt.s32.totalorder %s23, 1
      %s347 = scalar_select %p346, %s23, 1
      %p348 = scmp.lt.s32.totalorder %s345, 7
      %s349 = scalar_select %p348, %s345, 7
      %s350 = smul.addr %s347, 8
      %s351 = sadd.s32 %s349, %s350
      %s352 = smul.addr %s351, 4
      %s353 = scalar_lea.vmem %s5, %s352
      %s354 = smul.u32 8, %s24
      %p355 = scmp.lt.s32.totalorder %s23, 1
      %s356 = scalar_select %p355, %s23, 1
      %p357 = scmp.lt.s32.totalorder %s24, 0
      %s358 = scalar_select %p357, %s24, 0
      %s359 = sadd.s32 %s358, %s356
      %s360 = smul.addr %s359, 8
      %s361 = scalar_lea.vmem %s6, %s360
      %p362 = scmp.lt.s32.totalorder %s23, 1
      %s363 = scalar_select %p362, %s23, 1
      %p364 = scmp.lt.s32.totalorder %s24, 0
      %s365 = scalar_select %p364, %s24, 0
      %s366 = sadd.s32 %s365, %s363
      %s367 = smul.addr %s366, 8
      %s368 = scalar_lea.vmem %s7, %s367
      %v370 = vld [vmem:[%s340] sm:$0xf]
      %v371 = vld [vmem:[%s340 + $0x4] sm:$0xf]
      %v372 = vld [vmem:[%s340 + $0x8] sm:$0xf]
      %v373 = vld [vmem:[%s340 + $0xc] sm:$0xf]
      %v374 = vld [vmem:[%s340 + $0x10] sm:$0xf]
      %v375 = vld [vmem:[%s340 + $0x14] sm:$0xf]
      %v376 = vld [vmem:[%s340 + $0x18] sm:$0xf]
      %v377 = vld [vmem:[%s340 + $0x1c] sm:$0xf]
      %v378 = vunpack.c.l.bf16 %v370
      %v379 = vunpack.c.l.bf16 %v371
      %v380 = vunpack.c.l.bf16 %v372
      %v381 = vunpack.c.l.bf16 %v373
      %v382 = vunpack.c.l.bf16 %v374
      %v383 = vunpack.c.l.bf16 %v375
      %v384 = vunpack.c.l.bf16 %v376
      %v385 = vunpack.c.l.bf16 %v377
      %v386 = vld [vmem:[%s1] sm:$0x1]
      %v388 = vlaneseq
      %v389 = vshrl.u32 %v388, 7
      %v390 = vsub.s32 0, %v389
      %v391 = vrot.slane %v386, %v390
      %v393 = vmul.f32 %v378, %v391
      %v394 = vmul.f32 %v379, %v391
      %v395 = vmul.f32 %v380, %v391
      %v396 = vmul.f32 %v381, %v391
      %v397 = vmul.f32 %v382, %v391
      %v398 = vmul.f32 %v383, %v391
      %v399 = vmul.f32 %v384, %v391
      %v400 = vmul.f32 %v385, %v391
      %v401 = vld [vmem:[%s2] sm:$0x1]
      %v403 = vlaneseq
      %v404 = vshrl.u32 %v403, 7
      %v405 = vsub.s32 0, %v404
      %v406 = vrot.slane %v401, %v405
      %v408 = vadd.f32 %v393, %v406
      %v409 = vadd.f32 %v394, %v406
      %v410 = vadd.f32 %v395, %v406
      %v411 = vadd.f32 %v396, %v406
      %v412 = vadd.f32 %v397, %v406
      %v413 = vadd.f32 %v398, %v406
      %v414 = vadd.f32 %v399, %v406
      %v415 = vadd.f32 %v400, %v406
      %v416 = vmax.f32 %v408, 0.0
      %v417 = vmax.f32 %v409, 0.0
      %v418 = vmax.f32 %v410, 0.0
      %v419 = vmax.f32 %v411, 0.0
      %v420 = vmax.f32 %v412, 0.0
      %v421 = vmax.f32 %v413, 0.0
      %v422 = vmax.f32 %v414, 0.0
      %v423 = vmax.f32 %v415, 0.0
      %v424 = vld [vmem:[%s344] sm:$0x1]
      %v426 = vlaneseq
      %v427 = vshrl.u32 %v426, 7
      %v428 = vsub.s32 0, %v427
      %v429 = vrot.slane %v424, %v428
      %v431 = vmul.f32 %v416, %v429
      %v432 = vmul.f32 %v417, %v429
      %v433 = vmul.f32 %v418, %v429
      %v434 = vmul.f32 %v419, %v429
      %v435 = vmul.f32 %v420, %v429
      %v436 = vmul.f32 %v421, %v429
      %v437 = vmul.f32 %v422, %v429
      %v438 = vmul.f32 %v423, %v429
      %v439 = vpack.c.bf16 %v432, %v431
      %v440 = vpack.c.bf16 %v434, %v433
      %v441 = vpack.c.bf16 %v436, %v435
      %v442 = vpack.c.bf16 %v438, %v437
      %v443 = vld [vmem:[%s4] sm:$0xf]
      %v444 = vld [vmem:[%s4 + $0x4] sm:$0xf]
      %v445 = vld [vmem:[%s4 + $0x8] sm:$0xf]
      %v446 = vld [vmem:[%s4 + $0xc] sm:$0xf]
      %v447 = vld [vmem:[%s4 + $0x10] sm:$0xf]
      %v448 = vld [vmem:[%s4 + $0x14] sm:$0xf]
      %v449 = vld [vmem:[%s4 + $0x18] sm:$0xf]
      %v450 = vld [vmem:[%s4 + $0x1c] sm:$0xf]
      %v451 = vld [vmem:[%s4 + $0x20] sm:$0xf]
      %v452 = vld [vmem:[%s4 + $0x24] sm:$0xf]
      %v453 = vld [vmem:[%s4 + $0x28] sm:$0xf]
      %v454 = vld [vmem:[%s4 + $0x2c] sm:$0xf]
      %v455 = vld [vmem:[%s4 + $0x30] sm:$0xf]
      %v456 = vld [vmem:[%s4 + $0x34] sm:$0xf]
      %v457 = vld [vmem:[%s4 + $0x38] sm:$0xf]
      %v458 = vld [vmem:[%s4 + $0x3c] sm:$0xf]
      %v475 = vunpack.c.l.b16 %v443
      %v476 = vunpack.c.l.b16 %v444
      %v477 = vunpack.c.l.b16 %v445
      %v478 = vunpack.c.l.b16 %v446
      %v479 = vunpack.c.l.b16 %v447
      %v480 = vunpack.c.l.b16 %v448
      %v481 = vunpack.c.l.b16 %v449
      %v482 = vunpack.c.l.b16 %v450
      %v483 = vunpack.c.l.b16 %v451
      %v484 = vunpack.c.l.b16 %v452
      %v485 = vunpack.c.l.b16 %v453
      %v486 = vunpack.c.l.b16 %v454
      %v487 = vunpack.c.l.b16 %v455
      %v488 = vunpack.c.l.b16 %v456
      %v489 = vunpack.c.l.b16 %v457
      %v490 = vunpack.c.l.b16 %v458
      %v491 = vpack.c.b16 %v476, %v475
      %v492 = vpack.c.b16 %v478, %v477
      %v493 = vpack.c.b16 %v480, %v479
      %v494 = vpack.c.b16 %v482, %v481
      %v495 = vpack.c.b16 %v484, %v483
      %v496 = vpack.c.b16 %v486, %v485
      %v497 = vpack.c.b16 %v488, %v487
      %v498 = vpack.c.b16 %v490, %v489
      %507 = vmatprep.subr.bf16.mxu0 0
      %508 = vmatpush1.bf16.msra.mxu0 %v491
      %509 = vmatprep.subr.bf16.mxu0 0
      %510 = vmatpush1.bf16.msra.mxu0 %v492
      %511 = vmatprep.subr.bf16.mxu0 0
      %512 = vmatpush1.bf16.msra.mxu0 %v493
      %513 = vmatprep.subr.bf16.mxu0 0
      %514 = vmatpush1.bf16.msra.mxu0 %v494
      %515 = vmatprep.subr.bf16.mxu0 0
      %516 = vmatpush1.bf16.msra.mxu0 %v495
      %517 = vmatprep.subr.bf16.mxu0 0
      %518 = vmatpush1.bf16.msra.mxu0 %v496
      %519 = vmatprep.subr.bf16.mxu0 0
      %520 = vmatpush1.bf16.msra.mxu0 %v497
      %521 = vmatprep.subr.bf16.mxu0 0
      %522 = vmatpush1.bf16.msra.mxu0 %v498
      %523 = vmatprep.subr.bf16.mxu0 0
      %524 = vmatpush1.bf16.msra.mxu0 0
      %525 = vmatprep.subr.bf16.mxu0 0
      %526 = vmatpush1.bf16.msra.mxu0 0
      %527 = vmatprep.subr.bf16.mxu0 0
      %528 = vmatpush1.bf16.msra.mxu0 0
      %529 = vmatprep.subr.bf16.mxu0 0
      %530 = vmatpush1.bf16.msra.mxu0 0
      %531 = vmatprep.subr.bf16.mxu0 0
      %532 = vmatpush1.bf16.msra.mxu0 0
      %533 = vmatprep.subr.bf16.mxu0 0
      %534 = vmatpush1.bf16.msra.mxu0 0
      %535 = vmatprep.subr.bf16.mxu0 0
      %536 = vmatpush1.bf16.msra.mxu0 0
      %537 = vmatprep.subr.bf16.mxu0 0
      %538 = vmatpush1.bf16.msra.mxu0 0
      %539 = vmatprep.mubr.bf16.mxu0 0
      %540 = vmatmul.mubr.bf16.gmra.mrb[0].mxu0 %v439
      %v541 = vpop.f32.mrb[0].mxu0
      %v542 = vadd.f32 0.0, %v541
      %v543 = vpop.f32.mrb[0].mxu0
      %v544 = vpop.f32.mrb[0].mxu0
      %v545 = vadd.f32 0.0, %v544
      %v546 = vpop.f32.mrb[0].mxu0
      %547 = vmatprep.mubr.bf16.mxu0 0
      %548 = vmatmul.mubr.bf16.gmra.mrb[0].mxu0 %v440
      %v549 = vpop.f32.mrb[0].mxu0
      %v550 = vadd.f32 0.0, %v549
      %v551 = vpop.f32.mrb[0].mxu0
      %v552 = vpop.f32.mrb[0].mxu0
      %v553 = vadd.f32 0.0, %v552
      %v554 = vpop.f32.mrb[0].mxu0
      %555 = vmatprep.mubr.bf16.mxu0 0
      %556 = vmatmul.mubr.bf16.gmra.mrb[0].mxu0 %v441
      %v557 = vpop.f32.mrb[0].mxu0
      %v558 = vadd.f32 0.0, %v557
      %v559 = vpop.f32.mrb[0].mxu0
      %v560 = vpop.f32.mrb[0].mxu0
      %v561 = vadd.f32 0.0, %v560
      %v562 = vpop.f32.mrb[0].mxu0
      %563 = vmatprep.mubr.bf16.mxu0 0
      %564 = vmatmul.mubr.bf16.gmra.mrb[0].mxu0 %v442
      %v565 = vpop.f32.mrb[0].mxu0
      %v566 = vadd.f32 0.0, %v565
      %v567 = vpop.f32.mrb[0].mxu0
      %v568 = vpop.f32.mrb[0].mxu0
      %v569 = vadd.f32 0.0, %v568
      %v570 = vpop.f32.mrb[0].mxu0
      %571 = vdwg.mxu0
      %v572 = vpack.c.bf16 %v545, %v542
      %v573 = vpack.c.bf16 %v553, %v550
      %v574 = vpack.c.bf16 %v561, %v558
      %v575 = vpack.c.bf16 %v569, %v566
      %v580 = vunpack.c.l.b16 %v572
      %v581 = vunpack.c.h.b16 %v572
      %v582 = vunpack.c.l.b16 %v573
      %v583 = vunpack.c.h.b16 %v573
      %v584 = vunpack.c.l.b16 %v574
      %v585 = vunpack.c.h.b16 %v574
      %v586 = vunpack.c.l.b16 %v575
      %v587 = vunpack.c.h.b16 %v575
      %v588 = vpack.c.b16 %v580, %v580
      %v589 = vpack.c.b16 %v581, %v581
      %v590 = vpack.c.b16 %v582, %v582
      %v591 = vpack.c.b16 %v583, %v583
      %v592 = vpack.c.b16 %v584, %v584
      %v593 = vpack.c.b16 %v585, %v585
      %v594 = vpack.c.b16 %v586, %v586
      %v595 = vpack.c.b16 %v587, %v587
      %604 = vst [vmem:[%s353] sm:$0xf] %v588
      %605 = vst [vmem:[%s353 + $0x4] sm:$0xf] %v589
      %606 = vst [vmem:[%s353 + $0x8] sm:$0xf] %v590
      %607 = vst [vmem:[%s353 + $0xc] sm:$0xf] %v591
      %608 = vst [vmem:[%s353 + $0x10] sm:$0xf] %v592
      %609 = vst [vmem:[%s353 + $0x14] sm:$0xf] %v593
      %610 = vst [vmem:[%s353 + $0x18] sm:$0xf] %v594
      %611 = vst [vmem:[%s353 + $0x1c] sm:$0xf] %v595
      %v612 = vadd.f32 %v542, %v545
      %v613 = vadd.f32 %v612, %v550
      %v614 = vadd.f32 %v613, %v553
      %v615 = vadd.f32 %v614, %v558
      %v616 = vadd.f32 %v615, %v561
      %v617 = vadd.f32 %v616, %v566
      %v618 = vadd.f32 %v617, %v569
      %v619 = vrot.slane %v618, 4
      %v620 = vadd.f32 %v618, %v619
      %v621 = vrot.slane %v620, 2
      %v622 = vadd.f32 %v620, %v621
      %v623 = vrot.slane %v622, 1
      %v624 = vadd.f32 %v622, %v623
      %v625 = vmul.f32 %v542, %v542
      %v626 = vmul.f32 %v545, %v545
      %v627 = vmul.f32 %v550, %v550
      %v628 = vmul.f32 %v553, %v553
      %v629 = vmul.f32 %v558, %v558
      %v630 = vmul.f32 %v561, %v561
      %v631 = vmul.f32 %v566, %v566
      %v632 = vmul.f32 %v569, %v569
      %v633 = vadd.f32 %v625, %v626
      %v634 = vadd.f32 %v633, %v627
      %v635 = vadd.f32 %v634, %v628
      %v636 = vadd.f32 %v635, %v629
      %v637 = vadd.f32 %v636, %v630
      %v638 = vadd.f32 %v637, %v631
      %v639 = vadd.f32 %v638, %v632
      %v640 = vrot.slane %v639, 4
      %v641 = vadd.f32 %v639, %v640
      %v642 = vrot.slane %v641, 2
      %v643 = vadd.f32 %v641, %v642
      %v644 = vrot.slane %v643, 1
      %v645 = vadd.f32 %v643, %v644
      %646 = vst [vmem:[%s361] sm:$0xff] %v624
      %647 = vst [vmem:[%s368] sm:$0xff] %v645
      %s648 = smul.u32 8, %s24
      %p649 = scmp.lt.s32.totalorder %s23, 1
      %s650 = scalar_select %p649, %s23, 1
      %p651 = scmp.lt.s32.totalorder %s648, 7
      %s652 = scalar_select %p651, %s648, 7
      %s653 = smul.addr %s650, 8
      %s654 = sadd.s32 %s652, %s653
      %s655 = smul.addr %s654, 4
      %s656 = scalar_lea.vmem %s5, %s655
      %p657 = scmp.lt.s32.totalorder %s23, 1
      %s658 = scalar_select %p657, %s23, 1
      %p659 = scmp.lt.s32.totalorder %s24, 0
      %s660 = scalar_select %p659, %s24, 0
      %s661 = sadd.s32 %s660, %s658
      %s662 = smul.addr %s661, 8
      %s663 = scalar_lea.vmem %s6, %s662
      %p664 = scmp.lt.s32.totalorder %s23, 1
      %s665 = scalar_select %p664, %s23, 1
      %p666 = scmp.lt.s32.totalorder %s24, 0
      %s667 = scalar_select %p666, %s24, 0
      %s668 = sadd.s32 %s667, %s665
      %s669 = smul.addr %s668, 8
      %s670 = scalar_lea.vmem %s7, %s669
      // Predicated region
      $region41: #{patch_merging.10} parent=39 // pred_check
        %p671 = pneg %p168
      $region42: #{patch_merging.10} parent=39 // pred_check_branch
        %673 = sbr.rel (%p671) target = $region44
      $region43: #{patch_merging.10} parent=39 // pred_region
        %s674 = smul.u32 8, %s24
      $region44: #{patch_merging.10} parent=39 // pred_fallthru
        _
      // Predicated region
      $region45: #{patch_merging.10} parent=39 // pred_check
        %p675 = pneg %p196
      $region46: #{patch_merging.10} parent=39 // pred_check_branch
        %677 = sbr.rel (%p675) target = $region48
      $region47: #{patch_merging.10} parent=39 // pred_region
        _
      $region48: #{patch_merging.10} parent=39 // pred_fallthru
        _
      // Predicated region
      $region49: #{patch_merging.10} parent=39 // pred_check
        %p678 = pneg %p224
      $region50: #{patch_merging.10} parent=39 // pred_check_branch
        %680 = sbr.rel (%p678) target = $region52
      $region51: #{patch_merging.10} parent=39 // pred_region
        _
      $region52: #{patch_merging.10} parent=39 // pred_fallthru
        _
    $region40: #{patch_merging.10} parent=5 // pred_fallthru
      _
    %p681 = scmp.le.s32.totalorder 2, %s14
    // Predicated region
    $region53: #{patch_merging.10} parent=5 // pred_check
      %p682 = pneg %p681
    $region54: #{patch_merging.10} parent=5 // pred_check_branch
      %684 = sbr.rel (%p682) target = $region56
    $region55: #{patch_merging.10} parent=5 // pred_region
      %s685 = ssub.s32 %s14, 2
      // Predicated region
      $region57: #{patch_merging.10} parent=55 // pred_check
        %p686 = pneg %p174
      $region58: #{patch_merging.10} parent=55 // pred_check_branch
        %688 = sbr.rel (%p686) target = $region60
      $region59: #{patch_merging.10} parent=55 // pred_region
        %s689 = smul.u32 8, %s26
        %p690 = scmp.lt.s32.totalorder %s25, 1
        %s691 = scalar_select %p690, %s25, 1
        %p692 = scmp.lt.s32.totalorder %s689, 7
        %s693 = scalar_select %p692, %s689, 7
        %s694 = smul.addr %s691, 8
        %s695 = sadd.s32 %s693, %s694
        %s696 = smul.addr %s695, 4
        %s697 = scalar_lea.vmem %s5, %s696
      $region60: #{patch_merging.10} parent=55 // pred_fallthru
        _
      // Predicated region
      $region61: #{patch_merging.10} parent=55 // pred_check
        %p698 = pneg %p202
      $region62: #{patch_merging.10} parent=55 // pred_check_branch
        %700 = sbr.rel (%p698) target = $region64
      $region63: #{patch_merging.10} parent=55 // pred_region
        %p701 = scmp.lt.s32.totalorder %s25, 1
        %s702 = scalar_select %p701, %s25, 1
        %p703 = scmp.lt.s32.totalorder %s26, 0
        %s704 = scalar_select %p703, %s26, 0
        %s705 = sadd.s32 %s704, %s702
        %s706 = smul.addr %s705, 8
        %s707 = scalar_lea.vmem %s6, %s706
      $region64: #{patch_merging.10} parent=55 // pred_fallthru
        _
      // Predicated region
      $region65: #{patch_merging.10} parent=55 // pred_check
        %p708 = pneg %p230
      $region66: #{patch_merging.10} parent=55 // pred_check_branch
        %710 = sbr.rel (%p708) target = $region68
      $region67: #{patch_merging.10} parent=55 // pred_region
        %p711 = scmp.lt.s32.totalorder %s25, 1
        %s712 = scalar_select %p711, %s25, 1
        %p713 = scmp.lt.s32.totalorder %s26, 0
        %s714 = scalar_select %p713, %s26, 0
        %s715 = sadd.s32 %s714, %s712
        %s716 = smul.addr %s715, 8
        %s717 = scalar_lea.vmem %s7, %s716
      $region68: #{patch_merging.10} parent=55 // pred_fallthru
        _
    $region56: #{patch_merging.10} parent=5 // pred_fallthru
      _
  $region6: #{patch_merging.10} parent=0 // loop_footer
    %s18 = sadd.s32 1, %s14
  $region7: #{patch_merging.10} parent=0 // loop_footer_branch
    %13 = sbr.rel target = $region3
  $region8: #{patch_merging.10} parent=0 // loop_exit
    _

// kernel: patch_merging.8
$region0: #{patch_merging.8}
  #allocation0 [shape = 'u32[]', space=smem, size = 0x4, offset = 0x4, fixed_abs, tag = 'smem constant byte address 0x4 - core index']
  #allocation1 [shape = 'u32[144,128]{1,0:T(1,128)}', space=vmem, size = 0x12000, scoped, tag = 'internal scratch']
  %s0 = inlined_call_operand.vmem [shape: bf16[2,9,9,128], index: 0, kind: input, shape index: {}]
  %s1 = inlined_call_operand.vmem [shape: bf16[2,9,9,128], index: 1, kind: input, shape index: {}]
  %s2 = inlined_call_operand.vmem [shape: bf16[2,9,9,128], index: 2, kind: input, shape index: {}]
  %s3 = inlined_call_operand.vmem [shape: bf16[2,9,9,128], index: 3, kind: input, shape index: {}]
  %s4 = inlined_call_operand.vmem [shape: f32[9,128], index: 4, kind: input, shape index: {}]
  %s5 = inlined_call_operand.vmem [shape: bf16[2,8,8,128], index: 5, kind: output, shape index: {0}]
  %s6 = inlined_call_operand.vmem [shape: f32[2,8,128], index: 6, kind: output, shape index: {1}]
  %s7 = inlined_call_operand.vmem [shape: f32[2,8,128], index: 7, kind: output, shape index: {2}]
  %8 = xla_tuple %s5, %s6, %s7
  %s9 = sld [smem:[#allocation0]]
  $region69: #{patch_merging.8} parent=0
    _
  %s11 = ssub.s32 1, %s9
  %s12 = scalar_select 0, %s11, %s9
  loop: start=0, step=1, limit=4
  $region2: #{patch_merging.8} parent=0 // loop_pre_header
    _
  $region3: #{patch_merging.8} parent=0 // loop_header
    %s14 = sphi 0, %s18
    %p15 = scmp.ge.s32.totalorder %s14, 4
    %s24 = sphi 0, %s26
    %s27 = sphi 0, %s24
    %s28 = sphi 0, %s27
    %s44 = sphi 0, %s28
    %s50 = sphi 0, %s52
    %s53 = sphi 0, %s50
    %s54 = sphi 0, %s53
    %s70 = sphi 0, %s54
    %s76 = sphi 0, %s78
    %s79 = sphi 0, %s76
    %s80 = sphi 0, %s79
    %s96 = sphi 0, %s80
    %s102 = sphi 0, %s104
    %s105 = sphi 0, %s102
    %s106 = sphi 0, %s105
    %s122 = sphi 0, %s106
    %s126 = sphi 0, %s126
    %s128 = sphi 0, %s126
    %s129 = sphi 0, %s128
    %s143 = sphi 0, %s129
    %s149 = sphi 0, %s151
    %s152 = sphi 0, %s149
    %s153 = sphi 0, %s152
    %s169 = sphi 0, %s153
    %s175 = sphi 0, %s177
    %s178 = sphi 0, %s175
    %s179 = sphi 0, %s178
    %s195 = sphi 0, %s179
    %s201 = sphi 0, %s203
    %s204 = sphi 0, %s201
    %s205 = sphi 0, %s204
    %s221 = sphi 0, %s205
  $region4: #{patch_merging.8} parent=0 // loop_header_branch
    %17 = sbr.rel (%p15) target = $region8
  $region5: #{patch_merging.8} parent=0 // loop_body
    %s19 = ssub.s32 %s14, 1
    %s20 = ssub.s32 %s14, 2
    %s21 = sadd.s32 %s14, 1
    %s22 = ssub.s32 %s14, %s21
    %p23 = scmp.eq.s32.totalorder %s22, 0
    %s25 = sadd.s32 %s24, 1
    %s26 = scalar_select %p23, %s24, %s25
    %p29 = pneg %p23
    %p30 = scmp.eq.s32.totalorder %s14, 1
    %p31 = por %p29, %p30
    %p32 = scmp.ne.s32.totalorder %s24, %s27
    %p33 = scmp.eq.s32.totalorder %s14, 0
    %p34 = por %p32, %p33
    %p35 = scmp.ne.s32.totalorder %s24, %s27
    %p36 = scmp.eq.s32.totalorder %s19, 1
    %p37 = por %p35, %p36
    %p38 = scmp.ne.s32.totalorder %s27, %s28
    %p39 = scmp.eq.s32.totalorder %s19, 0
    %p40 = por %p38, %p39
    %p41 = scmp.ne.s32.totalorder %s27, %s28
    %p42 = scmp.eq.s32.totalorder %s20, 1
    %p43 = por %p41, %p42
    %p45 = scmp.ne.s32.totalorder %s28, %s44
    %p46 = scmp.eq.s32.totalorder %s20, 0
    %p47 = por %p45, %p46
    %s48 = ssub.s32 %s14, %s21
    %p49 = scmp.eq.s32.totalorder %s48, 0
    %s51 = sadd.s32 %s50, 1
    %s52 = scalar_select %p49, %s50, %s51
    %p55 = pneg %p49
    %p56 = scmp.eq.s32.totalorder %s14, 1
    %p57 = por %p55, %p56
    %p58 = scmp.ne.s32.totalorder %s50, %s53
    %p59 = scmp.eq.s32.totalorder %s14, 0
    %p60 = por %p58, %p59
    %p61 = scmp.ne.s32.totalorder %s50, %s53
    %p62 = scmp.eq.s32.totalorder %s19, 1
    %p63 = por %p61, %p62
    %p64 = scmp.ne.s32.totalorder %s53, %s54
    %p65 = scmp.eq.s32.totalorder %s19, 0
    %p66 = por %p64, %p65
    %p67 = scmp.ne.s32.totalorder %s53, %s54
    %p68 = scmp.eq.s32.totalorder %s20, 1
    %p69 = por %p67, %p68
    %p71 = scmp.ne.s32.totalorder %s54, %s70
    %p72 = scmp.eq.s32.totalorder %s20, 0
    %p73 = por %p71, %p72
    %s74 = ssub.s32 %s14, %s21
    %p75 = scmp.eq.s32.totalorder %s74, 0
    %s77 = sadd.s32 %s76, 1
    %s78 = scalar_select %p75, %s76, %s77
    %p81 = pneg %p75
    %p82 = scmp.eq.s32.totalorder %s14, 1
    %p83 = por %p81, %p82
    %p84 = scmp.ne.s32.totalorder %s76, %s79
    %p85 = scmp.eq.s32.totalorder %s14, 0
    %p86 = por %p84, %p85
    %p87 = scmp.ne.s32.totalorder %s76, %s79
    %p88 = scmp.eq.s32.totalorder %s19, 1
    %p89 = por %p87, %p88
    %p90 = scmp.ne.s32.totalorder %s79, %s80
    %p91 = scmp.eq.s32.totalorder %s19, 0
    %p92 = por %p90, %p91
    %p93 = scmp.ne.s32.totalorder %s79, %s80
    %p94 = scmp.eq.s32.totalorder %s20, 1
    %p95 = por %p93, %p94
    %p97 = scmp.ne.s32.totalorder %s80, %s96
    %p98 = scmp.eq.s32.totalorder %s20, 0
    %p99 = por %p97, %p98
    %s100 = ssub.s32 %s14, %s21
    %p101 = scmp.eq.s32.totalorder %s100, 0
    %s103 = sadd.s32 %s102, 1
    %s104 = scalar_select %p101, %s102, %s103
    %p107 = pneg %p101
    %p108 = scmp.eq.s32.totalorder %s14, 1
    %p109 = por %p107, %p108
    %p110 = scmp.ne.s32.totalorder %s102, %s105
    %p111 = scmp.eq.s32.totalorder %s14, 0
    %p112 = por %p110, %p111
    %p113 = scmp.ne.s32.totalorder %s102, %s105
    %p114 = scmp.eq.s32.totalorder %s19, 1
    %p115 = por %p113, %p114
    %p116 = scmp.ne.s32.totalorder %s105, %s106
    %p117 = scmp.eq.s32.totalorder %s19, 0
    %p118 = por %p116, %p117
    %p119 = scmp.ne.s32.totalorder %s105, %s106
    %p120 = scmp.eq.s32.totalorder %s20, 1
    %p121 = por %p119, %p120
    %p123 = scmp.ne.s32.totalorder %s106, %s122
    %p124 = scmp.eq.s32.totalorder %s20, 0
    %p125 = por %p123, %p124
    %s127 = sadd.s32 %s126, 1
    %p130 = scmp.eq.s32.totalorder %s14, 1
    %p131 = scmp.ne.s32.totalorder %s126, %s128
    %p132 = scmp.eq.s32.totalorder %s14, 0
    %p133 = por %p131, %p132
    %p134 = scmp.ne.s32.totalorder %s126, %s128
    %p135 = scmp.eq.s32.totalorder %s19, 1
    %p136 = por %p134, %p135
    %p137 = scmp.ne.s32.totalorder %s128, %s129
    %p138 = scmp.eq.s32.totalorder %s19, 0
    %p139 = por %p137, %p138
    %p140 = scmp.ne.s32.totalorder %s128, %s129
    %p141 = scmp.eq.s32.totalorder %s20, 1
    %p142 = por %p140, %p141
    %p144 = scmp.ne.s32.totalorder %s129, %s143
    %p145 = scmp.eq.s32.totalorder %s20, 0
    %p146 = por %p144, %p145
    %s147 = ssub.s32 %s14, %s21
    %p148 = scmp.eq.s32.totalorder %s147, 0
    %s150 = sadd.s32 %s149, 1
    %s151 = scalar_select %p148, %s149, %s150
    %p154 = pneg %p148
    %p155 = scmp.eq.s32.totalorder %s14, 1
    %p156 = por %p154, %p155
    %p157 = scmp.ne.s32.totalorder %s149, %s152
    %p158 = scmp.eq.s32.totalorder %s14, 0
    %p159 = por %p157, %p158
    %p160 = scmp.ne.s32.totalorder %s149, %s152
    %p161 = scmp.eq.s32.totalorder %s19, 1
    %p162 = por %p160, %p161
    %p163 = scmp.ne.s32.totalorder %s152, %s153
    %p164 = scmp.eq.s32.totalorder %s19, 0
    %p165 = por %p163, %p164
    %p166 = scmp.ne.s32.totalorder %s152, %s153
    %p167 = scmp.eq.s32.totalorder %s20, 1
    %p168 = por %p166, %p167
    %p170 = scmp.ne.s32.totalorder %s153, %s169
    %p171 = scmp.eq.s32.totalorder %s20, 0
    %p172 = por %p170, %p171
    %s173 = ssub.s32 %s14, %s21
    %p174 = scmp.eq.s32.totalorder %s173, 0
    %s176 = sadd.s32 %s175, 1
    %s177 = scalar_select %p174, %s175, %s176
    %p180 = pneg %p174
    %p181 = scmp.eq.s32.totalorder %s14, 1
    %p182 = por %p180, %p181
    %p183 = scmp.ne.s32.totalorder %s175, %s178
    %p184 = scmp.eq.s32.totalorder %s14, 0
    %p185 = por %p183, %p184
    %p186 = scmp.ne.s32.totalorder %s175, %s178
    %p187 = scmp.eq.s32.totalorder %s19, 1
    %p188 = por %p186, %p187
    %p189 = scmp.ne.s32.totalorder %s178, %s179
    %p190 = scmp.eq.s32.totalorder %s19, 0
    %p191 = por %p189, %p190
    %p192 = scmp.ne.s32.totalorder %s178, %s179
    %p193 = scmp.eq.s32.totalorder %s20, 1
    %p194 = por %p192, %p193
    %p196 = scmp.ne.s32.totalorder %s179, %s195
    %p197 = scmp.eq.s32.totalorder %s20, 0
    %p198 = por %p196, %p197
    %s199 = ssub.s32 %s14, %s21
    %p200 = scmp.eq.s32.totalorder %s199, 0
    %s202 = sadd.s32 %s201, 1
    %s203 = scalar_select %p200, %s201, %s202
    %p206 = pneg %p200
    %p207 = scmp.eq.s32.totalorder %s14, 1
    %p208 = por %p206, %p207
    %p209 = scmp.ne.s32.totalorder %s201, %s204
    %p210 = scmp.eq.s32.totalorder %s14, 0
    %p211 = por %p209, %p210
    %p212 = scmp.ne.s32.totalorder %s201, %s204
    %p213 = scmp.eq.s32.totalorder %s19, 1
    %p214 = por %p212, %p213
    %p215 = scmp.ne.s32.totalorder %s204, %s205
    %p216 = scmp.eq.s32.totalorder %s19, 0
    %p217 = por %p215, %p216
    %p218 = scmp.ne.s32.totalorder %s204, %s205
    %p219 = scmp.eq.s32.totalorder %s20, 1
    %p220 = por %p218, %p219
    %p222 = scmp.ne.s32.totalorder %s205, %s221
    %p223 = scmp.eq.s32.totalorder %s20, 0
    %p224 = por %p222, %p223
    %p225 = scmp.le.s32.totalorder 1, %s14
    %p226 = scmp.lt.s32.totalorder %s14, 3
    %p227 = pnand %p225, %p226
    %p228 = pneg %p227
    // Predicated region
    $region9: #{patch_merging.8} parent=5 // pred_check
      _
    $region10: #{patch_merging.8} parent=5 // pred_check_branch
      %230 = sbr.rel (%p227) target = $region12
    $region11: #{patch_merging.8} parent=5 // pred_region
      %s231 = ssub.s32 %s14, 1
      // Predicated region
      $region13: #{patch_merging.8} parent=11 // pred_check
        %p232 = pneg %p139
      $region14: #{patch_merging.8} parent=11 // pred_check_branch
        %234 = sbr.rel (%p232) target = $region16
      $region15: #{patch_merging.8} parent=11 // pred_region
        _
      $region16: #{patch_merging.8} parent=11 // pred_fallthru
        _
    $region12: #{patch_merging.8} parent=5 // pred_fallthru
      _
    %p235 = scmp.lt.s32.totalorder %s14, 2
    // Predicated region
    $region17: #{patch_merging.8} parent=5 // pred_check
      %p236 = pneg %p235
    $region18: #{patch_merging.8} parent=5 // pred_check_branch
      %238 = sbr.rel (%p236) target = $region20
    $region19: #{patch_merging.8} parent=5 // pred_region
      // Predicated region
      $region21: #{patch_merging.8} parent=19 // pred_check
        %p239 = pneg %p34
      $region22: #{patch_merging.8} parent=19 // pred_check_branch
        %241 = sbr.rel (%p239) target = $region24
      $region23: #{patch_merging.8} parent=19 // pred_region
        %p242 = scmp.lt.s32.totalorder %s14, 1
        %s243 = scalar_select %p242, %s14, 1
        %s244 = smul.addr %s243, 18
        %s245 = smul.addr %s244, 4
        %s246 = scalar_lea.vmem %s0, %s245
      $region24: #{patch_merging.8} parent=19 // pred_fallthru
        _
      // Predicated region
      $region25: #{patch_merging.8} parent=19 // pred_check
        %p247 = pneg %p60
      $region26: #{patch_merging.8} parent=19 // pred_check_branch
        %249 = sbr.rel (%p247) target = $region28
      $region27: #{patch_merging.8} parent=19 // pred_region
        %p250 = scmp.lt.s32.totalorder %s14, 1
        %s251 = scalar_select %p250, %s14, 1
        %s252 = smul.addr %s251, 18
        %s253 = smul.addr %s252, 4
        %s254 = scalar_lea.vmem %s1, %s253
      $region28: #{patch_merging.8} parent=19 // pred_fallthru
        _
      // Predicated region
      $region29: #{patch_merging.8} parent=19 // pred_check
        %p255 = pneg %p86
      $region30: #{patch_merging.8} parent=19 // pred_check_branch
        %257 = sbr.rel (%p255) target = $region32
      $region31: #{patch_merging.8} parent=19 // pred_region
        %p258 = scmp.lt.s32.totalorder %s14, 1
        %s259 = scalar_select %p258, %s14, 1
        %s260 = smul.addr %s259, 18
        %s261 = smul.addr %s260, 4
        %s262 = scalar_lea.vmem %s2, %s261
      $region32: #{patch_merging.8} parent=19 // pred_fallthru
        _
      // Predicated region
      $region33: #{patch_merging.8} parent=19 // pred_check
        %p263 = pneg %p112
      $region34: #{patch_merging.8} parent=19 // pred_check_branch
        %265 = sbr.rel (%p263) target = $region36
      $region35: #{patch_merging.8} parent=19 // pred_region
        %p266 = scmp.lt.s32.totalorder %s14, 1
        %s267 = scalar_select %p266, %s14, 1
        %s268 = smul.addr %s267, 18
        %s269 = smul.addr %s268, 4
        %s270 = scalar_lea.vmem %s3, %s269
      $region36: #{patch_merging.8} parent=19 // pred_fallthru
        _
    $region20: #{patch_merging.8} parent=5 // pred_fallthru
      _
    %p271 = scmp.le.s32.totalorder 1, %s14
    %p272 = scmp.lt.s32.totalorder %s14, 3
    %p273 = pnand %p271, %p272
    %p274 = pneg %p273
    // Predicated region
    $region37: #{patch_merging.8} parent=5 // pred_check
      _
    $region38: #{patch_merging.8} parent=5 // pred_check_branch
      %276 = sbr.rel (%p273) target = $region40
    $region39: #{patch_merging.8} parent=5 // pred_region
      %s277 = ssub.s32 %s14, 1
      %p278 = scmp.lt.s32.totalorder %s19, 1
      %s279 = scalar_select %p278, %s19, 1
      %s280 = smul.addr %s279, 18
      %s281 = smul.addr %s280, 4
      %s282 = scalar_lea.vmem %s0, %s281
      %p283 = pneg %p40
      %p284 = pneg %p37
      %p285 = scmp.lt.s32.totalorder %s19, 1
      %s286 = scalar_select %p285, %s19, 1
      %s287 = smul.addr %s286, 18
      %s288 = smul.addr %s287, 4
      %s289 = scalar_lea.vmem %s1, %s288
      %p290 = pneg %p66
      %p291 = pneg %p63
      %p292 = scmp.lt.s32.totalorder %s19, 1
      %s293 = scalar_select %p292, %s19, 1
      %s294 = smul.addr %s293, 18
      %s295 = smul.addr %s294, 4
      %s296 = scalar_lea.vmem %s2, %s295
      %p297 = pneg %p92
      %p298 = pneg %p89
      %p299 = scmp.lt.s32.totalorder %s19, 1
      %s300 = scalar_select %p299, %s19, 1
      %s301 = smul.addr %s300, 18
      %s302 = smul.addr %s301, 4
      %s303 = scalar_lea.vmem %s3, %s302
      %p304 = pneg %p118
      %p305 = pneg %p115
      %p306 = pneg %p139
      %p307 = pneg %p136
      %p308 = pneg %p165
      %p309 = pneg %p162
      %p310 = scmp.lt.s32.totalorder %s19, 1
      %s311 = scalar_select %p310, %s19, 1
      %s312 = smul.addr %s311, 8
      %s313 = smul.addr %s312, 4
      %s314 = scalar_lea.vmem %s5, %s313
      %p315 = pneg %p191
      %p316 = pneg %p188
      %p317 = scmp.lt.s32.totalorder %s19, 1
      %s318 = scalar_select %p317, %s19, 1
      %s319 = smul.addr %s318, 8
      %s320 = scalar_lea.vmem %s6, %s319
      %p321 = pneg %p217
      %p322 = pneg %p214
      %p323 = scmp.lt.s32.totalorder %s19, 1
      %s324 = scalar_select %p323, %s19, 1
      %s325 = smul.addr %s324, 8
      %s326 = scalar_lea.vmem %s7, %s325
      %p327 = scmp.lt.s32.totalorder %s19, 1
      %s328 = scalar_select %p327, %s19, 1
      %s329 = smul.addr %s328, 18
      %s330 = smul.addr %s329, 4
      %s331 = scalar_lea.vmem %s0, %s330
      %p332 = scmp.lt.s32.totalorder %s19, 1
      %s333 = scalar_select %p332, %s19, 1
      %s334 = smul.addr %s333, 18
      %s335 = smul.addr %s334, 4
      %s336 = scalar_lea.vmem %s1, %s335
      %p337 = scmp.lt.s32.totalorder %s19, 1
      %s338 = scalar_select %p337, %s19, 1
      %s339 = smul.addr %s338, 18
      %s340 = smul.addr %s339, 4
      %s341 = scalar_lea.vmem %s2, %s340
      %p342 = scmp.lt.s32.totalorder %s19, 1
      %s343 = scalar_select %p342, %s19, 1
      %s344 = smul.addr %s343, 18
      %s345 = smul.addr %s344, 4
      %s346 = scalar_lea.vmem %s3, %s345
      %p347 = scmp.lt.s32.totalorder %s19, 1
      %s348 = scalar_select %p347, %s19, 1
      %s349 = smul.addr %s348, 8
      %s350 = smul.addr %s349, 4
      %s351 = scalar_lea.vmem %s5, %s350
      %p352 = scmp.lt.s32.totalorder %s19, 1
      %s353 = scalar_select %p352, %s19, 1
      %s354 = smul.addr %s353, 8
      %s355 = scalar_lea.vmem %s6, %s354
      %p356 = scmp.lt.s32.totalorder %s19, 1
      %s357 = scalar_select %p356, %s19, 1
      %s358 = smul.addr %s357, 8
      %s359 = scalar_lea.vmem %s7, %s358
      %v360 = vld [vmem:[%s331] sm:$0xf]
      %v361 = vld [vmem:[%s331 + $0x8] sm:$0xf]
      %v362 = vld [vmem:[%s331 + $0x10] sm:$0xf]
      %v363 = vld [vmem:[%s331 + $0x18] sm:$0xf]
      %v364 = vld [vmem:[%s331 + $0x20] sm:$0xf]
      %v365 = vld [vmem:[%s331 + $0x28] sm:$0xf]
      %v366 = vld [vmem:[%s331 + $0x30] sm:$0xf]
      %v367 = vld [vmem:[%s331 + $0x38] sm:$0xf]
      %v368 = vunpack.c.l.bf16 %v360
      %v369 = vunpack.c.l.bf16 %v361
      %v370 = vunpack.c.l.bf16 %v362
      %v371 = vunpack.c.l.bf16 %v363
      %v372 = vunpack.c.l.bf16 %v364
      %v373 = vunpack.c.l.bf16 %v365
      %v374 = vunpack.c.l.bf16 %v366
      %v375 = vunpack.c.l.bf16 %v367
      %v376 = vld [vmem:[%s4] sm:$0x1]
      %v377 = vlaneseq
      %v378 = vshrl.u32 %v377, 7
      %v379 = vsub.s32 0, %v378
      %v380 = vrot.slane %v376, %v379
      %v381 = vmul.f32 %v368, %v380
      %v382 = vmul.f32 %v369, %v380
      %v383 = vmul.f32 %v370, %v380
      %v384 = vmul.f32 %v371, %v380
      %v385 = vmul.f32 %v372, %v380
      %v386 = vmul.f32 %v373, %v380
      %v387 = vmul.f32 %v374, %v380
      %v388 = vmul.f32 %v375, %v380
      %v389 = vadd.f32 %v381, 0.0
      %v390 = vadd.f32 %v382, 0.0
      %v391 = vadd.f32 %v383, 0.0
      %v392 = vadd.f32 %v384, 0.0
      %v393 = vadd.f32 %v385, 0.0
      %v394 = vadd.f32 %v386, 0.0
      %v395 = vadd.f32 %v387, 0.0
      %v396 = vadd.f32 %v388, 0.0
      %v397 = vld [vmem:[%s336] sm:$0xf]
      %v398 = vld [vmem:[%s336 + $0x8] sm:$0xf]
      %v399 = vld [vmem:[%s336 + $0x10] sm:$0xf]
      %v400 = vld [vmem:[%s336 + $0x18] sm:$0xf]
      %v401 = vld [vmem:[%s336 + $0x20] sm:$0xf]
      %v402 = vld [vmem:[%s336 + $0x28] sm:$0xf]
      %v403 = vld [vmem:[%s336 + $0x30] sm:$0xf]
      %v404 = vld [vmem:[%s336 + $0x38] sm:$0xf]
      %v405 = vunpack.c.l.bf16 %v397
      %v406 = vunpack.c.l.bf16 %v398
      %v407 = vunpack.c.l.bf16 %v399
      %v408 = vunpack.c.l.bf16 %v400
      %v409 = vunpack.c.l.bf16 %v401
      %v410 = vunpack.c.l.bf16 %v402
      %v411 = vunpack.c.l.bf16 %v403
      %v412 = vunpack.c.l.bf16 %v404
      %v413 = vld [vmem:[%s4 + $0x1] sm:$0x1]
      %v414 = vlaneseq
      %v415 = vshrl.u32 %v414, 7
      %v416 = vsub.s32 0, %v415
      %v417 = vrot.slane %v413, %v416
      %v418 = vmul.f32 %v405, %v417
      %v419 = vmul.f32 %v406, %v417
      %v420 = vmul.f32 %v407, %v417
      %v421 = vmul.f32 %v408, %v417
      %v422 = vmul.f32 %v409, %v417
      %v423 = vmul.f32 %v410, %v417
      %v424 = vmul.f32 %v411, %v417
      %v425 = vmul.f32 %v412, %v417
      %v426 = vadd.f32 %v389, %v418
      %v427 = vadd.f32 %v390, %v419
      %v428 = vadd.f32 %v391, %v420
      %v429 = vadd.f32 %v392, %v421
      %v430 = vadd.f32 %v393, %v422
      %v431 = vadd.f32 %v394, %v423
      %v432 = vadd.f32 %v395, %v424
      %v433 = vadd.f32 %v396, %v425
      %v434 = vld [vmem:[%s331 + $0x4] sm:$0x1]
      %v435 = vld [vmem:[%s331 + $0xc] sm:$0x1]
      %v436 = vld [vmem:[%s331 + $0x14] sm:$0x1]
      %v437 = vld [vmem:[%s331 + $0x1c] sm:$0x1]
      %v438 = vld [vmem:[%s331 + $0x24] sm:$0x1]
      %v439 = vld [vmem:[%s331 + $0x2c] sm:$0x1]
      %v440 = vld [vmem:[%s331 + $0x34] sm:$0x1]
      %v441 = vld [vmem:[%s331 + $0x3c] sm:$0x1]
      %v442 = vunpack.c.l.bf16 %v434
      %v443 = vunpack.c.l.bf16 %v435
      %v444 = vunpack.c.l.bf16 %v436
      %v445 = vunpack.c.l.bf16 %v437
      %v446 = vunpack.c.l.bf16 %v438
      %v447 = vunpack.c.l.bf16 %v439
      %v448 = vunpack.c.l.bf16 %v440
      %v449 = vunpack.c.l.bf16 %v441
      %v450 = vld [vmem:[%s4 + $0x2] sm:$0x1]
      %v451 = vlaneseq
      %v452 = vshrl.u32 %v451, 7
      %v453 = vsub.s32 0, %v452
      %v454 = vrot.slane %v450, %v453
      %v455 = vmul.f32 %v368, %v454
      %v456 = vmul.f32 %v442, %v454
      %v457 = vmul.f32 %v369, %v454
      %v458 = vmul.f32 %v443, %v454
      %v459 = vmul.f32 %v370, %v454
      %v460 = vmul.f32 %v444, %v454
      %v461 = vmul.f32 %v371, %v454
      %v462 = vmul.f32 %v445, %v454
      %v463 = vmul.f32 %v372, %v454
      %v464 = vmul.f32 %v446, %v454
      %v465 = vmul.f32 %v373, %v454
      %v466 = vmul.f32 %v447, %v454
      %v467 = vmul.f32 %v374, %v454
      %v468 = vmul.f32 %v448, %v454
      %v469 = vmul.f32 %v375, %v454
      %v470 = vmul.f32 %v449, %v454
      %vm487 = vcmask 1046528
      %v488 = vrot.slane %v455, 1
      %v489 = vrot.slane %v456, 1
      %v490 = vsel %vm487, %v488, %v489
      %v491 = vrot.slane %v457, 1
      %v492 = vrot.slane %v458, 1
      %v493 = vsel %vm487, %v491, %v492
      %v494 = vrot.slane %v459, 1
      %v495 = vrot.slane %v460, 1
      %v496 = vsel %vm487, %v494, %v495
      %v497 = vrot.slane %v461, 1
      %v498 = vrot.slane %v462, 1
      %v499 = vsel %vm487, %v497, %v498
      %v500 = vrot.slane %v463, 1
      %v501 = vrot.slane %v464, 1
      %v502 = vsel %vm487, %v500, %v501
      %v503 = vrot.slane %v465, 1
      %v504 = vrot.slane %v466, 1
      %v505 = vsel %vm487, %v503, %v504
      %v506 = vrot.slane %v467, 1
      %v507 = vrot.slane %v468, 1
      %v508 = vsel %vm487, %v506, %v507
      %v509 = vrot.slane %v469, 1
      %v510 = vrot.slane %v470, 1
      %v511 = vsel %vm487, %v509, %v510
      %v520 = vadd.f32 %v426, %v490
      %v521 = vadd.f32 %v427, %v493
      %v522 = vadd.f32 %v428, %v496
      %v523 = vadd.f32 %v429, %v499
      %v524 = vadd.f32 %v430, %v502
      %v525 = vadd.f32 %v431, %v505
      %v526 = vadd.f32 %v432, %v508
      %v527 = vadd.f32 %v433, %v511
      %v528 = vld [vmem:[%s341] sm:$0xf]
      %v529 = vld [vmem:[%s341 + $0x8] sm:$0xf]
      %v530 = vld [vmem:[%s341 + $0x10] sm:$0xf]
      %v531 = vld [vmem:[%s341 + $0x18] sm:$0xf]
      %v532 = vld [vmem:[%s341 + $0x20] sm:$0xf]
      %v533 = vld [vmem:[%s341 + $0x28] sm:$0xf]
      %v534 = vld [vmem:[%s341 + $0x30] sm:$0xf]
      %v535 = vld [vmem:[%s341 + $0x38] sm:$0xf]
      %v536 = vunpack.c.l.bf16 %v528
      %v537 = vunpack.c.l.bf16 %v529
      %v538 = vunpack.c.l.bf16 %v530
      %v539 = vunpack.c.l.bf16 %v531
      %v540 = vunpack.c.l.bf16 %v532
      %v541 = vunpack.c.l.bf16 %v533
      %v542 = vunpack.c.l.bf16 %v534
      %v543 = vunpack.c.l.bf16 %v535
      %v544 = vld [vmem:[%s4 + $0x3] sm:$0x1]
      %v545 = vlaneseq
      %v546 = vshrl.u32 %v545, 7
      %v547 = vsub.s32 0, %v546
      %v548 = vrot.slane %v544, %v547
      %v549 = vmul.f32 %v536, %v548
      %v550 = vmul.f32 %v537, %v548
      %v551 = vmul.f32 %v538, %v548
      %v552 = vmul.f32 %v539, %v548
      %v553 = vmul.f32 %v540, %v548
      %v554 = vmul.f32 %v541, %v548
      %v555 = vmul.f32 %v542, %v548
      %v556 = vmul.f32 %v543, %v548
      %v557 = vadd.f32 %v520, %v549
      %v558 = vadd.f32 %v521, %v550
      %v559 = vadd.f32 %v522, %v551
      %v560 = vadd.f32 %v523, %v552
      %v561 = vadd.f32 %v524, %v553
      %v562 = vadd.f32 %v525, %v554
      %v563 = vadd.f32 %v526, %v555
      %v564 = vadd.f32 %v527, %v556
      %v565 = vld [vmem:[%s346] sm:$0xf]
      %v566 = vld [vmem:[%s346 + $0x8] sm:$0xf]
      %v567 = vld [vmem:[%s346 + $0x10] sm:$0xf]
      %v568 = vld [vmem:[%s346 + $0x18] sm:$0xf]
      %v569 = vld [vmem:[%s346 + $0x20] sm:$0xf]
      %v570 = vld [vmem:[%s346 + $0x28] sm:$0xf]
      %v571 = vld [vmem:[%s346 + $0x30] sm:$0xf]
      %v572 = vld [vmem:[%s346 + $0x38] sm:$0xf]
      %v573 = vunpack.c.l.bf16 %v565
      %v574 = vunpack.c.l.bf16 %v566
      %v575 = vunpack.c.l.bf16 %v567
      %v576 = vunpack.c.l.bf16 %v568
      %v577 = vunpack.c.l.bf16 %v569
      %v578 = vunpack.c.l.bf16 %v570
      %v579 = vunpack.c.l.bf16 %v571
      %v580 = vunpack.c.l.bf16 %v572
      %v581 = vld [vmem:[%s4 + $0x4] sm:$0x1]
      %v582 = vlaneseq
      %v583 = vshrl.u32 %v582, 7
      %v584 = vsub.s32 0, %v583
      %v585 = vrot.slane %v581, %v584
      %v586 = vmul.f32 %v573, %v585
      %v587 = vmul.f32 %v574, %v585
      %v588 = vmul.f32 %v575, %v585
      %v589 = vmul.f32 %v576, %v585
      %v590 = vmul.f32 %v577, %v585
      %v591 = vmul.f32 %v578, %v585
      %v592 = vmul.f32 %v579, %v585
      %v593 = vmul.f32 %v580, %v585
      %v594 = vadd.f32 %v557, %v586
      %v595 = vadd.f32 %v558, %v587
      %v596 = vadd.f32 %v559, %v588
      %v597 = vadd.f32 %v560, %v589
      %v598 = vadd.f32 %v561, %v590
      %v599 = vadd.f32 %v562, %v591
      %v600 = vadd.f32 %v563, %v592
      %v601 = vadd.f32 %v564, %v593
      %v602 = vld [vmem:[%s341 + $0x4] sm:$0x1]
      %v603 = vld [vmem:[%s341 + $0xc] sm:$0x1]
      %v604 = vld [vmem:[%s341 + $0x14] sm:$0x1]
      %v605 = vld [vmem:[%s341 + $0x1c] sm:$0x1]
      %v606 = vld [vmem:[%s341 + $0x24] sm:$0x1]
      %v607 = vld [vmem:[%s341 + $0x2c] sm:$0x1]
      %v608 = vld [vmem:[%s341 + $0x34] sm:$0x1]
      %v609 = vld [vmem:[%s341 + $0x3c] sm:$0x1]
      %v610 = vunpack.c.l.bf16 %v602
      %v611 = vunpack.c.l.bf16 %v603
      %v612 = vunpack.c.l.bf16 %v604
      %v613 = vunpack.c.l.bf16 %v605
      %v614 = vunpack.c.l.bf16 %v606
      %v615 = vunpack.c.l.bf16 %v607
      %v616 = vunpack.c.l.bf16 %v608
      %v617 = vunpack.c.l.bf16 %v609
      %v618 = vld [vmem:[%s4 + $0x5] sm:$0x1]
      %v619 = vlaneseq
      %v620 = vshrl.u32 %v619, 7
      %v621 = vsub.s32 0, %v620
      %v622 = vrot.slane %v618, %v621
      %v623 = vmul.f32 %v536, %v622
      %v624 = vmul.f32 %v610, %v622
      %v625 = vmul.f32 %v537, %v622
      %v626 = vmul.f32 %v611, %v622
      %v627 = vmul.f32 %v538, %v622
      %v628 = vmul.f32 %v612, %v622
      %v629 = vmul.f32 %v539, %v622
      %v630 = vmul.f32 %v613, %v622
      %v631 = vmul.f32 %v540, %v622
      %v632 = vmul.f32 %v614, %v622
      %v633 = vmul.f32 %v541, %v622
      %v634 = vmul.f32 %v615, %v622
      %v635 = vmul.f32 %v542, %v622
      %v636 = vmul.f32 %v616, %v622
      %v637 = vmul.f32 %v543, %v622
      %v638 = vmul.f32 %v617, %v622
      %v655 = vrot.slane %v623, 1
      %v656 = vrot.slane %v624, 1
      %v657 = vsel %vm487, %v655, %v656
      %v658 = vrot.slane %v625, 1
      %v659 = vrot.slane %v626, 1
      %v660 = vsel %vm487, %v658, %v659
      %v661 = vrot.slane %v627, 1
      %v662 = vrot.slane %v628, 1
      %v663 = vsel %vm487, %v661, %v662
      %v664 = vrot.slane %v629, 1
      %v665 = vrot.slane %v630, 1
      %v666 = vsel %vm487, %v664, %v665
      %v667 = vrot.slane %v631, 1
      %v668 = vrot.slane %v632, 1
      %v669 = vsel %vm487, %v667, %v668
      %v670 = vrot.slane %v633, 1
      %v671 = vrot.slane %v634, 1
      %v672 = vsel %vm487, %v670, %v671
      %v673 = vrot.slane %v635, 1
      %v674 = vrot.slane %v636, 1
      %v675 = vsel %vm487, %v673, %v674
      %v676 = vrot.slane %v637, 1
      %v677 = vrot.slane %v638, 1
      %v678 = vsel %vm487, %v676, %v677
      %v687 = vadd.f32 %v594, %v657
      %v688 = vadd.f32 %v595, %v660
      %v689 = vadd.f32 %v596, %v663
      %v690 = vadd.f32 %v597, %v666
      %v691 = vadd.f32 %v598, %v669
      %v692 = vadd.f32 %v599, %v672
      %v693 = vadd.f32 %v600, %v675
      %v694 = vadd.f32 %v601, %v678
      %s695 = scalar_lea.vmem %s331, 8
      %v696 = vld [vmem:[%s695] sm:$0xf]
      %v697 = vld [vmem:[%s695 + $0x8] sm:$0xf]
      %v698 = vld [vmem:[%s695 + $0x10] sm:$0xf]
      %v699 = vld [vmem:[%s695 + $0x18] sm:$0xf]
      %v700 = vld [vmem:[%s695 + $0x20] sm:$0xf]
      %v701 = vld [vmem:[%s695 + $0x28] sm:$0xf]
      %v702 = vld [vmem:[%s695 + $0x30] sm:$0xf]
      %v703 = vld [vmem:[%s695 + $0x38] sm:$0xf]
      %v704 = vunpack.c.l.bf16 %v696
      %v705 = vunpack.c.l.bf16 %v697
      %v706 = vunpack.c.l.bf16 %v698
      %v707 = vunpack.c.l.bf16 %v699
      %v708 = vunpack.c.l.bf16 %v700
      %v709 = vunpack.c.l.bf16 %v701
      %v710 = vunpack.c.l.bf16 %v702
      %v711 = vunpack.c.l.bf16 %v703
      %v712 = vld [vmem:[%s4 + $0x6] sm:$0x1]
      %v713 = vlaneseq
      %v714 = vshrl.u32 %v713, 7
      %v715 = vsub.s32 0, %v714
      %v716 = vrot.slane %v712, %v715
      %v717 = vmul.f32 %v704, %v716
      %v718 = vmul.f32 %v705, %v716
      %v719 = vmul.f32 %v706, %v716
      %v720 = vmul.f32 %v707, %v716
      %v721 = vmul.f32 %v708, %v716
      %v722 = vmul.f32 %v709, %v716
      %v723 = vmul.f32 %v710, %v716
      %v724 = vmul.f32 %v711, %v716
      %v725 = vadd.f32 %v687, %v717
      %v726 = vadd.f32 %v688, %v718
      %v727 = vadd.f32 %v689, %v719
      %v728 = vadd.f32 %v690, %v720
      %v729 = vadd.f32 %v691, %v721
      %v730 = vadd.f32 %v692, %v722
      %v731 = vadd.f32 %v693, %v723
      %v732 = vadd.f32 %v694, %v724
      %s733 = scalar_lea.vmem %s336, 8
      %v734 = vld [vmem:[%s733] sm:$0xf]
      %v735 = vld [vmem:[%s733 + $0x8] sm:$0xf]
      %v736 = vld [vmem:[%s733 + $0x10] sm:$0xf]
      %v737 = vld [vmem:[%s733 + $0x18] sm:$0xf]
      %v738 = vld [vmem:[%s733 + $0x20] sm:$0xf]
      %v739 = vld [vmem:[%s733 + $0x28] sm:$0xf]
      %v740 = vld [vmem:[%s733 + $0x30] sm:$0xf]
      %v741 = vld [vmem:[%s733 + $0x38] sm:$0xf]
      %v742 = vunpack.c.l.bf16 %v734
      %v743 = vunpack.c.l.bf16 %v735
      %v744 = vunpack.c.l.bf16 %v736
      %v745 = vunpack.c.l.bf16 %v737
      %v746 = vunpack.c.l.bf16 %v738
      %v747 = vunpack.c.l.bf16 %v739
      %v748 = vunpack.c.l.bf16 %v740
      %v749 = vunpack.c.l.bf16 %v741
      %v750 = vld [vmem:[%s4 + $0x7] sm:$0x1]
      %v751 = vlaneseq
      %v752 = vshrl.u32 %v751, 7
      %v753 = vsub.s32 0, %v752
      %v754 = vrot.slane %v750, %v753
      %v755 = vmul.f32 %v742, %v754
      %v756 = vmul.f32 %v743, %v754
      %v757 = vmul.f32 %v744, %v754
      %v758 = vmul.f32 %v745, %v754
      %v759 = vmul.f32 %v746, %v754
      %v760 = vmul.f32 %v747, %v754
      %v761 = vmul.f32 %v748, %v754
      %v762 = vmul.f32 %v749, %v754
      %v763 = vadd.f32 %v725, %v755
      %v764 = vadd.f32 %v726, %v756
      %v765 = vadd.f32 %v727, %v757
      %v766 = vadd.f32 %v728, %v758
      %v767 = vadd.f32 %v729, %v759
      %v768 = vadd.f32 %v730, %v760
      %v769 = vadd.f32 %v731, %v761
      %v770 = vadd.f32 %v732, %v762
      %v771 = vld [vmem:[%s695 + $0x4] sm:$0x1]
      %v772 = vld [vmem:[%s695 + $0xc] sm:$0x1]
      %v773 = vld [vmem:[%s695 + $0x14] sm:$0x1]
      %v774 = vld [vmem:[%s695 + $0x1c] sm:$0x1]
      %v775 = vld [vmem:[%s695 + $0x24] sm:$0x1]
      %v776 = vld [vmem:[%s695 + $0x2c] sm:$0x1]
      %v777 = vld [vmem:[%s695 + $0x34] sm:$0x1]
      %v778 = vld [vmem:[%s695 + $0x3c] sm:$0x1]
      %v779 = vunpack.c.l.bf16 %v771
      %v780 = vunpack.c.l.bf16 %v772
      %v781 = vunpack.c.l.bf16 %v773
      %v782 = vunpack.c.l.bf16 %v774
      %v783 = vunpack.c.l.bf16 %v775
      %v784 = vunpack.c.l.bf16 %v776
      %v785 = vunpack.c.l.bf16 %v777
      %v786 = vunpack.c.l.bf16 %v778
      %v787 = vld [vmem:[%s4 + $0x8] sm:$0x1]
      %v788 = vlaneseq
      %v789 = vshrl.u32 %v788, 7
      %v790 = vsub.s32 0, %v789
      %v791 = vrot.slane %v787, %v790
      %v792 = vmul.f32 %v704, %v791
      %v793 = vmul.f32 %v779, %v791
      %v794 = vmul.f32 %v705, %v791
      %v795 = vmul.f32 %v780, %v791
      %v796 = vmul.f32 %v706, %v791
      %v797 = vmul.f32 %v781, %v791
      %v798 = vmul.f32 %v707, %v791
      %v799 = vmul.f32 %v782, %v791
      %v800 = vmul.f32 %v708, %v791
      %v801 = vmul.f32 %v783, %v791
      %v802 = vmul.f32 %v709, %v791
      %v803 = vmul.f32 %v784, %v791
      %v804 = vmul.f32 %v710, %v791
      %v805 = vmul.f32 %v785, %v791
      %v806 = vmul.f32 %v711, %v791
      %v807 = vmul.f32 %v786, %v791
      %v824 = vrot.slane %v792, 1
      %v825 = vrot.slane %v793, 1
      %v826 = vsel %vm487, %v824, %v825
      %v827 = vrot.slane %v794, 1
      %v828 = vrot.slane %v795, 1
      %v829 = vsel %vm487, %v827, %v828
      %v830 = vrot.slane %v796, 1
      %v831 = vrot.slane %v797, 1
      %v832 = vsel %vm487, %v830, %v831
      %v833 = vrot.slane %v798, 1
      %v834 = vrot.slane %v799, 1
      %v835 = vsel %vm487, %v833, %v834
      %v836 = vrot.slane %v800, 1
      %v837 = vrot.slane %v801, 1
      %v838 = vsel %vm487, %v836, %v837
      %v839 = vrot.slane %v802, 1
      %v840 = vrot.slane %v803, 1
      %v841 = vsel %vm487, %v839, %v840
      %v842 = vrot.slane %v804, 1
      %v843 = vrot.slane %v805, 1
      %v844 = vsel %vm487, %v842, %v843
      %v845 = vrot.slane %v806, 1
      %v846 = vrot.slane %v807, 1
      %v847 = vsel %vm487, %v845, %v846
      %v856 = vadd.f32 %v763, %v826
      %v857 = vadd.f32 %v764, %v829
      %v858 = vadd.f32 %v765, %v832
      %v859 = vadd.f32 %v766, %v835
      %v860 = vadd.f32 %v767, %v838
      %v861 = vadd.f32 %v768, %v841
      %v862 = vadd.f32 %v769, %v844
      %v863 = vadd.f32 %v770, %v847
      %v864 = vpack.c.bf16 %v856, %v856
      %v865 = vpack.c.bf16 %v857, %v857
      %v866 = vpack.c.bf16 %v858, %v858
      %v867 = vpack.c.bf16 %v859, %v859
      %v868 = vpack.c.bf16 %v860, %v860
      %v869 = vpack.c.bf16 %v861, %v861
      %v870 = vpack.c.bf16 %v862, %v862
      %v871 = vpack.c.bf16 %v863, %v863
      %872 = vst [vmem:[%s351] sm:$0xf] %v864
      %873 = vst [vmem:[%s351 + $0x4] sm:$0xf] %v865
      %874 = vst [vmem:[%s351 + $0x8] sm:$0xf] %v866
      %875 = vst [vmem:[%s351 + $0xc] sm:$0xf] %v867
      %876 = vst [vmem:[%s351 + $0x10] sm:$0xf] %v868
      %877 = vst [vmem:[%s351 + $0x14] sm:$0xf] %v869
      %878 = vst [vmem:[%s351 + $0x18] sm:$0xf] %v870
      %879 = vst [vmem:[%s351 + $0x1c] sm:$0xf] %v871
      %v880 = vadd.f32 %v856, %v857
      %v881 = vadd.f32 %v880, %v858
      %v882 = vadd.f32 %v881, %v859
      %v883 = vadd.f32 %v882, %v860
      %v884 = vadd.f32 %v883, %v861
      %v885 = vadd.f32 %v884, %v862
      %v886 = vadd.f32 %v885, %v863
      %v887 = vrot.slane %v886, 4
      %v888 = vadd.f32 %v886, %v887
      %v889 = vrot.slane %v888, 2
      %v890 = vadd.f32 %v888, %v889
      %v891 = vrot.slane %v890, 1
      %v892 = vadd.f32 %v890, %v891
      %v893 = vmul.f32 %v856, %v856
      %v894 = vmul.f32 %v857, %v857
      %v895 = vmul.f32 %v858, %v858
      %v896 = vmul.f32 %v859, %v859
      %v897 = vmul.f32 %v860, %v860
      %v898 = vmul.f32 %v861, %v861
      %v899 = vmul.f32 %v862, %v862
      %v900 = vmul.f32 %v863, %v863
      %v901 = vadd.f32 %v893, %v894
      %v902 = vadd.f32 %v901, %v895
      %v903 = vadd.f32 %v902, %v896
      %v904 = vadd.f32 %v903, %v897
      %v905 = vadd.f32 %v904, %v898
      %v906 = vadd.f32 %v905, %v899
      %v907 = vadd.f32 %v906, %v900
      %v908 = vrot.slane %v907, 4
      %v909 = vadd.f32 %v907, %v908
      %v910 = vrot.slane %v909, 2
      %v911 = vadd.f32 %v909, %v910
      %v912 = vrot.slane %v911, 1
      %v913 = vadd.f32 %v911, %v912
      %914 = vst [vmem:[%s355] sm:$0xff] %v892
      %915 = vst [vmem:[%s359] sm:$0xff] %v913
      %p916 = scmp.lt.s32.totalorder %s19, 1
      %s917 = scalar_select %p916, %s19, 1
      %s918 = smul.addr %s917, 8
      %s919 = smul.addr %s918, 4
      %s920 = scalar_lea.vmem %s5, %s919
      %p921 = scmp.lt.s32.totalorder %s19, 1
      %s922 = scalar_select %p921, %s19, 1
      %s923 = smul.addr %s922, 8
      %s924 = scalar_lea.vmem %s6, %s923
      %p925 = scmp.lt.s32.totalorder %s19, 1
      %s926 = scalar_select %p925, %s19, 1
      %s927 = smul.addr %s926, 8
      %s928 = scalar_lea.vmem %s7, %s927
      // Predicated region
      $region41: #{patch_merging.8} parent=39 // pred_check
        %p929 = pneg %p162
      $region42: #{patch_merging.8} parent=39 // pred_check_branch
        %931 = sbr.rel (%p929) target = $region44
      $region43: #{patch_merging.8} parent=39 // pred_region
        _
      $region44: #{patch_merging.8} parent=39 // pred_fallthru
        _
      // Predicated region
      $region45: #{patch_merging.8} parent=39 // pred_check
        %p932 = pneg %p188
      $region46: #{patch_merging.8} parent=39 // pred_check_branch
        %934 = sbr.rel (%p932) target = $region48
      $region47: #{patch_merging.8} parent=39 // pred_region
        _
      $region48: #{patch_merging.8} parent=39 // pred_fallthru
        _
      // Predicated region
      $region49: #{patch_merging.8} parent=39 // pred_check
        %p935 = pneg %p214
      $region50: #{patch_merging.8} parent=39 // pred_check_branch
        %937 = sbr.rel (%p935) target = $region52
      $region51: #{patch_merging.8} parent=39 // pred_region
        _
      $region52: #{patch_merging.8} parent=39 // pred_fallthru
        _
    $region40: #{patch_merging.8} parent=5 // pred_fallthru
      _
    %p938 = scmp.le.s32.totalorder 2, %s14
    // Predicated region
    $region53: #{patch_merging.8} parent=5 // pred_check
      %p939 = pneg %p938
    $region54: #{patch_merging.8} parent=5 // pred_check_branch
      %941 = sbr.rel (%p939) target = $region56
    $region55: #{patch_merging.8} parent=5 // pred_region
      %s942 = ssub.s32 %s14, 2
      // Predicated region
      $region57: #{patch_merging.8} parent=55 // pred_check
        %p943 = pneg %p168
      $region58: #{patch_merging.8} parent=55 // pred_check_branch
        %945 = sbr.rel (%p943) target = $region60
      $region59: #{patch_merging.8} parent=55 // pred_region
        %p946 = scmp.lt.s32.totalorder %s20, 1
        %s947 = scalar_select %p946, %s20, 1
        %s948 = smul.addr %s947, 8
        %s949 = smul.addr %s948, 4
        %s950 = scalar_lea.vmem %s5, %s949
      $region60: #{patch_merging.8} parent=55 // pred_fallthru
        _
      // Predicated region
      $region61: #{patch_merging.8} parent=55 // pred_check
        %p951 = pneg %p194
      $region62: #{patch_merging.8} parent=55 // pred_check_branch
        %953 = sbr.rel (%p951) target = $region64
      $region63: #{patch_merging.8} parent=55 // pred_region
        %p954 = scmp.lt.s32.totalorder %s20, 1
        %s955 = scalar_select %p954, %s20, 1
        %s956 = smul.addr %s955, 8
        %s957 = scalar_lea.vmem %s6, %s956
      $region64: #{patch_merging.8} parent=55 // pred_fallthru
        _
      // Predicated region
      $region65: #{patch_merging.8} parent=55 // pred_check
        %p958 = pneg %p220
      $region66: #{patch_merging.8} parent=55 // pred_check_branch
        %960 = sbr.rel (%p958) target = $region68
      $region67: #{patch_merging.8} parent=55 // pred_region
        %p961 = scmp.lt.s32.totalorder %s20, 1
        %s962 = scalar_select %p961, %s20, 1
        %s963 = smul.addr %s962, 8
        %s964 = scalar_lea.vmem %s7, %s963
      $region68: #{patch_merging.8} parent=55 // pred_fallthru
        _
    $region56: #{patch_merging.8} parent=5 // pred_fallthru
      _
  $region6: #{patch_merging.8} parent=0 // loop_footer
    %s18 = sadd.s32 1, %s14
  $region7: #{patch_merging.8} parent=0 // loop_footer_branch
    %13 = sbr.rel target = $region3
  $region8: #{patch_merging.8} parent=0 // loop_exit
    _

</llo_original>
